<compile_context>
chip_gen: v7x
topology: tpu7x:2x2x1
jax: 0.10.0
libtpu: 0.0.40
codegen_flags: <defaults>
</compile_context>

<pallas_src>
import jax
import jax.numpy as jnp
from jax import lax
from jax.experimental import pallas as pl
from jax.experimental.pallas import tpu as pltpu


# -----------------------------------------------------------------------------
# Kernel: whole decoder forward in a single invocation (grid = ())
# -----------------------------------------------------------------------------
def decoder_kernel(x_ref, h0_ref, c0_ref, wih0_ref, wihr_ref, whh_ref, b_ref,
                   wout_ref, bout_ref,
                   logits_ref, hN_ref, cN_ref,
                   seq_ref, xp_ref):
    """Inputs (all resident in VMEM, whole-array blocks):
         x_ref    : (T, B, E)            time-major embedded tokens
         h0_ref   : (L, B, H)            initial hidden per layer (context)
         c0_ref   : (L, B, H)            initial cell per layer (context)
         wih0_ref : (E, 4H)              layer-0 input->gates weight
         wihr_ref : (max(L-1,1), H, 4H)  layers 1..L-1 input->gates weights
         whh_ref  : (L, H, 4H)           hidden->gates weights
         b_ref    : (L, 1, 4H)           gate biases (i, f, g, o order)
         wout_ref : (H, V), bout_ref : (1, V)
       Outputs:
         logits_ref : (T, B, V), hN_ref / cN_ref : (L, B, H) final states
       Scratch:
         seq_ref : (T, B, H)   current layer's output sequence (next layer's input)
         xp_ref  : (T, B, 4H)  precomputed input projections for the current layer
    """
    T, B, E = x_ref.shape
    L, _, H = h0_ref.shape
    G = 4 * H
    V = wout_ref.shape[1]
    acc_t = jnp.float32

    def run_layer(layer, in_flat):
        # (1) Batched input projection for the whole sequence: one MXU-friendly
        #     (T*B, in) x (in, 4H) matmul, off the serial chain.  The bias add is
        #     folded in here, so nothing is re-broadcast inside the time loop.
        w_ih = wih0_ref[...] if layer == 0 else wihr_ref[layer - 1]
        xp = jnp.dot(in_flat.astype(w_ih.dtype), w_ih, preferred_element_type=acc_t)
        xp = xp + b_ref[layer]
        xp_ref[...] = xp.reshape(T, B, G)

        w_hh = whh_ref[layer]  # hoisted: loaded once per layer, closed over by the loop

        # (2) The recurrence: only h @ W_hh remains on the serial chain.
        def step(t, carry):
            h, c = carry
            gates = xp_ref[t] + jnp.dot(h.astype(w_hh.dtype), w_hh,
                                        preferred_element_type=acc_t)
            # Activate the full 4H-wide gates vector, then slice (i, f, g, o).
            sig = jax.nn.sigmoid(gates)
            tg = jnp.tanh(gates)
            i = sig[:, 0 * H:1 * H]
            f = sig[:, 1 * H:2 * H]
            g = tg[:, 2 * H:3 * H]
            o = sig[:, 3 * H:4 * H]
            c_new = f * c + i * g
            h_new = o * jnp.tanh(c_new)
            seq_ref[t] = h_new
            return h_new, c_new

        h_fin, c_fin = lax.fori_loop(0, T, step,
                                     (h0_ref[layer], c0_ref[layer]),
                                     unroll=True)
        hN_ref[layer] = h_fin
        cN_ref[layer] = c_fin

    # Layer 0 consumes the embedded tokens; layers 1..L-1 consume seq_ref in place
    # (safe: the whole previous-layer sequence is consumed by the batched projection
    #  above BEFORE this layer's time loop starts overwriting seq_ref).
    run_layer(0, x_ref[...].reshape(T * B, E))
    for l in range(1, L):
        run_layer(l, seq_ref[...].reshape(T * B, H))

    # (3) Vocab projection, fully outside the recurrence: one batched lane-dense
    #     (T*B, H) x (H, V) matmul over the last layer's hidden slab.
    hs = seq_ref[...].reshape(T * B, H)
    logits = jnp.dot(hs.astype(wout_ref.dtype), wout_ref[...],
                     preferred_element_type=acc_t) + bout_ref[...]
    logits_ref[...] = logits.reshape(T, B, V)


# -----------------------------------------------------------------------------
# Wrappers
# -----------------------------------------------------------------------------
def run_decoder_stack(x_emb_tm, h0, c0, params):
    T, B, E = x_emb_tm.shape
    L, _, H = h0.shape
    V = params["w_out"].shape[1]
    G = 4 * H
    # TODO(synk): at realistic H/V (and v7x's 64 MiB VMEM) tile the vocab projection
    # over V on a separate "parallel" grid axis (bf16 weights) instead of keeping
    # (H, V) fully resident; at these toy sizes everything fits in one VMEM block.
    return pl.pallas_call(
        decoder_kernel,
        out_shape=(
            jax.ShapeDtypeStruct((T, B, V), jnp.float32),
            jax.ShapeDtypeStruct((L, B, H), jnp.float32),
            jax.ShapeDtypeStruct((L, B, H), jnp.float32),
        ),
        scratch_shapes=[
            pltpu.VMEM((T, B, H), jnp.float32),   # inter-layer sequence buffer
            pltpu.VMEM((T, B, G), jnp.float32),   # batched input projections
        ],
    )(x_emb_tm, h0, c0,
      params["w_ih0"], params["w_ih_rest"], params["w_hh"], params["b"],
      params["w_out"], params["b_out"])


def decoder_forward(x, context, params):
    """Mirrors Decoder.forward(x, context) -> (y, State(hidden, cell)).

    x: (B, T) int32 token ids; context: (h0, c0) each (L, B, H), or None for zeros.
    Returns logits (B, T, V) and final per-layer states ((L,B,H), (L,B,H)).
    """
    B, T = x.shape
    L = params["w_hh"].shape[0]
    H = params["w_hh"].shape[1]
    # TODO(synk): embedding lookup is a gather; done with plain-JAX indexing here.
    x_emb = params["emb"][x]                       # (B, T, E)
    x_emb_tm = jnp.transpose(x_emb, (1, 0, 2))     # (T, B, E) time-major
    h0 = (jnp.zeros((L, B, H), jnp.float32)
          if context is None or context[0] is None else context[0])
    c0 = (jnp.zeros((L, B, H), jnp.float32)
          if context is None or context[1] is None else context[1])
    logits_tm, h_n, c_n = run_decoder_stack(x_emb_tm, h0, c0, params)
    return jnp.transpose(logits_tm, (1, 0, 2)), (h_n, c_n)


# -----------------------------------------------------------------------------
# Pure-JAX reference (for correctness check)
# -----------------------------------------------------------------------------
def decoder_reference(x, context, params):
    B, T = x.shape
    L, H, _ = params["w_hh"].shape
    seq = jnp.transpose(params["emb"][x], (1, 0, 2))  # (T, B, E)
    h0, c0 = context
    h_fin, c_fin = [], []
    for l in range(L):
        w_ih = params["w_ih0"] if l == 0 else params["w_ih_rest"][l - 1]
        w_hh = params["w_hh"][l]
        b = params["b"][l]
        h, c = h0[l], c0[l]
        outs = []
        for t in range(T):
            gates = seq[t] @ w_ih + h @ w_hh + b
            i = jax.nn.sigmoid(gates[:, 0 * H:1 * H])
            f = jax.nn.sigmoid(gates[:, 1 * H:2 * H])
            g = jnp.tanh(gates[:, 2 * H:3 * H])
            o = jax.nn.sigmoid(gates[:, 3 * H:4 * H])
            c = f * c + i * g
            h = o * jnp.tanh(c)
            outs.append(h)
        seq = jnp.stack(outs, 0)
        h_fin.append(h)
        c_fin.append(c)
    logits_tm = seq @ params["w_out"] + params["b_out"]
    return jnp.transpose(logits_tm, (1, 0, 2)), (jnp.stack(h_fin, 0), jnp.stack(c_fin, 0))


# -----------------------------------------------------------------------------
# Main
# -----------------------------------------------------------------------------
if __name__ == "__main__":
    B, T = 2, 8                 # batch, target sequence length
    V, E, H, L = 32, 16, 32, 4  # vocab, embed, hidden, n_layers (Decoder default = 4)

    key = jax.random.PRNGKey(0)
    kx, kh, kc, *kp = jax.random.split(key, 12)

    x = jax.random.randint(kx, (B, T), 0, V, dtype=jnp.int32)
    # "context" = per-layer (h, c) handed to the decoder (e.g. from an encoder).
    h0 = (0.1 * jax.random.normal(kh, (L, B, H))).astype(jnp.float32)
    c0 = (0.1 * jax.random.normal(kc, (L, B, H))).astype(jnp.float32)

    def init(k, shape, scale=0.1):
        return (scale * jax.random.normal(k, shape)).astype(jnp.float32)

    params = {
        "emb":       init(kp[0], (V, E)),
        "w_ih0":     init(kp[1], (E, 4 * H)),
        "w_ih_rest": init(kp[2], (max(L - 1, 1), H, 4 * H)),
        "w_hh":      init(kp[3], (L, H, 4 * H)),
        "b":         init(kp[4], (L, 1, 4 * H)),
        "w_out":     init(kp[5], (H, V)),
        "b_out":     init(kp[6], (1, V)),
    }

    fwd = jax.jit(decoder_forward)
    y, (h_n, c_n) = jax.block_until_ready(fwd(x, (h0, c0), params))
    y_ref, (h_ref, c_ref) = jax.block_until_ready(decoder_reference(x, (h0, c0), params))

    assert y.shape == (B, T, V), y.shape
    assert h_n.shape == (L, B, H) and c_n.shape == (L, B, H)
    assert jnp.allclose(y, y_ref, atol=2e-3, rtol=2e-3), "logits mismatch vs reference"
    assert jnp.allclose(h_n, h_ref, atol=2e-3, rtol=2e-3), "hidden-state mismatch vs reference"
    assert jnp.allclose(c_n, c_ref, atol=2e-3, rtol=2e-3), "cell-state mismatch vs reference"
    print("KERNEL_OK")
</pallas_src>

<mosaic_0001>
module attributes {stable_mosaic.version = 11 : i64} {
  func.func @decoder_kernel(%arg0: memref<8x2x16xf32, #tpu.memory_space<vmem>>, %arg1: memref<4x2x32xf32, #tpu.memory_space<vmem>>, %arg2: memref<4x2x32xf32, #tpu.memory_space<vmem>>, %arg3: memref<16x128xf32, #tpu.memory_space<vmem>>, %arg4: memref<3x32x128xf32, #tpu.memory_space<vmem>>, %arg5: memref<4x32x128xf32, #tpu.memory_space<vmem>>, %arg6: memref<4x1x128xf32, #tpu.memory_space<vmem>>, %arg7: memref<32x32xf32, #tpu.memory_space<vmem>>, %arg8: memref<1x32xf32, #tpu.memory_space<vmem>>, %arg9: memref<8x2x32xf32, #tpu.memory_space<vmem>>, %arg10: memref<4x2x32xf32, #tpu.memory_space<vmem>>, %arg11: memref<4x2x32xf32, #tpu.memory_space<vmem>>, %arg12: memref<8x2x32xf32, #tpu.memory_space<vmem>>, %arg13: memref<8x2x128xf32, #tpu.memory_space<vmem>>) attributes {dimension_semantics = [], scalar_prefetch = 0 : i64, scratch_operands = 2 : i64, tpu.core_type = #tpu.core_type<tc>} {
    %c0 = arith.constant 0 : index
    %c0_0 = arith.constant 0 : index
    %c0_1 = arith.constant 0 : index
    %0 = vector.load %arg0[%c0, %c0_0, %c0_1] : memref<8x2x16xf32, #tpu.memory_space<vmem>>, vector<8x2x16xf32>
    %1 = vector.shape_cast %0 : vector<8x2x16xf32> to vector<16x16xf32>
    %c0_2 = arith.constant 0 : index
    %c0_3 = arith.constant 0 : index
    %2 = vector.load %arg3[%c0_2, %c0_3] : memref<16x128xf32, #tpu.memory_space<vmem>>, vector<16x128xf32>
    %cst = arith.constant dense<0.000000e+00> : vector<16x128xf32>
    %3 = tpu.matmul %1, %2, %cst {dimension_numbers = #tpu.dot_dimension_numbers<[1], [0], [0], [1], [0, 0, 1, 1], [], []>} : vector<16x16xf32>, vector<16x128xf32>, vector<16x128xf32> -> vector<16x128xf32>
    %c0_4 = arith.constant 0 : index
    %c0_5 = arith.constant 0 : index
    %c0_6 = arith.constant 0 : index
    %4 = vector.load %arg6[%c0_4, %c0_5, %c0_6] : memref<4x1x128xf32, #tpu.memory_space<vmem>>, vector<1x1x128xf32>
    %5 = vector.shape_cast %4 : vector<1x1x128xf32> to vector<1x128xf32>
    %6 = vector.broadcast %5 : vector<1x128xf32> to vector<16x128xf32>
    %7 = arith.addf %3, %6 : vector<16x128xf32>
    %8 = vector.shape_cast %7 : vector<16x128xf32> to vector<8x2x128xf32>
    %c0_7 = arith.constant 0 : index
    %c0_8 = arith.constant 0 : index
    %c0_9 = arith.constant 0 : index
    %9 = vector.load %arg13[%c0_7, %c0_8, %c0_9] : memref<8x2x128xf32, #tpu.memory_space<vmem>>, vector<8x2x128xf32>
    tpu.vector_store %arg13[%c0_7, %c0_8, %c0_9], %8 {strides = array<i32>} : memref<8x2x128xf32, #tpu.memory_space<vmem>>, vector<8x2x128xf32>,
    %c0_10 = arith.constant 0 : index
    %c0_11 = arith.constant 0 : index
    %c0_12 = arith.constant 0 : index
    %10 = vector.load %arg5[%c0_10, %c0_11, %c0_12] : memref<4x32x128xf32, #tpu.memory_space<vmem>>, vector<1x32x128xf32>
    %11 = vector.shape_cast %10 : vector<1x32x128xf32> to vector<32x128xf32>
    %c0_13 = arith.constant 0 : index
    %c0_14 = arith.constant 0 : index
    %c0_15 = arith.constant 0 : index
    %12 = vector.load %arg1[%c0_13, %c0_14, %c0_15] : memref<4x2x32xf32, #tpu.memory_space<vmem>>, vector<1x2x32xf32>
    %13 = vector.shape_cast %12 : vector<1x2x32xf32> to vector<2x32xf32>
    %c0_16 = arith.constant 0 : index
    %c0_17 = arith.constant 0 : index
    %c0_18 = arith.constant 0 : index
    %14 = vector.load %arg2[%c0_16, %c0_17, %c0_18] : memref<4x2x32xf32, #tpu.memory_space<vmem>>, vector<1x2x32xf32>
    %15 = vector.shape_cast %14 : vector<1x2x32xf32> to vector<2x32xf32>
    %c0_i32 = arith.constant 0 : i32
    %16 = arith.index_cast %c0_i32 : i32 to index
    %c0_19 = arith.constant 0 : index
    %c0_20 = arith.constant 0 : index
    %17 = vector.load %arg13[%16, %c0_19, %c0_20] : memref<8x2x128xf32, #tpu.memory_space<vmem>>, vector<1x2x128xf32>
    %18 = vector.shape_cast %17 : vector<1x2x128xf32> to vector<2x128xf32>
    %cst_21 = arith.constant dense<0.000000e+00> : vector<2x128xf32>
    %19 = tpu.matmul %13, %11, %cst_21 {dimension_numbers = #tpu.dot_dimension_numbers<[1], [0], [0], [1], [0, 0, 1, 1], [], []>} : vector<2x32xf32>, vector<32x128xf32>, vector<2x128xf32> -> vector<2x128xf32>
    %20 = arith.addf %18, %19 : vector<2x128xf32>
    %21 = arith.negf %20 : vector<2x128xf32>
    %22 = math.exp %21 : vector<2x128xf32>
    %cst_22 = arith.constant 1.000000e+00 : f32
    %23 = vector.broadcast %cst_22 : f32 to vector<2x128xf32>
    %24 = arith.addf %23, %22 : vector<2x128xf32>
    %25 = arith.divf %23, %24 : vector<2x128xf32>
    %26 = math.tanh %20 : vector<2x128xf32>
    %27 = vector.extract_strided_slice %25 {offsets = [0, 0], sizes = [2, 32], strides = [1, 1]} : vector<2x128xf32> to vector<2x32xf32>
    %28 = vector.extract_strided_slice %25 {offsets = [0, 32], sizes = [2, 32], strides = [1, 1]} : vector<2x128xf32> to vector<2x32xf32>
    %29 = vector.extract_strided_slice %26 {offsets = [0, 64], sizes = [2, 32], strides = [1, 1]} : vector<2x128xf32> to vector<2x32xf32>
    %30 = vector.extract_strided_slice %25 {offsets = [0, 96], sizes = [2, 32], strides = [1, 1]} : vector<2x128xf32> to vector<2x32xf32>
    %31 = arith.mulf %28, %15 : vector<2x32xf32>
    %32 = arith.mulf %27, %29 : vector<2x32xf32>
    %33 = arith.addf %31, %32 : vector<2x32xf32>
    %34 = math.tanh %33 : vector<2x32xf32>
    %35 = arith.mulf %30, %34 : vector<2x32xf32>
    %36 = arith.index_cast %c0_i32 : i32 to index
    %c0_23 = arith.constant 0 : index
    %c0_24 = arith.constant 0 : index
    %37 = vector.load %arg12[%36, %c0_23, %c0_24] : memref<8x2x32xf32, #tpu.memory_space<vmem>>, vector<1x2x32xf32>
    %38 = vector.shape_cast %37 : vector<1x2x32xf32> to vector<2x32xf32>
    %39 = vector.shape_cast %35 : vector<2x32xf32> to vector<1x2x32xf32>
    tpu.vector_store %arg12[%36, %c0_23, %c0_24], %39 {strides = array<i32>} : memref<8x2x32xf32, #tpu.memory_space<vmem>>, vector<1x2x32xf32>,
    %c1_i32 = arith.constant 1 : i32
    %40 = arith.index_cast %c1_i32 : i32 to index
    %c0_25 = arith.constant 0 : index
    %c0_26 = arith.constant 0 : index
    %41 = vector.load %arg13[%40, %c0_25, %c0_26] : memref<8x2x128xf32, #tpu.memory_space<vmem>>, vector<1x2x128xf32>
    %42 = vector.shape_cast %41 : vector<1x2x128xf32> to vector<2x128xf32>
    %cst_27 = arith.constant dense<0.000000e+00> : vector<2x128xf32>
    %43 = tpu.matmul %35, %11, %cst_27 {dimension_numbers = #tpu.dot_dimension_numbers<[1], [0], [0], [1], [0, 0, 1, 1], [], []>} : vector<2x32xf32>, vector<32x128xf32>, vector<2x128xf32> -> vector<2x128xf32>
    %44 = arith.addf %42, %43 : vector<2x128xf32>
    %45 = arith.negf %44 : vector<2x128xf32>
    %46 = math.exp %45 : vector<2x128xf32>
    %cst_28 = arith.constant 1.000000e+00 : f32
    %47 = vector.broadcast %cst_28 : f32 to vector<2x128xf32>
    %48 = arith.addf %47, %46 : vector<2x128xf32>
    %49 = arith.divf %47, %48 : vector<2x128xf32>
    %50 = math.tanh %44 : vector<2x128xf32>
    %51 = vector.extract_strided_slice %49 {offsets = [0, 0], sizes = [2, 32], strides = [1, 1]} : vector<2x128xf32> to vector<2x32xf32>
    %52 = vector.extract_strided_slice %49 {offsets = [0, 32], sizes = [2, 32], strides = [1, 1]} : vector<2x128xf32> to vector<2x32xf32>
    %53 = vector.extract_strided_slice %50 {offsets = [0, 64], sizes = [2, 32], strides = [1, 1]} : vector<2x128xf32> to vector<2x32xf32>
    %54 = vector.extract_strided_slice %49 {offsets = [0, 96], sizes = [2, 32], strides = [1, 1]} : vector<2x128xf32> to vector<2x32xf32>
    %55 = arith.mulf %52, %33 : vector<2x32xf32>
    %56 = arith.mulf %51, %53 : vector<2x32xf32>
    %57 = arith.addf %55, %56 : vector<2x32xf32>
    %58 = math.tanh %57 : vector<2x32xf32>
    %59 = arith.mulf %54, %58 : vector<2x32xf32>
    %60 = arith.index_cast %c1_i32 : i32 to index
    %c0_29 = arith.constant 0 : index
    %c0_30 = arith.constant 0 : index
    %61 = vector.load %arg12[%60, %c0_29, %c0_30] : memref<8x2x32xf32, #tpu.memory_space<vmem>>, vector<1x2x32xf32>
    %62 = vector.shape_cast %61 : vector<1x2x32xf32> to vector<2x32xf32>
    %63 = vector.shape_cast %59 : vector<2x32xf32> to vector<1x2x32xf32>
    tpu.vector_store %arg12[%60, %c0_29, %c0_30], %63 {strides = array<i32>} : memref<8x2x32xf32, #tpu.memory_space<vmem>>, vector<1x2x32xf32>,
    %c2_i32 = arith.constant 2 : i32
    %64 = arith.index_cast %c2_i32 : i32 to index
    %c0_31 = arith.constant 0 : index
    %c0_32 = arith.constant 0 : index
    %65 = vector.load %arg13[%64, %c0_31, %c0_32] : memref<8x2x128xf32, #tpu.memory_space<vmem>>, vector<1x2x128xf32>
    %66 = vector.shape_cast %65 : vector<1x2x128xf32> to vector<2x128xf32>
    %cst_33 = arith.constant dense<0.000000e+00> : vector<2x128xf32>
    %67 = tpu.matmul %59, %11, %cst_33 {dimension_numbers = #tpu.dot_dimension_numbers<[1], [0], [0], [1], [0, 0, 1, 1], [], []>} : vector<2x32xf32>, vector<32x128xf32>, vector<2x128xf32> -> vector<2x128xf32>
    %68 = arith.addf %66, %67 : vector<2x128xf32>
    %69 = arith.negf %68 : vector<2x128xf32>
    %70 = math.exp %69 : vector<2x128xf32>
    %cst_34 = arith.constant 1.000000e+00 : f32
    %71 = vector.broadcast %cst_34 : f32 to vector<2x128xf32>
    %72 = arith.addf %71, %70 : vector<2x128xf32>
    %73 = arith.divf %71, %72 : vector<2x128xf32>
    %74 = math.tanh %68 : vector<2x128xf32>
    %75 = vector.extract_strided_slice %73 {offsets = [0, 0], sizes = [2, 32], strides = [1, 1]} : vector<2x128xf32> to vector<2x32xf32>
    %76 = vector.extract_strided_slice %73 {offsets = [0, 32], sizes = [2, 32], strides = [1, 1]} : vector<2x128xf32> to vector<2x32xf32>
    %77 = vector.extract_strided_slice %74 {offsets = [0, 64], sizes = [2, 32], strides = [1, 1]} : vector<2x128xf32> to vector<2x32xf32>
    %78 = vector.extract_strided_slice %73 {offsets = [0, 96], sizes = [2, 32], strides = [1, 1]} : vector<2x128xf32> to vector<2x32xf32>
    %79 = arith.mulf %76, %57 : vector<2x32xf32>
    %80 = arith.mulf %75, %77 : vector<2x32xf32>
    %81 = arith.addf %79, %80 : vector<2x32xf32>
    %82 = math.tanh %81 : vector<2x32xf32>
    %83 = arith.mulf %78, %82 : vector<2x32xf32>
    %84 = arith.index_cast %c2_i32 : i32 to index
    %c0_35 = arith.constant 0 : index
    %c0_36 = arith.constant 0 : index
    %85 = vector.load %arg12[%84, %c0_35, %c0_36] : memref<8x2x32xf32, #tpu.memory_space<vmem>>, vector<1x2x32xf32>
    %86 = vector.shape_cast %85 : vector<1x2x32xf32> to vector<2x32xf32>
    %87 = vector.shape_cast %83 : vector<2x32xf32> to vector<1x2x32xf32>
    tpu.vector_store %arg12[%84, %c0_35, %c0_36], %87 {strides = array<i32>} : memref<8x2x32xf32, #tpu.memory_space<vmem>>, vector<1x2x32xf32>,
    %c3_i32 = arith.constant 3 : i32
    %88 = arith.index_cast %c3_i32 : i32 to index
    %c0_37 = arith.constant 0 : index
    %c0_38 = arith.constant 0 : index
    %89 = vector.load %arg13[%88, %c0_37, %c0_38] : memref<8x2x128xf32, #tpu.memory_space<vmem>>, vector<1x2x128xf32>
    %90 = vector.shape_cast %89 : vector<1x2x128xf32> to vector<2x128xf32>
    %cst_39 = arith.constant dense<0.000000e+00> : vector<2x128xf32>
    %91 = tpu.matmul %83, %11, %cst_39 {dimension_numbers = #tpu.dot_dimension_numbers<[1], [0], [0], [1], [0, 0, 1, 1], [], []>} : vector<2x32xf32>, vector<32x128xf32>, vector<2x128xf32> -> vector<2x128xf32>
    %92 = arith.addf %90, %91 : vector<2x128xf32>
    %93 = arith.negf %92 : vector<2x128xf32>
    %94 = math.exp %93 : vector<2x128xf32>
    %cst_40 = arith.constant 1.000000e+00 : f32
    %95 = vector.broadcast %cst_40 : f32 to vector<2x128xf32>
    %96 = arith.addf %95, %94 : vector<2x128xf32>
    %97 = arith.divf %95, %96 : vector<2x128xf32>
    %98 = math.tanh %92 : vector<2x128xf32>
    %99 = vector.extract_strided_slice %97 {offsets = [0, 0], sizes = [2, 32], strides = [1, 1]} : vector<2x128xf32> to vector<2x32xf32>
    %100 = vector.extract_strided_slice %97 {offsets = [0, 32], sizes = [2, 32], strides = [1, 1]} : vector<2x128xf32> to vector<2x32xf32>
    %101 = vector.extract_strided_slice %98 {offsets = [0, 64], sizes = [2, 32], strides = [1, 1]} : vector<2x128xf32> to vector<2x32xf32>
    %102 = vector.extract_strided_slice %97 {offsets = [0, 96], sizes = [2, 32], strides = [1, 1]} : vector<2x128xf32> to vector<2x32xf32>
    %103 = arith.mulf %100, %81 : vector<2x32xf32>
    %104 = arith.mulf %99, %101 : vector<2x32xf32>
    %105 = arith.addf %103, %104 : vector<2x32xf32>
    %106 = math.tanh %105 : vector<2x32xf32>
    %107 = arith.mulf %102, %106 : vector<2x32xf32>
    %108 = arith.index_cast %c3_i32 : i32 to index
    %c0_41 = arith.constant 0 : index
    %c0_42 = arith.constant 0 : index
    %109 = vector.load %arg12[%108, %c0_41, %c0_42] : memref<8x2x32xf32, #tpu.memory_space<vmem>>, vector<1x2x32xf32>
    %110 = vector.shape_cast %109 : vector<1x2x32xf32> to vector<2x32xf32>
    %111 = vector.shape_cast %107 : vector<2x32xf32> to vector<1x2x32xf32>
    tpu.vector_store %arg12[%108, %c0_41, %c0_42], %111 {strides = array<i32>} : memref<8x2x32xf32, #tpu.memory_space<vmem>>, vector<1x2x32xf32>,
    %c4_i32 = arith.constant 4 : i32
    %112 = arith.index_cast %c4_i32 : i32 to index
    %c0_43 = arith.constant 0 : index
    %c0_44 = arith.constant 0 : index
    %113 = vector.load %arg13[%112, %c0_43, %c0_44] : memref<8x2x128xf32, #tpu.memory_space<vmem>>, vector<1x2x128xf32>
    %114 = vector.shape_cast %113 : vector<1x2x128xf32> to vector<2x128xf32>
    %cst_45 = arith.constant dense<0.000000e+00> : vector<2x128xf32>
    %115 = tpu.matmul %107, %11, %cst_45 {dimension_numbers = #tpu.dot_dimension_numbers<[1], [0], [0], [1], [0, 0, 1, 1], [], []>} : vector<2x32xf32>, vector<32x128xf32>, vector<2x128xf32> -> vector<2x128xf32>
    %116 = arith.addf %114, %115 : vector<2x128xf32>
    %117 = arith.negf %116 : vector<2x128xf32>
    %118 = math.exp %117 : vector<2x128xf32>
    %cst_46 = arith.constant 1.000000e+00 : f32
    %119 = vector.broadcast %cst_46 : f32 to vector<2x128xf32>
    %120 = arith.addf %119, %118 : vector<2x128xf32>
    %121 = arith.divf %119, %120 : vector<2x128xf32>
    %122 = math.tanh %116 : vector<2x128xf32>
    %123 = vector.extract_strided_slice %121 {offsets = [0, 0], sizes = [2, 32], strides = [1, 1]} : vector<2x128xf32> to vector<2x32xf32>
    %124 = vector.extract_strided_slice %121 {offsets = [0, 32], sizes = [2, 32], strides = [1, 1]} : vector<2x128xf32> to vector<2x32xf32>
    %125 = vector.extract_strided_slice %122 {offsets = [0, 64], sizes = [2, 32], strides = [1, 1]} : vector<2x128xf32> to vector<2x32xf32>
    %126 = vector.extract_strided_slice %121 {offsets = [0, 96], sizes = [2, 32], strides = [1, 1]} : vector<2x128xf32> to vector<2x32xf32>
    %127 = arith.mulf %124, %105 : vector<2x32xf32>
    %128 = arith.mulf %123, %125 : vector<2x32xf32>
    %129 = arith.addf %127, %128 : vector<2x32xf32>
    %130 = math.tanh %129 : vector<2x32xf32>
    %131 = arith.mulf %126, %130 : vector<2x32xf32>
    %132 = arith.index_cast %c4_i32 : i32 to index
    %c0_47 = arith.constant 0 : index
    %c0_48 = arith.constant 0 : index
    %133 = vector.load %arg12[%132, %c0_47, %c0_48] : memref<8x2x32xf32, #tpu.memory_space<vmem>>, vector<1x2x32xf32>
    %134 = vector.shape_cast %133 : vector<1x2x32xf32> to vector<2x32xf32>
    %135 = vector.shape_cast %131 : vector<2x32xf32> to vector<1x2x32xf32>
    tpu.vector_store %arg12[%132, %c0_47, %c0_48], %135 {strides = array<i32>} : memref<8x2x32xf32, #tpu.memory_space<vmem>>, vector<1x2x32xf32>,
    %c5_i32 = arith.constant 5 : i32
    %136 = arith.index_cast %c5_i32 : i32 to index
    %c0_49 = arith.constant 0 : index
    %c0_50 = arith.constant 0 : index
    %137 = vector.load %arg13[%136, %c0_49, %c0_50] : memref<8x2x128xf32, #tpu.memory_space<vmem>>, vector<1x2x128xf32>
    %138 = vector.shape_cast %137 : vector<1x2x128xf32> to vector<2x128xf32>
    %cst_51 = arith.constant dense<0.000000e+00> : vector<2x128xf32>
    %139 = tpu.matmul %131, %11, %cst_51 {dimension_numbers = #tpu.dot_dimension_numbers<[1], [0], [0], [1], [0, 0, 1, 1], [], []>} : vector<2x32xf32>, vector<32x128xf32>, vector<2x128xf32> -> vector<2x128xf32>
    %140 = arith.addf %138, %139 : vector<2x128xf32>
    %141 = arith.negf %140 : vector<2x128xf32>
    %142 = math.exp %141 : vector<2x128xf32>
    %cst_52 = arith.constant 1.000000e+00 : f32
    %143 = vector.broadcast %cst_52 : f32 to vector<2x128xf32>
    %144 = arith.addf %143, %142 : vector<2x128xf32>
    %145 = arith.divf %143, %144 : vector<2x128xf32>
    %146 = math.tanh %140 : vector<2x128xf32>
    %147 = vector.extract_strided_slice %145 {offsets = [0, 0], sizes = [2, 32], strides = [1, 1]} : vector<2x128xf32> to vector<2x32xf32>
    %148 = vector.extract_strided_slice %145 {offsets = [0, 32], sizes = [2, 32], strides = [1, 1]} : vector<2x128xf32> to vector<2x32xf32>
    %149 = vector.extract_strided_slice %146 {offsets = [0, 64], sizes = [2, 32], strides = [1, 1]} : vector<2x128xf32> to vector<2x32xf32>
    %150 = vector.extract_strided_slice %145 {offsets = [0, 96], sizes = [2, 32], strides = [1, 1]} : vector<2x128xf32> to vector<2x32xf32>
    %151 = arith.mulf %148, %129 : vector<2x32xf32>
    %152 = arith.mulf %147, %149 : vector<2x32xf32>
    %153 = arith.addf %151, %152 : vector<2x32xf32>
    %154 = math.tanh %153 : vector<2x32xf32>
    %155 = arith.mulf %150, %154 : vector<2x32xf32>
    %156 = arith.index_cast %c5_i32 : i32 to index
    %c0_53 = arith.constant 0 : index
    %c0_54 = arith.constant 0 : index
    %157 = vector.load %arg12[%156, %c0_53, %c0_54] : memref<8x2x32xf32, #tpu.memory_space<vmem>>, vector<1x2x32xf32>
    %158 = vector.shape_cast %157 : vector<1x2x32xf32> to vector<2x32xf32>
    %159 = vector.shape_cast %155 : vector<2x32xf32> to vector<1x2x32xf32>
    tpu.vector_store %arg12[%156, %c0_53, %c0_54], %159 {strides = array<i32>} : memref<8x2x32xf32, #tpu.memory_space<vmem>>, vector<1x2x32xf32>,
    %c6_i32 = arith.constant 6 : i32
    %160 = arith.index_cast %c6_i32 : i32 to index
    %c0_55 = arith.constant 0 : index
    %c0_56 = arith.constant 0 : index
    %161 = vector.load %arg13[%160, %c0_55, %c0_56] : memref<8x2x128xf32, #tpu.memory_space<vmem>>, vector<1x2x128xf32>
    %162 = vector.shape_cast %161 : vector<1x2x128xf32> to vector<2x128xf32>
    %cst_57 = arith.constant dense<0.000000e+00> : vector<2x128xf32>
    %163 = tpu.matmul %155, %11, %cst_57 {dimension_numbers = #tpu.dot_dimension_numbers<[1], [0], [0], [1], [0, 0, 1, 1], [], []>} : vector<2x32xf32>, vector<32x128xf32>, vector<2x128xf32> -> vector<2x128xf32>
    %164 = arith.addf %162, %163 : vector<2x128xf32>
    %165 = arith.negf %164 : vector<2x128xf32>
    %166 = math.exp %165 : vector<2x128xf32>
    %cst_58 = arith.constant 1.000000e+00 : f32
    %167 = vector.broadcast %cst_58 : f32 to vector<2x128xf32>
    %168 = arith.addf %167, %166 : vector<2x128xf32>
    %169 = arith.divf %167, %168 : vector<2x128xf32>
    %170 = math.tanh %164 : vector<2x128xf32>
    %171 = vector.extract_strided_slice %169 {offsets = [0, 0], sizes = [2, 32], strides = [1, 1]} : vector<2x128xf32> to vector<2x32xf32>
    %172 = vector.extract_strided_slice %169 {offsets = [0, 32], sizes = [2, 32], strides = [1, 1]} : vector<2x128xf32> to vector<2x32xf32>
    %173 = vector.extract_strided_slice %170 {offsets = [0, 64], sizes = [2, 32], strides = [1, 1]} : vector<2x128xf32> to vector<2x32xf32>
    %174 = vector.extract_strided_slice %169 {offsets = [0, 96], sizes = [2, 32], strides = [1, 1]} : vector<2x128xf32> to vector<2x32xf32>
    %175 = arith.mulf %172, %153 : vector<2x32xf32>
    %176 = arith.mulf %171, %173 : vector<2x32xf32>
    %177 = arith.addf %175, %176 : vector<2x32xf32>
    %178 = math.tanh %177 : vector<2x32xf32>
    %179 = arith.mulf %174, %178 : vector<2x32xf32>
    %180 = arith.index_cast %c6_i32 : i32 to index
    %c0_59 = arith.constant 0 : index
    %c0_60 = arith.constant 0 : index
    %181 = vector.load %arg12[%180, %c0_59, %c0_60] : memref<8x2x32xf32, #tpu.memory_space<vmem>>, vector<1x2x32xf32>
    %182 = vector.shape_cast %181 : vector<1x2x32xf32> to vector<2x32xf32>
    %183 = vector.shape_cast %179 : vector<2x32xf32> to vector<1x2x32xf32>
    tpu.vector_store %arg12[%180, %c0_59, %c0_60], %183 {strides = array<i32>} : memref<8x2x32xf32, #tpu.memory_space<vmem>>, vector<1x2x32xf32>,
    %c7_i32 = arith.constant 7 : i32
    %184 = arith.index_cast %c7_i32 : i32 to index
    %c0_61 = arith.constant 0 : index
    %c0_62 = arith.constant 0 : index
    %185 = vector.load %arg13[%184, %c0_61, %c0_62] : memref<8x2x128xf32, #tpu.memory_space<vmem>>, vector<1x2x128xf32>
    %186 = vector.shape_cast %185 : vector<1x2x128xf32> to vector<2x128xf32>
    %cst_63 = arith.constant dense<0.000000e+00> : vector<2x128xf32>
    %187 = tpu.matmul %179, %11, %cst_63 {dimension_numbers = #tpu.dot_dimension_numbers<[1], [0], [0], [1], [0, 0, 1, 1], [], []>} : vector<2x32xf32>, vector<32x128xf32>, vector<2x128xf32> -> vector<2x128xf32>
    %188 = arith.addf %186, %187 : vector<2x128xf32>
    %189 = arith.negf %188 : vector<2x128xf32>
    %190 = math.exp %189 : vector<2x128xf32>
    %cst_64 = arith.constant 1.000000e+00 : f32
    %191 = vector.broadcast %cst_64 : f32 to vector<2x128xf32>
    %192 = arith.addf %191, %190 : vector<2x128xf32>
    %193 = arith.divf %191, %192 : vector<2x128xf32>
    %194 = math.tanh %188 : vector<2x128xf32>
    %195 = vector.extract_strided_slice %193 {offsets = [0, 0], sizes = [2, 32], strides = [1, 1]} : vector<2x128xf32> to vector<2x32xf32>
    %196 = vector.extract_strided_slice %193 {offsets = [0, 32], sizes = [2, 32], strides = [1, 1]} : vector<2x128xf32> to vector<2x32xf32>
    %197 = vector.extract_strided_slice %194 {offsets = [0, 64], sizes = [2, 32], strides = [1, 1]} : vector<2x128xf32> to vector<2x32xf32>
    %198 = vector.extract_strided_slice %193 {offsets = [0, 96], sizes = [2, 32], strides = [1, 1]} : vector<2x128xf32> to vector<2x32xf32>
    %199 = arith.mulf %196, %177 : vector<2x32xf32>
    %200 = arith.mulf %195, %197 : vector<2x32xf32>
    %201 = arith.addf %199, %200 : vector<2x32xf32>
    %202 = math.tanh %201 : vector<2x32xf32>
    %203 = arith.mulf %198, %202 : vector<2x32xf32>
    %204 = arith.index_cast %c7_i32 : i32 to index
    %c0_65 = arith.constant 0 : index
    %c0_66 = arith.constant 0 : index
    %205 = vector.load %arg12[%204, %c0_65, %c0_66] : memref<8x2x32xf32, #tpu.memory_space<vmem>>, vector<1x2x32xf32>
    %206 = vector.shape_cast %205 : vector<1x2x32xf32> to vector<2x32xf32>
    %207 = vector.shape_cast %203 : vector<2x32xf32> to vector<1x2x32xf32>
    tpu.vector_store %arg12[%204, %c0_65, %c0_66], %207 {strides = array<i32>} : memref<8x2x32xf32, #tpu.memory_space<vmem>>, vector<1x2x32xf32>,
    %c8_i32 = arith.constant 8 : i32
    %c0_67 = arith.constant 0 : index
    %c0_68 = arith.constant 0 : index
    %c0_69 = arith.constant 0 : index
    %208 = vector.load %arg10[%c0_67, %c0_68, %c0_69] : memref<4x2x32xf32, #tpu.memory_space<vmem>>, vector<1x2x32xf32>
    %209 = vector.shape_cast %208 : vector<1x2x32xf32> to vector<2x32xf32>
    %210 = vector.shape_cast %203 : vector<2x32xf32> to vector<1x2x32xf32>
    tpu.vector_store %arg10[%c0_67, %c0_68, %c0_69], %210 {strides = array<i32>} : memref<4x2x32xf32, #tpu.memory_space<vmem>>, vector<1x2x32xf32>,
    %c0_70 = arith.constant 0 : index
    %c0_71 = arith.constant 0 : index
    %c0_72 = arith.constant 0 : index
    %211 = vector.load %arg11[%c0_70, %c0_71, %c0_72] : memref<4x2x32xf32, #tpu.memory_space<vmem>>, vector<1x2x32xf32>
    %212 = vector.shape_cast %211 : vector<1x2x32xf32> to vector<2x32xf32>
    %213 = vector.shape_cast %201 : vector<2x32xf32> to vector<1x2x32xf32>
    tpu.vector_store %arg11[%c0_70, %c0_71, %c0_72], %213 {strides = array<i32>} : memref<4x2x32xf32, #tpu.memory_space<vmem>>, vector<1x2x32xf32>,
    %c0_73 = arith.constant 0 : index
    %c0_74 = arith.constant 0 : index
    %c0_75 = arith.constant 0 : index
    %214 = vector.load %arg12[%c0_73, %c0_74, %c0_75] : memref<8x2x32xf32, #tpu.memory_space<vmem>>, vector<8x2x32xf32>
    %215 = vector.shape_cast %214 : vector<8x2x32xf32> to vector<16x32xf32>
    %c0_76 = arith.constant 0 : index
    %c0_77 = arith.constant 0 : index
    %c0_78 = arith.constant 0 : index
    %216 = vector.load %arg4[%c0_76, %c0_77, %c0_78] : memref<3x32x128xf32, #tpu.memory_space<vmem>>, vector<1x32x128xf32>
    %217 = vector.shape_cast %216 : vector<1x32x128xf32> to vector<32x128xf32>
    %cst_79 = arith.constant dense<0.000000e+00> : vector<16x128xf32>
    %218 = tpu.matmul %215, %217, %cst_79 {dimension_numbers = #tpu.dot_dimension_numbers<[1], [0], [0], [1], [0, 0, 1, 1], [], []>} : vector<16x32xf32>, vector<32x128xf32>, vector<16x128xf32> -> vector<16x128xf32>
    %c1 = arith.constant 1 : index
    %c0_80 = arith.constant 0 : index
    %c0_81 = arith.constant 0 : index
    %219 = vector.load %arg6[%c1, %c0_80, %c0_81] : memref<4x1x128xf32, #tpu.memory_space<vmem>>, vector<1x1x128xf32>
    %220 = vector.shape_cast %219 : vector<1x1x128xf32> to vector<1x128xf32>
    %221 = vector.broadcast %220 : vector<1x128xf32> to vector<16x128xf32>
    %222 = arith.addf %218, %221 : vector<16x128xf32>
    %223 = vector.shape_cast %222 : vector<16x128xf32> to vector<8x2x128xf32>
    %c0_82 = arith.constant 0 : index
    %c0_83 = arith.constant 0 : index
    %c0_84 = arith.constant 0 : index
    %224 = vector.load %arg13[%c0_82, %c0_83, %c0_84] : memref<8x2x128xf32, #tpu.memory_space<vmem>>, vector<8x2x128xf32>
    tpu.vector_store %arg13[%c0_82, %c0_83, %c0_84], %223 {strides = array<i32>} : memref<8x2x128xf32, #tpu.memory_space<vmem>>, vector<8x2x128xf32>,
    %c1_85 = arith.constant 1 : index
    %c0_86 = arith.constant 0 : index
    %c0_87 = arith.constant 0 : index
    %225 = vector.load %arg5[%c1_85, %c0_86, %c0_87] : memref<4x32x128xf32, #tpu.memory_space<vmem>>, vector<1x32x128xf32>
    %226 = vector.shape_cast %225 : vector<1x32x128xf32> to vector<32x128xf32>
    %c1_88 = arith.constant 1 : index
    %c0_89 = arith.constant 0 : index
    %c0_90 = arith.constant 0 : index
    %227 = vector.load %arg1[%c1_88, %c0_89, %c0_90] : memref<4x2x32xf32, #tpu.memory_space<vmem>>, vector<1x2x32xf32>
    %228 = vector.shape_cast %227 : vector<1x2x32xf32> to vector<2x32xf32>
    %c1_91 = arith.constant 1 : index
    %c0_92 = arith.constant 0 : index
    %c0_93 = arith.constant 0 : index
    %229 = vector.load %arg2[%c1_91, %c0_92, %c0_93] : memref<4x2x32xf32, #tpu.memory_space<vmem>>, vector<1x2x32xf32>
    %230 = vector.shape_cast %229 : vector<1x2x32xf32> to vector<2x32xf32>
    %c0_i32_94 = arith.constant 0 : i32
    %231 = arith.index_cast %c0_i32_94 : i32 to index
    %c0_95 = arith.constant 0 : index
    %c0_96 = arith.constant 0 : index
    %232 = vector.load %arg13[%231, %c0_95, %c0_96] : memref<8x2x128xf32, #tpu.memory_space<vmem>>, vector<1x2x128xf32>
    %233 = vector.shape_cast %232 : vector<1x2x128xf32> to vector<2x128xf32>
    %cst_97 = arith.constant dense<0.000000e+00> : vector<2x128xf32>
    %234 = tpu.matmul %228, %226, %cst_97 {dimension_numbers = #tpu.dot_dimension_numbers<[1], [0], [0], [1], [0, 0, 1, 1], [], []>} : vector<2x32xf32>, vector<32x128xf32>, vector<2x128xf32> -> vector<2x128xf32>
    %235 = arith.addf %233, %234 : vector<2x128xf32>
    %236 = arith.negf %235 : vector<2x128xf32>
    %237 = math.exp %236 : vector<2x128xf32>
    %cst_98 = arith.constant 1.000000e+00 : f32
    %238 = vector.broadcast %cst_98 : f32 to vector<2x128xf32>
    %239 = arith.addf %238, %237 : vector<2x128xf32>
    %240 = arith.divf %238, %239 : vector<2x128xf32>
    %241 = math.tanh %235 : vector<2x128xf32>
    %242 = vector.extract_strided_slice %240 {offsets = [0, 0], sizes = [2, 32], strides = [1, 1]} : vector<2x128xf32> to vector<2x32xf32>
    %243 = vector.extract_strided_slice %240 {offsets = [0, 32], sizes = [2, 32], strides = [1, 1]} : vector<2x128xf32> to vector<2x32xf32>
    %244 = vector.extract_strided_slice %241 {offsets = [0, 64], sizes = [2, 32], strides = [1, 1]} : vector<2x128xf32> to vector<2x32xf32>
    %245 = vector.extract_strided_slice %240 {offsets = [0, 96], sizes = [2, 32], strides = [1, 1]} : vector<2x128xf32> to vector<2x32xf32>
    %246 = arith.mulf %243, %230 : vector<2x32xf32>
    %247 = arith.mulf %242, %244 : vector<2x32xf32>
    %248 = arith.addf %246, %247 : vector<2x32xf32>
    %249 = math.tanh %248 : vector<2x32xf32>
    %250 = arith.mulf %245, %249 : vector<2x32xf32>
    %251 = arith.index_cast %c0_i32_94 : i32 to index
    %c0_99 = arith.constant 0 : index
    %c0_100 = arith.constant 0 : index
    %252 = vector.load %arg12[%251, %c0_99, %c0_100] : memref<8x2x32xf32, #tpu.memory_space<vmem>>, vector<1x2x32xf32>
    %253 = vector.shape_cast %252 : vector<1x2x32xf32> to vector<2x32xf32>
    %254 = vector.shape_cast %250 : vector<2x32xf32> to vector<1x2x32xf32>
    tpu.vector_store %arg12[%251, %c0_99, %c0_100], %254 {strides = array<i32>} : memref<8x2x32xf32, #tpu.memory_space<vmem>>, vector<1x2x32xf32>,
    %c1_i32_101 = arith.constant 1 : i32
    %255 = arith.index_cast %c1_i32_101 : i32 to index
    %c0_102 = arith.constant 0 : index
    %c0_103 = arith.constant 0 : index
    %256 = vector.load %arg13[%255, %c0_102, %c0_103] : memref<8x2x128xf32, #tpu.memory_space<vmem>>, vector<1x2x128xf32>
    %257 = vector.shape_cast %256 : vector<1x2x128xf32> to vector<2x128xf32>
    %cst_104 = arith.constant dense<0.000000e+00> : vector<2x128xf32>
    %258 = tpu.matmul %250, %226, %cst_104 {dimension_numbers = #tpu.dot_dimension_numbers<[1], [0], [0], [1], [0, 0, 1, 1], [], []>} : vector<2x32xf32>, vector<32x128xf32>, vector<2x128xf32> -> vector<2x128xf32>
    %259 = arith.addf %257, %258 : vector<2x128xf32>
    %260 = arith.negf %259 : vector<2x128xf32>
    %261 = math.exp %260 : vector<2x128xf32>
    %cst_105 = arith.constant 1.000000e+00 : f32
    %262 = vector.broadcast %cst_105 : f32 to vector<2x128xf32>
    %263 = arith.addf %262, %261 : vector<2x128xf32>
    %264 = arith.divf %262, %263 : vector<2x128xf32>
    %265 = math.tanh %259 : vector<2x128xf32>
    %266 = vector.extract_strided_slice %264 {offsets = [0, 0], sizes = [2, 32], strides = [1, 1]} : vector<2x128xf32> to vector<2x32xf32>
    %267 = vector.extract_strided_slice %264 {offsets = [0, 32], sizes = [2, 32], strides = [1, 1]} : vector<2x128xf32> to vector<2x32xf32>
    %268 = vector.extract_strided_slice %265 {offsets = [0, 64], sizes = [2, 32], strides = [1, 1]} : vector<2x128xf32> to vector<2x32xf32>
    %269 = vector.extract_strided_slice %264 {offsets = [0, 96], sizes = [2, 32], strides = [1, 1]} : vector<2x128xf32> to vector<2x32xf32>
    %270 = arith.mulf %267, %248 : vector<2x32xf32>
    %271 = arith.mulf %266, %268 : vector<2x32xf32>
    %272 = arith.addf %270, %271 : vector<2x32xf32>
    %273 = math.tanh %272 : vector<2x32xf32>
    %274 = arith.mulf %269, %273 : vector<2x32xf32>
    %275 = arith.index_cast %c1_i32_101 : i32 to index
    %c0_106 = arith.constant 0 : index
    %c0_107 = arith.constant 0 : index
    %276 = vector.load %arg12[%275, %c0_106, %c0_107] : memref<8x2x32xf32, #tpu.memory_space<vmem>>, vector<1x2x32xf32>
    %277 = vector.shape_cast %276 : vector<1x2x32xf32> to vector<2x32xf32>
    %278 = vector.shape_cast %274 : vector<2x32xf32> to vector<1x2x32xf32>
    tpu.vector_store %arg12[%275, %c0_106, %c0_107], %278 {strides = array<i32>} : memref<8x2x32xf32, #tpu.memory_space<vmem>>, vector<1x2x32xf32>,
    %c2_i32_108 = arith.constant 2 : i32
    %279 = arith.index_cast %c2_i32_108 : i32 to index
    %c0_109 = arith.constant 0 : index
    %c0_110 = arith.constant 0 : index
    %280 = vector.load %arg13[%279, %c0_109, %c0_110] : memref<8x2x128xf32, #tpu.memory_space<vmem>>, vector<1x2x128xf32>
    %281 = vector.shape_cast %280 : vector<1x2x128xf32> to vector<2x128xf32>
    %cst_111 = arith.constant dense<0.000000e+00> : vector<2x128xf32>
    %282 = tpu.matmul %274, %226, %cst_111 {dimension_numbers = #tpu.dot_dimension_numbers<[1], [0], [0], [1], [0, 0, 1, 1], [], []>} : vector<2x32xf32>, vector<32x128xf32>, vector<2x128xf32> -> vector<2x128xf32>
    %283 = arith.addf %281, %282 : vector<2x128xf32>
    %284 = arith.negf %283 : vector<2x128xf32>
    %285 = math.exp %284 : vector<2x128xf32>
    %cst_112 = arith.constant 1.000000e+00 : f32
    %286 = vector.broadcast %cst_112 : f32 to vector<2x128xf32>
    %287 = arith.addf %286, %285 : vector<2x128xf32>
    %288 = arith.divf %286, %287 : vector<2x128xf32>
    %289 = math.tanh %283 : vector<2x128xf32>
    %290 = vector.extract_strided_slice %288 {offsets = [0, 0], sizes = [2, 32], strides = [1, 1]} : vector<2x128xf32> to vector<2x32xf32>
    %291 = vector.extract_strided_slice %288 {offsets = [0, 32], sizes = [2, 32], strides = [1, 1]} : vector<2x128xf32> to vector<2x32xf32>
    %292 = vector.extract_strided_slice %289 {offsets = [0, 64], sizes = [2, 32], strides = [1, 1]} : vector<2x128xf32> to vector<2x32xf32>
    %293 = vector.extract_strided_slice %288 {offsets = [0, 96], sizes = [2, 32], strides = [1, 1]} : vector<2x128xf32> to vector<2x32xf32>
    %294 = arith.mulf %291, %272 : vector<2x32xf32>
    %295 = arith.mulf %290, %292 : vector<2x32xf32>
    %296 = arith.addf %294, %295 : vector<2x32xf32>
    %297 = math.tanh %296 : vector<2x32xf32>
    %298 = arith.mulf %293, %297 : vector<2x32xf32>
    %299 = arith.index_cast %c2_i32_108 : i32 to index
    %c0_113 = arith.constant 0 : index
    %c0_114 = arith.constant 0 : index
    %300 = vector.load %arg12[%299, %c0_113, %c0_114] : memref<8x2x32xf32, #tpu.memory_space<vmem>>, vector<1x2x32xf32>
    %301 = vector.shape_cast %300 : vector<1x2x32xf32> to vector<2x32xf32>
    %302 = vector.shape_cast %298 : vector<2x32xf32> to vector<1x2x32xf32>
    tpu.vector_store %arg12[%299, %c0_113, %c0_114], %302 {strides = array<i32>} : memref<8x2x32xf32, #tpu.memory_space<vmem>>, vector<1x2x32xf32>,
    %c3_i32_115 = arith.constant 3 : i32
    %303 = arith.index_cast %c3_i32_115 : i32 to index
    %c0_116 = arith.constant 0 : index
    %c0_117 = arith.constant 0 : index
    %304 = vector.load %arg13[%303, %c0_116, %c0_117] : memref<8x2x128xf32, #tpu.memory_space<vmem>>, vector<1x2x128xf32>
    %305 = vector.shape_cast %304 : vector<1x2x128xf32> to vector<2x128xf32>
    %cst_118 = arith.constant dense<0.000000e+00> : vector<2x128xf32>
    %306 = tpu.matmul %298, %226, %cst_118 {dimension_numbers = #tpu.dot_dimension_numbers<[1], [0], [0], [1], [0, 0, 1, 1], [], []>} : vector<2x32xf32>, vector<32x128xf32>, vector<2x128xf32> -> vector<2x128xf32>
    %307 = arith.addf %305, %306 : vector<2x128xf32>
    %308 = arith.negf %307 : vector<2x128xf32>
    %309 = math.exp %308 : vector<2x128xf32>
    %cst_119 = arith.constant 1.000000e+00 : f32
    %310 = vector.broadcast %cst_119 : f32 to vector<2x128xf32>
    %311 = arith.addf %310, %309 : vector<2x128xf32>
    %312 = arith.divf %310, %311 : vector<2x128xf32>
    %313 = math.tanh %307 : vector<2x128xf32>
    %314 = vector.extract_strided_slice %312 {offsets = [0, 0], sizes = [2, 32], strides = [1, 1]} : vector<2x128xf32> to vector<2x32xf32>
    %315 = vector.extract_strided_slice %312 {offsets = [0, 32], sizes = [2, 32], strides = [1, 1]} : vector<2x128xf32> to vector<2x32xf32>
    %316 = vector.extract_strided_slice %313 {offsets = [0, 64], sizes = [2, 32], strides = [1, 1]} : vector<2x128xf32> to vector<2x32xf32>
    %317 = vector.extract_strided_slice %312 {offsets = [0, 96], sizes = [2, 32], strides = [1, 1]} : vector<2x128xf32> to vector<2x32xf32>
    %318 = arith.mulf %315, %296 : vector<2x32xf32>
    %319 = arith.mulf %314, %316 : vector<2x32xf32>
    %320 = arith.addf %318, %319 : vector<2x32xf32>
    %321 = math.tanh %320 : vector<2x32xf32>
    %322 = arith.mulf %317, %321 : vector<2x32xf32>
    %323 = arith.index_cast %c3_i32_115 : i32 to index
    %c0_120 = arith.constant 0 : index
    %c0_121 = arith.constant 0 : index
    %324 = vector.load %arg12[%323, %c0_120, %c0_121] : memref<8x2x32xf32, #tpu.memory_space<vmem>>, vector<1x2x32xf32>
    %325 = vector.shape_cast %324 : vector<1x2x32xf32> to vector<2x32xf32>
    %326 = vector.shape_cast %322 : vector<2x32xf32> to vector<1x2x32xf32>
    tpu.vector_store %arg12[%323, %c0_120, %c0_121], %326 {strides = array<i32>} : memref<8x2x32xf32, #tpu.memory_space<vmem>>, vector<1x2x32xf32>,
    %c4_i32_122 = arith.constant 4 : i32
    %327 = arith.index_cast %c4_i32_122 : i32 to index
    %c0_123 = arith.constant 0 : index
    %c0_124 = arith.constant 0 : index
    %328 = vector.load %arg13[%327, %c0_123, %c0_124] : memref<8x2x128xf32, #tpu.memory_space<vmem>>, vector<1x2x128xf32>
    %329 = vector.shape_cast %328 : vector<1x2x128xf32> to vector<2x128xf32>
    %cst_125 = arith.constant dense<0.000000e+00> : vector<2x128xf32>
    %330 = tpu.matmul %322, %226, %cst_125 {dimension_numbers = #tpu.dot_dimension_numbers<[1], [0], [0], [1], [0, 0, 1, 1], [], []>} : vector<2x32xf32>, vector<32x128xf32>, vector<2x128xf32> -> vector<2x128xf32>
    %331 = arith.addf %329, %330 : vector<2x128xf32>
    %332 = arith.negf %331 : vector<2x128xf32>
    %333 = math.exp %332 : vector<2x128xf32>
    %cst_126 = arith.constant 1.000000e+00 : f32
    %334 = vector.broadcast %cst_126 : f32 to vector<2x128xf32>
    %335 = arith.addf %334, %333 : vector<2x128xf32>
    %336 = arith.divf %334, %335 : vector<2x128xf32>
    %337 = math.tanh %331 : vector<2x128xf32>
    %338 = vector.extract_strided_slice %336 {offsets = [0, 0], sizes = [2, 32], strides = [1, 1]} : vector<2x128xf32> to vector<2x32xf32>
    %339 = vector.extract_strided_slice %336 {offsets = [0, 32], sizes = [2, 32], strides = [1, 1]} : vector<2x128xf32> to vector<2x32xf32>
    %340 = vector.extract_strided_slice %337 {offsets = [0, 64], sizes = [2, 32], strides = [1, 1]} : vector<2x128xf32> to vector<2x32xf32>
    %341 = vector.extract_strided_slice %336 {offsets = [0, 96], sizes = [2, 32], strides = [1, 1]} : vector<2x128xf32> to vector<2x32xf32>
    %342 = arith.mulf %339, %320 : vector<2x32xf32>
    %343 = arith.mulf %338, %340 : vector<2x32xf32>
    %344 = arith.addf %342, %343 : vector<2x32xf32>
    %345 = math.tanh %344 : vector<2x32xf32>
    %346 = arith.mulf %341, %345 : vector<2x32xf32>
    %347 = arith.index_cast %c4_i32_122 : i32 to index
    %c0_127 = arith.constant 0 : index
    %c0_128 = arith.constant 0 : index
    %348 = vector.load %arg12[%347, %c0_127, %c0_128] : memref<8x2x32xf32, #tpu.memory_space<vmem>>, vector<1x2x32xf32>
    %349 = vector.shape_cast %348 : vector<1x2x32xf32> to vector<2x32xf32>
    %350 = vector.shape_cast %346 : vector<2x32xf32> to vector<1x2x32xf32>
    tpu.vector_store %arg12[%347, %c0_127, %c0_128], %350 {strides = array<i32>} : memref<8x2x32xf32, #tpu.memory_space<vmem>>, vector<1x2x32xf32>,
    %c5_i32_129 = arith.constant 5 : i32
    %351 = arith.index_cast %c5_i32_129 : i32 to index
    %c0_130 = arith.constant 0 : index
    %c0_131 = arith.constant 0 : index
    %352 = vector.load %arg13[%351, %c0_130, %c0_131] : memref<8x2x128xf32, #tpu.memory_space<vmem>>, vector<1x2x128xf32>
    %353 = vector.shape_cast %352 : vector<1x2x128xf32> to vector<2x128xf32>
    %cst_132 = arith.constant dense<0.000000e+00> : vector<2x128xf32>
    %354 = tpu.matmul %346, %226, %cst_132 {dimension_numbers = #tpu.dot_dimension_numbers<[1], [0], [0], [1], [0, 0, 1, 1], [], []>} : vector<2x32xf32>, vector<32x128xf32>, vector<2x128xf32> -> vector<2x128xf32>
    %355 = arith.addf %353, %354 : vector<2x128xf32>
    %356 = arith.negf %355 : vector<2x128xf32>
    %357 = math.exp %356 : vector<2x128xf32>
    %cst_133 = arith.constant 1.000000e+00 : f32
    %358 = vector.broadcast %cst_133 : f32 to vector<2x128xf32>
    %359 = arith.addf %358, %357 : vector<2x128xf32>
    %360 = arith.divf %358, %359 : vector<2x128xf32>
    %361 = math.tanh %355 : vector<2x128xf32>
    %362 = vector.extract_strided_slice %360 {offsets = [0, 0], sizes = [2, 32], strides = [1, 1]} : vector<2x128xf32> to vector<2x32xf32>
    %363 = vector.extract_strided_slice %360 {offsets = [0, 32], sizes = [2, 32], strides = [1, 1]} : vector<2x128xf32> to vector<2x32xf32>
    %364 = vector.extract_strided_slice %361 {offsets = [0, 64], sizes = [2, 32], strides = [1, 1]} : vector<2x128xf32> to vector<2x32xf32>
    %365 = vector.extract_strided_slice %360 {offsets = [0, 96], sizes = [2, 32], strides = [1, 1]} : vector<2x128xf32> to vector<2x32xf32>
    %366 = arith.mulf %363, %344 : vector<2x32xf32>
    %367 = arith.mulf %362, %364 : vector<2x32xf32>
    %368 = arith.addf %366, %367 : vector<2x32xf32>
    %369 = math.tanh %368 : vector<2x32xf32>
    %370 = arith.mulf %365, %369 : vector<2x32xf32>
    %371 = arith.index_cast %c5_i32_129 : i32 to index
    %c0_134 = arith.constant 0 : index
    %c0_135 = arith.constant 0 : index
    %372 = vector.load %arg12[%371, %c0_134, %c0_135] : memref<8x2x32xf32, #tpu.memory_space<vmem>>, vector<1x2x32xf32>
    %373 = vector.shape_cast %372 : vector<1x2x32xf32> to vector<2x32xf32>
    %374 = vector.shape_cast %370 : vector<2x32xf32> to vector<1x2x32xf32>
    tpu.vector_store %arg12[%371, %c0_134, %c0_135], %374 {strides = array<i32>} : memref<8x2x32xf32, #tpu.memory_space<vmem>>, vector<1x2x32xf32>,
    %c6_i32_136 = arith.constant 6 : i32
    %375 = arith.index_cast %c6_i32_136 : i32 to index
    %c0_137 = arith.constant 0 : index
    %c0_138 = arith.constant 0 : index
    %376 = vector.load %arg13[%375, %c0_137, %c0_138] : memref<8x2x128xf32, #tpu.memory_space<vmem>>, vector<1x2x128xf32>
    %377 = vector.shape_cast %376 : vector<1x2x128xf32> to vector<2x128xf32>
    %cst_139 = arith.constant dense<0.000000e+00> : vector<2x128xf32>
    %378 = tpu.matmul %370, %226, %cst_139 {dimension_numbers = #tpu.dot_dimension_numbers<[1], [0], [0], [1], [0, 0, 1, 1], [], []>} : vector<2x32xf32>, vector<32x128xf32>, vector<2x128xf32> -> vector<2x128xf32>
    %379 = arith.addf %377, %378 : vector<2x128xf32>
    %380 = arith.negf %379 : vector<2x128xf32>
    %381 = math.exp %380 : vector<2x128xf32>
    %cst_140 = arith.constant 1.000000e+00 : f32
    %382 = vector.broadcast %cst_140 : f32 to vector<2x128xf32>
    %383 = arith.addf %382, %381 : vector<2x128xf32>
    %384 = arith.divf %382, %383 : vector<2x128xf32>
    %385 = math.tanh %379 : vector<2x128xf32>
    %386 = vector.extract_strided_slice %384 {offsets = [0, 0], sizes = [2, 32], strides = [1, 1]} : vector<2x128xf32> to vector<2x32xf32>
    %387 = vector.extract_strided_slice %384 {offsets = [0, 32], sizes = [2, 32], strides = [1, 1]} : vector<2x128xf32> to vector<2x32xf32>
    %388 = vector.extract_strided_slice %385 {offsets = [0, 64], sizes = [2, 32], strides = [1, 1]} : vector<2x128xf32> to vector<2x32xf32>
    %389 = vector.extract_strided_slice %384 {offsets = [0, 96], sizes = [2, 32], strides = [1, 1]} : vector<2x128xf32> to vector<2x32xf32>
    %390 = arith.mulf %387, %368 : vector<2x32xf32>
    %391 = arith.mulf %386, %388 : vector<2x32xf32>
    %392 = arith.addf %390, %391 : vector<2x32xf32>
    %393 = math.tanh %392 : vector<2x32xf32>
    %394 = arith.mulf %389, %393 : vector<2x32xf32>
    %395 = arith.index_cast %c6_i32_136 : i32 to index
    %c0_141 = arith.constant 0 : index
    %c0_142 = arith.constant 0 : index
    %396 = vector.load %arg12[%395, %c0_141, %c0_142] : memref<8x2x32xf32, #tpu.memory_space<vmem>>, vector<1x2x32xf32>
    %397 = vector.shape_cast %396 : vector<1x2x32xf32> to vector<2x32xf32>
    %398 = vector.shape_cast %394 : vector<2x32xf32> to vector<1x2x32xf32>
    tpu.vector_store %arg12[%395, %c0_141, %c0_142], %398 {strides = array<i32>} : memref<8x2x32xf32, #tpu.memory_space<vmem>>, vector<1x2x32xf32>,
    %c7_i32_143 = arith.constant 7 : i32
    %399 = arith.index_cast %c7_i32_143 : i32 to index
    %c0_144 = arith.constant 0 : index
    %c0_145 = arith.constant 0 : index
    %400 = vector.load %arg13[%399, %c0_144, %c0_145] : memref<8x2x128xf32, #tpu.memory_space<vmem>>, vector<1x2x128xf32>
    %401 = vector.shape_cast %400 : vector<1x2x128xf32> to vector<2x128xf32>
    %cst_146 = arith.constant dense<0.000000e+00> : vector<2x128xf32>
    %402 = tpu.matmul %394, %226, %cst_146 {dimension_numbers = #tpu.dot_dimension_numbers<[1], [0], [0], [1], [0, 0, 1, 1], [], []>} : vector<2x32xf32>, vector<32x128xf32>, vector<2x128xf32> -> vector<2x128xf32>
    %403 = arith.addf %401, %402 : vector<2x128xf32>
    %404 = arith.negf %403 : vector<2x128xf32>
    %405 = math.exp %404 : vector<2x128xf32>
    %cst_147 = arith.constant 1.000000e+00 : f32
    %406 = vector.broadcast %cst_147 : f32 to vector<2x128xf32>
    %407 = arith.addf %406, %405 : vector<2x128xf32>
    %408 = arith.divf %406, %407 : vector<2x128xf32>
    %409 = math.tanh %403 : vector<2x128xf32>
    %410 = vector.extract_strided_slice %408 {offsets = [0, 0], sizes = [2, 32], strides = [1, 1]} : vector<2x128xf32> to vector<2x32xf32>
    %411 = vector.extract_strided_slice %408 {offsets = [0, 32], sizes = [2, 32], strides = [1, 1]} : vector<2x128xf32> to vector<2x32xf32>
    %412 = vector.extract_strided_slice %409 {offsets = [0, 64], sizes = [2, 32], strides = [1, 1]} : vector<2x128xf32> to vector<2x32xf32>
    %413 = vector.extract_strided_slice %408 {offsets = [0, 96], sizes = [2, 32], strides = [1, 1]} : vector<2x128xf32> to vector<2x32xf32>
    %414 = arith.mulf %411, %392 : vector<2x32xf32>
    %415 = arith.mulf %410, %412 : vector<2x32xf32>
    %416 = arith.addf %414, %415 : vector<2x32xf32>
    %417 = math.tanh %416 : vector<2x32xf32>
    %418 = arith.mulf %413, %417 : vector<2x32xf32>
    %419 = arith.index_cast %c7_i32_143 : i32 to index
    %c0_148 = arith.constant 0 : index
    %c0_149 = arith.constant 0 : index
    %420 = vector.load %arg12[%419, %c0_148, %c0_149] : memref<8x2x32xf32, #tpu.memory_space<vmem>>, vector<1x2x32xf32>
    %421 = vector.shape_cast %420 : vector<1x2x32xf32> to vector<2x32xf32>
    %422 = vector.shape_cast %418 : vector<2x32xf32> to vector<1x2x32xf32>
    tpu.vector_store %arg12[%419, %c0_148, %c0_149], %422 {strides = array<i32>} : memref<8x2x32xf32, #tpu.memory_space<vmem>>, vector<1x2x32xf32>,
    %c8_i32_150 = arith.constant 8 : i32
    %c1_151 = arith.constant 1 : index
    %c0_152 = arith.constant 0 : index
    %c0_153 = arith.constant 0 : index
    %423 = vector.load %arg10[%c1_151, %c0_152, %c0_153] : memref<4x2x32xf32, #tpu.memory_space<vmem>>, vector<1x2x32xf32>
    %424 = vector.shape_cast %423 : vector<1x2x32xf32> to vector<2x32xf32>
    %425 = vector.shape_cast %418 : vector<2x32xf32> to vector<1x2x32xf32>
    tpu.vector_store %arg10[%c1_151, %c0_152, %c0_153], %425 {strides = array<i32>} : memref<4x2x32xf32, #tpu.memory_space<vmem>>, vector<1x2x32xf32>,
    %c1_154 = arith.constant 1 : index
    %c0_155 = arith.constant 0 : index
    %c0_156 = arith.constant 0 : index
    %426 = vector.load %arg11[%c1_154, %c0_155, %c0_156] : memref<4x2x32xf32, #tpu.memory_space<vmem>>, vector<1x2x32xf32>
    %427 = vector.shape_cast %426 : vector<1x2x32xf32> to vector<2x32xf32>
    %428 = vector.shape_cast %416 : vector<2x32xf32> to vector<1x2x32xf32>
    tpu.vector_store %arg11[%c1_154, %c0_155, %c0_156], %428 {strides = array<i32>} : memref<4x2x32xf32, #tpu.memory_space<vmem>>, vector<1x2x32xf32>,
    %c0_157 = arith.constant 0 : index
    %c0_158 = arith.constant 0 : index
    %c0_159 = arith.constant 0 : index
    %429 = vector.load %arg12[%c0_157, %c0_158, %c0_159] : memref<8x2x32xf32, #tpu.memory_space<vmem>>, vector<8x2x32xf32>
    %430 = vector.shape_cast %429 : vector<8x2x32xf32> to vector<16x32xf32>
    %c1_160 = arith.constant 1 : index
    %c0_161 = arith.constant 0 : index
    %c0_162 = arith.constant 0 : index
    %431 = vector.load %arg4[%c1_160, %c0_161, %c0_162] : memref<3x32x128xf32, #tpu.memory_space<vmem>>, vector<1x32x128xf32>
    %432 = vector.shape_cast %431 : vector<1x32x128xf32> to vector<32x128xf32>
    %cst_163 = arith.constant dense<0.000000e+00> : vector<16x128xf32>
    %433 = tpu.matmul %430, %432, %cst_163 {dimension_numbers = #tpu.dot_dimension_numbers<[1], [0], [0], [1], [0, 0, 1, 1], [], []>} : vector<16x32xf32>, vector<32x128xf32>, vector<16x128xf32> -> vector<16x128xf32>
    %c2 = arith.constant 2 : index
    %c0_164 = arith.constant 0 : index
    %c0_165 = arith.constant 0 : index
    %434 = vector.load %arg6[%c2, %c0_164, %c0_165] : memref<4x1x128xf32, #tpu.memory_space<vmem>>, vector<1x1x128xf32>
    %435 = vector.shape_cast %434 : vector<1x1x128xf32> to vector<1x128xf32>
    %436 = vector.broadcast %435 : vector<1x128xf32> to vector<16x128xf32>
    %437 = arith.addf %433, %436 : vector<16x128xf32>
    %438 = vector.shape_cast %437 : vector<16x128xf32> to vector<8x2x128xf32>
    %c0_166 = arith.constant 0 : index
    %c0_167 = arith.constant 0 : index
    %c0_168 = arith.constant 0 : index
    %439 = vector.load %arg13[%c0_166, %c0_167, %c0_168] : memref<8x2x128xf32, #tpu.memory_space<vmem>>, vector<8x2x128xf32>
    tpu.vector_store %arg13[%c0_166, %c0_167, %c0_168], %438 {strides = array<i32>} : memref<8x2x128xf32, #tpu.memory_space<vmem>>, vector<8x2x128xf32>,
    %c2_169 = arith.constant 2 : index
    %c0_170 = arith.constant 0 : index
    %c0_171 = arith.constant 0 : index
    %440 = vector.load %arg5[%c2_169, %c0_170, %c0_171] : memref<4x32x128xf32, #tpu.memory_space<vmem>>, vector<1x32x128xf32>
    %441 = vector.shape_cast %440 : vector<1x32x128xf32> to vector<32x128xf32>
    %c2_172 = arith.constant 2 : index
    %c0_173 = arith.constant 0 : index
    %c0_174 = arith.constant 0 : index
    %442 = vector.load %arg1[%c2_172, %c0_173, %c0_174] : memref<4x2x32xf32, #tpu.memory_space<vmem>>, vector<1x2x32xf32>
    %443 = vector.shape_cast %442 : vector<1x2x32xf32> to vector<2x32xf32>
    %c2_175 = arith.constant 2 : index
    %c0_176 = arith.constant 0 : index
    %c0_177 = arith.constant 0 : index
    %444 = vector.load %arg2[%c2_175, %c0_176, %c0_177] : memref<4x2x32xf32, #tpu.memory_space<vmem>>, vector<1x2x32xf32>
    %445 = vector.shape_cast %444 : vector<1x2x32xf32> to vector<2x32xf32>
    %c0_i32_178 = arith.constant 0 : i32
    %446 = arith.index_cast %c0_i32_178 : i32 to index
    %c0_179 = arith.constant 0 : index
    %c0_180 = arith.constant 0 : index
    %447 = vector.load %arg13[%446, %c0_179, %c0_180] : memref<8x2x128xf32, #tpu.memory_space<vmem>>, vector<1x2x128xf32>
    %448 = vector.shape_cast %447 : vector<1x2x128xf32> to vector<2x128xf32>
    %cst_181 = arith.constant dense<0.000000e+00> : vector<2x128xf32>
    %449 = tpu.matmul %443, %441, %cst_181 {dimension_numbers = #tpu.dot_dimension_numbers<[1], [0], [0], [1], [0, 0, 1, 1], [], []>} : vector<2x32xf32>, vector<32x128xf32>, vector<2x128xf32> -> vector<2x128xf32>
    %450 = arith.addf %448, %449 : vector<2x128xf32>
    %451 = arith.negf %450 : vector<2x128xf32>
    %452 = math.exp %451 : vector<2x128xf32>
    %cst_182 = arith.constant 1.000000e+00 : f32
    %453 = vector.broadcast %cst_182 : f32 to vector<2x128xf32>
    %454 = arith.addf %453, %452 : vector<2x128xf32>
    %455 = arith.divf %453, %454 : vector<2x128xf32>
    %456 = math.tanh %450 : vector<2x128xf32>
    %457 = vector.extract_strided_slice %455 {offsets = [0, 0], sizes = [2, 32], strides = [1, 1]} : vector<2x128xf32> to vector<2x32xf32>
    %458 = vector.extract_strided_slice %455 {offsets = [0, 32], sizes = [2, 32], strides = [1, 1]} : vector<2x128xf32> to vector<2x32xf32>
    %459 = vector.extract_strided_slice %456 {offsets = [0, 64], sizes = [2, 32], strides = [1, 1]} : vector<2x128xf32> to vector<2x32xf32>
    %460 = vector.extract_strided_slice %455 {offsets = [0, 96], sizes = [2, 32], strides = [1, 1]} : vector<2x128xf32> to vector<2x32xf32>
    %461 = arith.mulf %458, %445 : vector<2x32xf32>
    %462 = arith.mulf %457, %459 : vector<2x32xf32>
    %463 = arith.addf %461, %462 : vector<2x32xf32>
    %464 = math.tanh %463 : vector<2x32xf32>
    %465 = arith.mulf %460, %464 : vector<2x32xf32>
    %466 = arith.index_cast %c0_i32_178 : i32 to index
    %c0_183 = arith.constant 0 : index
    %c0_184 = arith.constant 0 : index
    %467 = vector.load %arg12[%466, %c0_183, %c0_184] : memref<8x2x32xf32, #tpu.memory_space<vmem>>, vector<1x2x32xf32>
    %468 = vector.shape_cast %467 : vector<1x2x32xf32> to vector<2x32xf32>
    %469 = vector.shape_cast %465 : vector<2x32xf32> to vector<1x2x32xf32>
    tpu.vector_store %arg12[%466, %c0_183, %c0_184], %469 {strides = array<i32>} : memref<8x2x32xf32, #tpu.memory_space<vmem>>, vector<1x2x32xf32>,
    %c1_i32_185 = arith.constant 1 : i32
    %470 = arith.index_cast %c1_i32_185 : i32 to index
    %c0_186 = arith.constant 0 : index
    %c0_187 = arith.constant 0 : index
    %471 = vector.load %arg13[%470, %c0_186, %c0_187] : memref<8x2x128xf32, #tpu.memory_space<vmem>>, vector<1x2x128xf32>
    %472 = vector.shape_cast %471 : vector<1x2x128xf32> to vector<2x128xf32>
    %cst_188 = arith.constant dense<0.000000e+00> : vector<2x128xf32>
    %473 = tpu.matmul %465, %441, %cst_188 {dimension_numbers = #tpu.dot_dimension_numbers<[1], [0], [0], [1], [0, 0, 1, 1], [], []>} : vector<2x32xf32>, vector<32x128xf32>, vector<2x128xf32> -> vector<2x128xf32>
    %474 = arith.addf %472, %473 : vector<2x128xf32>
    %475 = arith.negf %474 : vector<2x128xf32>
    %476 = math.exp %475 : vector<2x128xf32>
    %cst_189 = arith.constant 1.000000e+00 : f32
    %477 = vector.broadcast %cst_189 : f32 to vector<2x128xf32>
    %478 = arith.addf %477, %476 : vector<2x128xf32>
    %479 = arith.divf %477, %478 : vector<2x128xf32>
    %480 = math.tanh %474 : vector<2x128xf32>
    %481 = vector.extract_strided_slice %479 {offsets = [0, 0], sizes = [2, 32], strides = [1, 1]} : vector<2x128xf32> to vector<2x32xf32>
    %482 = vector.extract_strided_slice %479 {offsets = [0, 32], sizes = [2, 32], strides = [1, 1]} : vector<2x128xf32> to vector<2x32xf32>
    %483 = vector.extract_strided_slice %480 {offsets = [0, 64], sizes = [2, 32], strides = [1, 1]} : vector<2x128xf32> to vector<2x32xf32>
    %484 = vector.extract_strided_slice %479 {offsets = [0, 96], sizes = [2, 32], strides = [1, 1]} : vector<2x128xf32> to vector<2x32xf32>
    %485 = arith.mulf %482, %463 : vector<2x32xf32>
    %486 = arith.mulf %481, %483 : vector<2x32xf32>
    %487 = arith.addf %485, %486 : vector<2x32xf32>
    %488 = math.tanh %487 : vector<2x32xf32>
    %489 = arith.mulf %484, %488 : vector<2x32xf32>
    %490 = arith.index_cast %c1_i32_185 : i32 to index
    %c0_190 = arith.constant 0 : index
    %c0_191 = arith.constant 0 : index
    %491 = vector.load %arg12[%490, %c0_190, %c0_191] : memref<8x2x32xf32, #tpu.memory_space<vmem>>, vector<1x2x32xf32>
    %492 = vector.shape_cast %491 : vector<1x2x32xf32> to vector<2x32xf32>
    %493 = vector.shape_cast %489 : vector<2x32xf32> to vector<1x2x32xf32>
    tpu.vector_store %arg12[%490, %c0_190, %c0_191], %493 {strides = array<i32>} : memref<8x2x32xf32, #tpu.memory_space<vmem>>, vector<1x2x32xf32>,
    %c2_i32_192 = arith.constant 2 : i32
    %494 = arith.index_cast %c2_i32_192 : i32 to index
    %c0_193 = arith.constant 0 : index
    %c0_194 = arith.constant 0 : index
    %495 = vector.load %arg13[%494, %c0_193, %c0_194] : memref<8x2x128xf32, #tpu.memory_space<vmem>>, vector<1x2x128xf32>
    %496 = vector.shape_cast %495 : vector<1x2x128xf32> to vector<2x128xf32>
    %cst_195 = arith.constant dense<0.000000e+00> : vector<2x128xf32>
    %497 = tpu.matmul %489, %441, %cst_195 {dimension_numbers = #tpu.dot_dimension_numbers<[1], [0], [0], [1], [0, 0, 1, 1], [], []>} : vector<2x32xf32>, vector<32x128xf32>, vector<2x128xf32> -> vector<2x128xf32>
    %498 = arith.addf %496, %497 : vector<2x128xf32>
    %499 = arith.negf %498 : vector<2x128xf32>
    %500 = math.exp %499 : vector<2x128xf32>
    %cst_196 = arith.constant 1.000000e+00 : f32
    %501 = vector.broadcast %cst_196 : f32 to vector<2x128xf32>
    %502 = arith.addf %501, %500 : vector<2x128xf32>
    %503 = arith.divf %501, %502 : vector<2x128xf32>
    %504 = math.tanh %498 : vector<2x128xf32>
    %505 = vector.extract_strided_slice %503 {offsets = [0, 0], sizes = [2, 32], strides = [1, 1]} : vector<2x128xf32> to vector<2x32xf32>
    %506 = vector.extract_strided_slice %503 {offsets = [0, 32], sizes = [2, 32], strides = [1, 1]} : vector<2x128xf32> to vector<2x32xf32>
    %507 = vector.extract_strided_slice %504 {offsets = [0, 64], sizes = [2, 32], strides = [1, 1]} : vector<2x128xf32> to vector<2x32xf32>
    %508 = vector.extract_strided_slice %503 {offsets = [0, 96], sizes = [2, 32], strides = [1, 1]} : vector<2x128xf32> to vector<2x32xf32>
    %509 = arith.mulf %506, %487 : vector<2x32xf32>
    %510 = arith.mulf %505, %507 : vector<2x32xf32>
    %511 = arith.addf %509, %510 : vector<2x32xf32>
    %512 = math.tanh %511 : vector<2x32xf32>
    %513 = arith.mulf %508, %512 : vector<2x32xf32>
    %514 = arith.index_cast %c2_i32_192 : i32 to index
    %c0_197 = arith.constant 0 : index
    %c0_198 = arith.constant 0 : index
    %515 = vector.load %arg12[%514, %c0_197, %c0_198] : memref<8x2x32xf32, #tpu.memory_space<vmem>>, vector<1x2x32xf32>
    %516 = vector.shape_cast %515 : vector<1x2x32xf32> to vector<2x32xf32>
    %517 = vector.shape_cast %513 : vector<2x32xf32> to vector<1x2x32xf32>
    tpu.vector_store %arg12[%514, %c0_197, %c0_198], %517 {strides = array<i32>} : memref<8x2x32xf32, #tpu.memory_space<vmem>>, vector<1x2x32xf32>,
    %c3_i32_199 = arith.constant 3 : i32
    %518 = arith.index_cast %c3_i32_199 : i32 to index
    %c0_200 = arith.constant 0 : index
    %c0_201 = arith.constant 0 : index
    %519 = vector.load %arg13[%518, %c0_200, %c0_201] : memref<8x2x128xf32, #tpu.memory_space<vmem>>, vector<1x2x128xf32>
    %520 = vector.shape_cast %519 : vector<1x2x128xf32> to vector<2x128xf32>
    %cst_202 = arith.constant dense<0.000000e+00> : vector<2x128xf32>
    %521 = tpu.matmul %513, %441, %cst_202 {dimension_numbers = #tpu.dot_dimension_numbers<[1], [0], [0], [1], [0, 0, 1, 1], [], []>} : vector<2x32xf32>, vector<32x128xf32>, vector<2x128xf32> -> vector<2x128xf32>
    %522 = arith.addf %520, %521 : vector<2x128xf32>
    %523 = arith.negf %522 : vector<2x128xf32>
    %524 = math.exp %523 : vector<2x128xf32>
    %cst_203 = arith.constant 1.000000e+00 : f32
    %525 = vector.broadcast %cst_203 : f32 to vector<2x128xf32>
    %526 = arith.addf %525, %524 : vector<2x128xf32>
    %527 = arith.divf %525, %526 : vector<2x128xf32>
    %528 = math.tanh %522 : vector<2x128xf32>
    %529 = vector.extract_strided_slice %527 {offsets = [0, 0], sizes = [2, 32], strides = [1, 1]} : vector<2x128xf32> to vector<2x32xf32>
    %530 = vector.extract_strided_slice %527 {offsets = [0, 32], sizes = [2, 32], strides = [1, 1]} : vector<2x128xf32> to vector<2x32xf32>
    %531 = vector.extract_strided_slice %528 {offsets = [0, 64], sizes = [2, 32], strides = [1, 1]} : vector<2x128xf32> to vector<2x32xf32>
    %532 = vector.extract_strided_slice %527 {offsets = [0, 96], sizes = [2, 32], strides = [1, 1]} : vector<2x128xf32> to vector<2x32xf32>
    %533 = arith.mulf %530, %511 : vector<2x32xf32>
    %534 = arith.mulf %529, %531 : vector<2x32xf32>
    %535 = arith.addf %533, %534 : vector<2x32xf32>
    %536 = math.tanh %535 : vector<2x32xf32>
    %537 = arith.mulf %532, %536 : vector<2x32xf32>
    %538 = arith.index_cast %c3_i32_199 : i32 to index
    %c0_204 = arith.constant 0 : index
    %c0_205 = arith.constant 0 : index
    %539 = vector.load %arg12[%538, %c0_204, %c0_205] : memref<8x2x32xf32, #tpu.memory_space<vmem>>, vector<1x2x32xf32>
    %540 = vector.shape_cast %539 : vector<1x2x32xf32> to vector<2x32xf32>
    %541 = vector.shape_cast %537 : vector<2x32xf32> to vector<1x2x32xf32>
    tpu.vector_store %arg12[%538, %c0_204, %c0_205], %541 {strides = array<i32>} : memref<8x2x32xf32, #tpu.memory_space<vmem>>, vector<1x2x32xf32>,
    %c4_i32_206 = arith.constant 4 : i32
    %542 = arith.index_cast %c4_i32_206 : i32 to index
    %c0_207 = arith.constant 0 : index
    %c0_208 = arith.constant 0 : index
    %543 = vector.load %arg13[%542, %c0_207, %c0_208] : memref<8x2x128xf32, #tpu.memory_space<vmem>>, vector<1x2x128xf32>
    %544 = vector.shape_cast %543 : vector<1x2x128xf32> to vector<2x128xf32>
    %cst_209 = arith.constant dense<0.000000e+00> : vector<2x128xf32>
    %545 = tpu.matmul %537, %441, %cst_209 {dimension_numbers = #tpu.dot_dimension_numbers<[1], [0], [0], [1], [0, 0, 1, 1], [], []>} : vector<2x32xf32>, vector<32x128xf32>, vector<2x128xf32> -> vector<2x128xf32>
    %546 = arith.addf %544, %545 : vector<2x128xf32>
    %547 = arith.negf %546 : vector<2x128xf32>
    %548 = math.exp %547 : vector<2x128xf32>
    %cst_210 = arith.constant 1.000000e+00 : f32
    %549 = vector.broadcast %cst_210 : f32 to vector<2x128xf32>
    %550 = arith.addf %549, %548 : vector<2x128xf32>
    %551 = arith.divf %549, %550 : vector<2x128xf32>
    %552 = math.tanh %546 : vector<2x128xf32>
    %553 = vector.extract_strided_slice %551 {offsets = [0, 0], sizes = [2, 32], strides = [1, 1]} : vector<2x128xf32> to vector<2x32xf32>
    %554 = vector.extract_strided_slice %551 {offsets = [0, 32], sizes = [2, 32], strides = [1, 1]} : vector<2x128xf32> to vector<2x32xf32>
    %555 = vector.extract_strided_slice %552 {offsets = [0, 64], sizes = [2, 32], strides = [1, 1]} : vector<2x128xf32> to vector<2x32xf32>
    %556 = vector.extract_strided_slice %551 {offsets = [0, 96], sizes = [2, 32], strides = [1, 1]} : vector<2x128xf32> to vector<2x32xf32>
    %557 = arith.mulf %554, %535 : vector<2x32xf32>
    %558 = arith.mulf %553, %555 : vector<2x32xf32>
    %559 = arith.addf %557, %558 : vector<2x32xf32>
    %560 = math.tanh %559 : vector<2x32xf32>
    %561 = arith.mulf %556, %560 : vector<2x32xf32>
    %562 = arith.index_cast %c4_i32_206 : i32 to index
    %c0_211 = arith.constant 0 : index
    %c0_212 = arith.constant 0 : index
    %563 = vector.load %arg12[%562, %c0_211, %c0_212] : memref<8x2x32xf32, #tpu.memory_space<vmem>>, vector<1x2x32xf32>
    %564 = vector.shape_cast %563 : vector<1x2x32xf32> to vector<2x32xf32>
    %565 = vector.shape_cast %561 : vector<2x32xf32> to vector<1x2x32xf32>
    tpu.vector_store %arg12[%562, %c0_211, %c0_212], %565 {strides = array<i32>} : memref<8x2x32xf32, #tpu.memory_space<vmem>>, vector<1x2x32xf32>,
    %c5_i32_213 = arith.constant 5 : i32
    %566 = arith.index_cast %c5_i32_213 : i32 to index
    %c0_214 = arith.constant 0 : index
    %c0_215 = arith.constant 0 : index
    %567 = vector.load %arg13[%566, %c0_214, %c0_215] : memref<8x2x128xf32, #tpu.memory_space<vmem>>, vector<1x2x128xf32>
    %568 = vector.shape_cast %567 : vector<1x2x128xf32> to vector<2x128xf32>
    %cst_216 = arith.constant dense<0.000000e+00> : vector<2x128xf32>
    %569 = tpu.matmul %561, %441, %cst_216 {dimension_numbers = #tpu.dot_dimension_numbers<[1], [0], [0], [1], [0, 0, 1, 1], [], []>} : vector<2x32xf32>, vector<32x128xf32>, vector<2x128xf32> -> vector<2x128xf32>
    %570 = arith.addf %568, %569 : vector<2x128xf32>
    %571 = arith.negf %570 : vector<2x128xf32>
    %572 = math.exp %571 : vector<2x128xf32>
    %cst_217 = arith.constant 1.000000e+00 : f32
    %573 = vector.broadcast %cst_217 : f32 to vector<2x128xf32>
    %574 = arith.addf %573, %572 : vector<2x128xf32>
    %575 = arith.divf %573, %574 : vector<2x128xf32>
    %576 = math.tanh %570 : vector<2x128xf32>
    %577 = vector.extract_strided_slice %575 {offsets = [0, 0], sizes = [2, 32], strides = [1, 1]} : vector<2x128xf32> to vector<2x32xf32>
    %578 = vector.extract_strided_slice %575 {offsets = [0, 32], sizes = [2, 32], strides = [1, 1]} : vector<2x128xf32> to vector<2x32xf32>
    %579 = vector.extract_strided_slice %576 {offsets = [0, 64], sizes = [2, 32], strides = [1, 1]} : vector<2x128xf32> to vector<2x32xf32>
    %580 = vector.extract_strided_slice %575 {offsets = [0, 96], sizes = [2, 32], strides = [1, 1]} : vector<2x128xf32> to vector<2x32xf32>
    %581 = arith.mulf %578, %559 : vector<2x32xf32>
    %582 = arith.mulf %577, %579 : vector<2x32xf32>
    %583 = arith.addf %581, %582 : vector<2x32xf32>
    %584 = math.tanh %583 : vector<2x32xf32>
    %585 = arith.mulf %580, %584 : vector<2x32xf32>
    %586 = arith.index_cast %c5_i32_213 : i32 to index
    %c0_218 = arith.constant 0 : index
    %c0_219 = arith.constant 0 : index
    %587 = vector.load %arg12[%586, %c0_218, %c0_219] : memref<8x2x32xf32, #tpu.memory_space<vmem>>, vector<1x2x32xf32>
    %588 = vector.shape_cast %587 : vector<1x2x32xf32> to vector<2x32xf32>
    %589 = vector.shape_cast %585 : vector<2x32xf32> to vector<1x2x32xf32>
    tpu.vector_store %arg12[%586, %c0_218, %c0_219], %589 {strides = array<i32>} : memref<8x2x32xf32, #tpu.memory_space<vmem>>, vector<1x2x32xf32>,
    %c6_i32_220 = arith.constant 6 : i32
    %590 = arith.index_cast %c6_i32_220 : i32 to index
    %c0_221 = arith.constant 0 : index
    %c0_222 = arith.constant 0 : index
    %591 = vector.load %arg13[%590, %c0_221, %c0_222] : memref<8x2x128xf32, #tpu.memory_space<vmem>>, vector<1x2x128xf32>
    %592 = vector.shape_cast %591 : vector<1x2x128xf32> to vector<2x128xf32>
    %cst_223 = arith.constant dense<0.000000e+00> : vector<2x128xf32>
    %593 = tpu.matmul %585, %441, %cst_223 {dimension_numbers = #tpu.dot_dimension_numbers<[1], [0], [0], [1], [0, 0, 1, 1], [], []>} : vector<2x32xf32>, vector<32x128xf32>, vector<2x128xf32> -> vector<2x128xf32>
    %594 = arith.addf %592, %593 : vector<2x128xf32>
    %595 = arith.negf %594 : vector<2x128xf32>
    %596 = math.exp %595 : vector<2x128xf32>
    %cst_224 = arith.constant 1.000000e+00 : f32
    %597 = vector.broadcast %cst_224 : f32 to vector<2x128xf32>
    %598 = arith.addf %597, %596 : vector<2x128xf32>
    %599 = arith.divf %597, %598 : vector<2x128xf32>
    %600 = math.tanh %594 : vector<2x128xf32>
    %601 = vector.extract_strided_slice %599 {offsets = [0, 0], sizes = [2, 32], strides = [1, 1]} : vector<2x128xf32> to vector<2x32xf32>
    %602 = vector.extract_strided_slice %599 {offsets = [0, 32], sizes = [2, 32], strides = [1, 1]} : vector<2x128xf32> to vector<2x32xf32>
    %603 = vector.extract_strided_slice %600 {offsets = [0, 64], sizes = [2, 32], strides = [1, 1]} : vector<2x128xf32> to vector<2x32xf32>
    %604 = vector.extract_strided_slice %599 {offsets = [0, 96], sizes = [2, 32], strides = [1, 1]} : vector<2x128xf32> to vector<2x32xf32>
    %605 = arith.mulf %602, %583 : vector<2x32xf32>
    %606 = arith.mulf %601, %603 : vector<2x32xf32>
    %607 = arith.addf %605, %606 : vector<2x32xf32>
    %608 = math.tanh %607 : vector<2x32xf32>
    %609 = arith.mulf %604, %608 : vector<2x32xf32>
    %610 = arith.index_cast %c6_i32_220 : i32 to index
    %c0_225 = arith.constant 0 : index
    %c0_226 = arith.constant 0 : index
    %611 = vector.load %arg12[%610, %c0_225, %c0_226] : memref<8x2x32xf32, #tpu.memory_space<vmem>>, vector<1x2x32xf32>
    %612 = vector.shape_cast %611 : vector<1x2x32xf32> to vector<2x32xf32>
    %613 = vector.shape_cast %609 : vector<2x32xf32> to vector<1x2x32xf32>
    tpu.vector_store %arg12[%610, %c0_225, %c0_226], %613 {strides = array<i32>} : memref<8x2x32xf32, #tpu.memory_space<vmem>>, vector<1x2x32xf32>,
    %c7_i32_227 = arith.constant 7 : i32
    %614 = arith.index_cast %c7_i32_227 : i32 to index
    %c0_228 = arith.constant 0 : index
    %c0_229 = arith.constant 0 : index
    %615 = vector.load %arg13[%614, %c0_228, %c0_229] : memref<8x2x128xf32, #tpu.memory_space<vmem>>, vector<1x2x128xf32>
    %616 = vector.shape_cast %615 : vector<1x2x128xf32> to vector<2x128xf32>
    %cst_230 = arith.constant dense<0.000000e+00> : vector<2x128xf32>
    %617 = tpu.matmul %609, %441, %cst_230 {dimension_numbers = #tpu.dot_dimension_numbers<[1], [0], [0], [1], [0, 0, 1, 1], [], []>} : vector<2x32xf32>, vector<32x128xf32>, vector<2x128xf32> -> vector<2x128xf32>
    %618 = arith.addf %616, %617 : vector<2x128xf32>
    %619 = arith.negf %618 : vector<2x128xf32>
    %620 = math.exp %619 : vector<2x128xf32>
    %cst_231 = arith.constant 1.000000e+00 : f32
    %621 = vector.broadcast %cst_231 : f32 to vector<2x128xf32>
    %622 = arith.addf %621, %620 : vector<2x128xf32>
    %623 = arith.divf %621, %622 : vector<2x128xf32>
    %624 = math.tanh %618 : vector<2x128xf32>
    %625 = vector.extract_strided_slice %623 {offsets = [0, 0], sizes = [2, 32], strides = [1, 1]} : vector<2x128xf32> to vector<2x32xf32>
    %626 = vector.extract_strided_slice %623 {offsets = [0, 32], sizes = [2, 32], strides = [1, 1]} : vector<2x128xf32> to vector<2x32xf32>
    %627 = vector.extract_strided_slice %624 {offsets = [0, 64], sizes = [2, 32], strides = [1, 1]} : vector<2x128xf32> to vector<2x32xf32>
    %628 = vector.extract_strided_slice %623 {offsets = [0, 96], sizes = [2, 32], strides = [1, 1]} : vector<2x128xf32> to vector<2x32xf32>
    %629 = arith.mulf %626, %607 : vector<2x32xf32>
    %630 = arith.mulf %625, %627 : vector<2x32xf32>
    %631 = arith.addf %629, %630 : vector<2x32xf32>
    %632 = math.tanh %631 : vector<2x32xf32>
    %633 = arith.mulf %628, %632 : vector<2x32xf32>
    %634 = arith.index_cast %c7_i32_227 : i32 to index
    %c0_232 = arith.constant 0 : index
    %c0_233 = arith.constant 0 : index
    %635 = vector.load %arg12[%634, %c0_232, %c0_233] : memref<8x2x32xf32, #tpu.memory_space<vmem>>, vector<1x2x32xf32>
    %636 = vector.shape_cast %635 : vector<1x2x32xf32> to vector<2x32xf32>
    %637 = vector.shape_cast %633 : vector<2x32xf32> to vector<1x2x32xf32>
    tpu.vector_store %arg12[%634, %c0_232, %c0_233], %637 {strides = array<i32>} : memref<8x2x32xf32, #tpu.memory_space<vmem>>, vector<1x2x32xf32>,
    %c8_i32_234 = arith.constant 8 : i32
    %c2_235 = arith.constant 2 : index
    %c0_236 = arith.constant 0 : index
    %c0_237 = arith.constant 0 : index
    %638 = vector.load %arg10[%c2_235, %c0_236, %c0_237] : memref<4x2x32xf32, #tpu.memory_space<vmem>>, vector<1x2x32xf32>
    %639 = vector.shape_cast %638 : vector<1x2x32xf32> to vector<2x32xf32>
    %640 = vector.shape_cast %633 : vector<2x32xf32> to vector<1x2x32xf32>
    tpu.vector_store %arg10[%c2_235, %c0_236, %c0_237], %640 {strides = array<i32>} : memref<4x2x32xf32, #tpu.memory_space<vmem>>, vector<1x2x32xf32>,
    %c2_238 = arith.constant 2 : index
    %c0_239 = arith.constant 0 : index
    %c0_240 = arith.constant 0 : index
    %641 = vector.load %arg11[%c2_238, %c0_239, %c0_240] : memref<4x2x32xf32, #tpu.memory_space<vmem>>, vector<1x2x32xf32>
    %642 = vector.shape_cast %641 : vector<1x2x32xf32> to vector<2x32xf32>
    %643 = vector.shape_cast %631 : vector<2x32xf32> to vector<1x2x32xf32>
    tpu.vector_store %arg11[%c2_238, %c0_239, %c0_240], %643 {strides = array<i32>} : memref<4x2x32xf32, #tpu.memory_space<vmem>>, vector<1x2x32xf32>,
    %c0_241 = arith.constant 0 : index
    %c0_242 = arith.constant 0 : index
    %c0_243 = arith.constant 0 : index
    %644 = vector.load %arg12[%c0_241, %c0_242, %c0_243] : memref<8x2x32xf32, #tpu.memory_space<vmem>>, vector<8x2x32xf32>
    %645 = vector.shape_cast %644 : vector<8x2x32xf32> to vector<16x32xf32>
    %c2_244 = arith.constant 2 : index
    %c0_245 = arith.constant 0 : index
    %c0_246 = arith.constant 0 : index
    %646 = vector.load %arg4[%c2_244, %c0_245, %c0_246] : memref<3x32x128xf32, #tpu.memory_space<vmem>>, vector<1x32x128xf32>
    %647 = vector.shape_cast %646 : vector<1x32x128xf32> to vector<32x128xf32>
    %cst_247 = arith.constant dense<0.000000e+00> : vector<16x128xf32>
    %648 = tpu.matmul %645, %647, %cst_247 {dimension_numbers = #tpu.dot_dimension_numbers<[1], [0], [0], [1], [0, 0, 1, 1], [], []>} : vector<16x32xf32>, vector<32x128xf32>, vector<16x128xf32> -> vector<16x128xf32>
    %c3 = arith.constant 3 : index
    %c0_248 = arith.constant 0 : index
    %c0_249 = arith.constant 0 : index
    %649 = vector.load %arg6[%c3, %c0_248, %c0_249] : memref<4x1x128xf32, #tpu.memory_space<vmem>>, vector<1x1x128xf32>
    %650 = vector.shape_cast %649 : vector<1x1x128xf32> to vector<1x128xf32>
    %651 = vector.broadcast %650 : vector<1x128xf32> to vector<16x128xf32>
    %652 = arith.addf %648, %651 : vector<16x128xf32>
    %653 = vector.shape_cast %652 : vector<16x128xf32> to vector<8x2x128xf32>
    %c0_250 = arith.constant 0 : index
    %c0_251 = arith.constant 0 : index
    %c0_252 = arith.constant 0 : index
    %654 = vector.load %arg13[%c0_250, %c0_251, %c0_252] : memref<8x2x128xf32, #tpu.memory_space<vmem>>, vector<8x2x128xf32>
    tpu.vector_store %arg13[%c0_250, %c0_251, %c0_252], %653 {strides = array<i32>} : memref<8x2x128xf32, #tpu.memory_space<vmem>>, vector<8x2x128xf32>,
    %c3_253 = arith.constant 3 : index
    %c0_254 = arith.constant 0 : index
    %c0_255 = arith.constant 0 : index
    %655 = vector.load %arg5[%c3_253, %c0_254, %c0_255] : memref<4x32x128xf32, #tpu.memory_space<vmem>>, vector<1x32x128xf32>
    %656 = vector.shape_cast %655 : vector<1x32x128xf32> to vector<32x128xf32>
    %c3_256 = arith.constant 3 : index
    %c0_257 = arith.constant 0 : index
    %c0_258 = arith.constant 0 : index
    %657 = vector.load %arg1[%c3_256, %c0_257, %c0_258] : memref<4x2x32xf32, #tpu.memory_space<vmem>>, vector<1x2x32xf32>
    %658 = vector.shape_cast %657 : vector<1x2x32xf32> to vector<2x32xf32>
    %c3_259 = arith.constant 3 : index
    %c0_260 = arith.constant 0 : index
    %c0_261 = arith.constant 0 : index
    %659 = vector.load %arg2[%c3_259, %c0_260, %c0_261] : memref<4x2x32xf32, #tpu.memory_space<vmem>>, vector<1x2x32xf32>
    %660 = vector.shape_cast %659 : vector<1x2x32xf32> to vector<2x32xf32>
    %c0_i32_262 = arith.constant 0 : i32
    %661 = arith.index_cast %c0_i32_262 : i32 to index
    %c0_263 = arith.constant 0 : index
    %c0_264 = arith.constant 0 : index
    %662 = vector.load %arg13[%661, %c0_263, %c0_264] : memref<8x2x128xf32, #tpu.memory_space<vmem>>, vector<1x2x128xf32>
    %663 = vector.shape_cast %662 : vector<1x2x128xf32> to vector<2x128xf32>
    %cst_265 = arith.constant dense<0.000000e+00> : vector<2x128xf32>
    %664 = tpu.matmul %658, %656, %cst_265 {dimension_numbers = #tpu.dot_dimension_numbers<[1], [0], [0], [1], [0, 0, 1, 1], [], []>} : vector<2x32xf32>, vector<32x128xf32>, vector<2x128xf32> -> vector<2x128xf32>
    %665 = arith.addf %663, %664 : vector<2x128xf32>
    %666 = arith.negf %665 : vector<2x128xf32>
    %667 = math.exp %666 : vector<2x128xf32>
    %cst_266 = arith.constant 1.000000e+00 : f32
    %668 = vector.broadcast %cst_266 : f32 to vector<2x128xf32>
    %669 = arith.addf %668, %667 : vector<2x128xf32>
    %670 = arith.divf %668, %669 : vector<2x128xf32>
    %671 = math.tanh %665 : vector<2x128xf32>
    %672 = vector.extract_strided_slice %670 {offsets = [0, 0], sizes = [2, 32], strides = [1, 1]} : vector<2x128xf32> to vector<2x32xf32>
    %673 = vector.extract_strided_slice %670 {offsets = [0, 32], sizes = [2, 32], strides = [1, 1]} : vector<2x128xf32> to vector<2x32xf32>
    %674 = vector.extract_strided_slice %671 {offsets = [0, 64], sizes = [2, 32], strides = [1, 1]} : vector<2x128xf32> to vector<2x32xf32>
    %675 = vector.extract_strided_slice %670 {offsets = [0, 96], sizes = [2, 32], strides = [1, 1]} : vector<2x128xf32> to vector<2x32xf32>
    %676 = arith.mulf %673, %660 : vector<2x32xf32>
    %677 = arith.mulf %672, %674 : vector<2x32xf32>
    %678 = arith.addf %676, %677 : vector<2x32xf32>
    %679 = math.tanh %678 : vector<2x32xf32>
    %680 = arith.mulf %675, %679 : vector<2x32xf32>
    %681 = arith.index_cast %c0_i32_262 : i32 to index
    %c0_267 = arith.constant 0 : index
    %c0_268 = arith.constant 0 : index
    %682 = vector.load %arg12[%681, %c0_267, %c0_268] : memref<8x2x32xf32, #tpu.memory_space<vmem>>, vector<1x2x32xf32>
    %683 = vector.shape_cast %682 : vector<1x2x32xf32> to vector<2x32xf32>
    %684 = vector.shape_cast %680 : vector<2x32xf32> to vector<1x2x32xf32>
    tpu.vector_store %arg12[%681, %c0_267, %c0_268], %684 {strides = array<i32>} : memref<8x2x32xf32, #tpu.memory_space<vmem>>, vector<1x2x32xf32>,
    %c1_i32_269 = arith.constant 1 : i32
    %685 = arith.index_cast %c1_i32_269 : i32 to index
    %c0_270 = arith.constant 0 : index
    %c0_271 = arith.constant 0 : index
    %686 = vector.load %arg13[%685, %c0_270, %c0_271] : memref<8x2x128xf32, #tpu.memory_space<vmem>>, vector<1x2x128xf32>
    %687 = vector.shape_cast %686 : vector<1x2x128xf32> to vector<2x128xf32>
    %cst_272 = arith.constant dense<0.000000e+00> : vector<2x128xf32>
    %688 = tpu.matmul %680, %656, %cst_272 {dimension_numbers = #tpu.dot_dimension_numbers<[1], [0], [0], [1], [0, 0, 1, 1], [], []>} : vector<2x32xf32>, vector<32x128xf32>, vector<2x128xf32> -> vector<2x128xf32>
    %689 = arith.addf %687, %688 : vector<2x128xf32>
    %690 = arith.negf %689 : vector<2x128xf32>
    %691 = math.exp %690 : vector<2x128xf32>
    %cst_273 = arith.constant 1.000000e+00 : f32
    %692 = vector.broadcast %cst_273 : f32 to vector<2x128xf32>
    %693 = arith.addf %692, %691 : vector<2x128xf32>
    %694 = arith.divf %692, %693 : vector<2x128xf32>
    %695 = math.tanh %689 : vector<2x128xf32>
    %696 = vector.extract_strided_slice %694 {offsets = [0, 0], sizes = [2, 32], strides = [1, 1]} : vector<2x128xf32> to vector<2x32xf32>
    %697 = vector.extract_strided_slice %694 {offsets = [0, 32], sizes = [2, 32], strides = [1, 1]} : vector<2x128xf32> to vector<2x32xf32>
    %698 = vector.extract_strided_slice %695 {offsets = [0, 64], sizes = [2, 32], strides = [1, 1]} : vector<2x128xf32> to vector<2x32xf32>
    %699 = vector.extract_strided_slice %694 {offsets = [0, 96], sizes = [2, 32], strides = [1, 1]} : vector<2x128xf32> to vector<2x32xf32>
    %700 = arith.mulf %697, %678 : vector<2x32xf32>
    %701 = arith.mulf %696, %698 : vector<2x32xf32>
    %702 = arith.addf %700, %701 : vector<2x32xf32>
    %703 = math.tanh %702 : vector<2x32xf32>
    %704 = arith.mulf %699, %703 : vector<2x32xf32>
    %705 = arith.index_cast %c1_i32_269 : i32 to index
    %c0_274 = arith.constant 0 : index
    %c0_275 = arith.constant 0 : index
    %706 = vector.load %arg12[%705, %c0_274, %c0_275] : memref<8x2x32xf32, #tpu.memory_space<vmem>>, vector<1x2x32xf32>
    %707 = vector.shape_cast %706 : vector<1x2x32xf32> to vector<2x32xf32>
    %708 = vector.shape_cast %704 : vector<2x32xf32> to vector<1x2x32xf32>
    tpu.vector_store %arg12[%705, %c0_274, %c0_275], %708 {strides = array<i32>} : memref<8x2x32xf32, #tpu.memory_space<vmem>>, vector<1x2x32xf32>,
    %c2_i32_276 = arith.constant 2 : i32
    %709 = arith.index_cast %c2_i32_276 : i32 to index
    %c0_277 = arith.constant 0 : index
    %c0_278 = arith.constant 0 : index
    %710 = vector.load %arg13[%709, %c0_277, %c0_278] : memref<8x2x128xf32, #tpu.memory_space<vmem>>, vector<1x2x128xf32>
    %711 = vector.shape_cast %710 : vector<1x2x128xf32> to vector<2x128xf32>
    %cst_279 = arith.constant dense<0.000000e+00> : vector<2x128xf32>
    %712 = tpu.matmul %704, %656, %cst_279 {dimension_numbers = #tpu.dot_dimension_numbers<[1], [0], [0], [1], [0, 0, 1, 1], [], []>} : vector<2x32xf32>, vector<32x128xf32>, vector<2x128xf32> -> vector<2x128xf32>
    %713 = arith.addf %711, %712 : vector<2x128xf32>
    %714 = arith.negf %713 : vector<2x128xf32>
    %715 = math.exp %714 : vector<2x128xf32>
    %cst_280 = arith.constant 1.000000e+00 : f32
    %716 = vector.broadcast %cst_280 : f32 to vector<2x128xf32>
    %717 = arith.addf %716, %715 : vector<2x128xf32>
    %718 = arith.divf %716, %717 : vector<2x128xf32>
    %719 = math.tanh %713 : vector<2x128xf32>
    %720 = vector.extract_strided_slice %718 {offsets = [0, 0], sizes = [2, 32], strides = [1, 1]} : vector<2x128xf32> to vector<2x32xf32>
    %721 = vector.extract_strided_slice %718 {offsets = [0, 32], sizes = [2, 32], strides = [1, 1]} : vector<2x128xf32> to vector<2x32xf32>
    %722 = vector.extract_strided_slice %719 {offsets = [0, 64], sizes = [2, 32], strides = [1, 1]} : vector<2x128xf32> to vector<2x32xf32>
    %723 = vector.extract_strided_slice %718 {offsets = [0, 96], sizes = [2, 32], strides = [1, 1]} : vector<2x128xf32> to vector<2x32xf32>
    %724 = arith.mulf %721, %702 : vector<2x32xf32>
    %725 = arith.mulf %720, %722 : vector<2x32xf32>
    %726 = arith.addf %724, %725 : vector<2x32xf32>
    %727 = math.tanh %726 : vector<2x32xf32>
    %728 = arith.mulf %723, %727 : vector<2x32xf32>
    %729 = arith.index_cast %c2_i32_276 : i32 to index
    %c0_281 = arith.constant 0 : index
    %c0_282 = arith.constant 0 : index
    %730 = vector.load %arg12[%729, %c0_281, %c0_282] : memref<8x2x32xf32, #tpu.memory_space<vmem>>, vector<1x2x32xf32>
    %731 = vector.shape_cast %730 : vector<1x2x32xf32> to vector<2x32xf32>
    %732 = vector.shape_cast %728 : vector<2x32xf32> to vector<1x2x32xf32>
    tpu.vector_store %arg12[%729, %c0_281, %c0_282], %732 {strides = array<i32>} : memref<8x2x32xf32, #tpu.memory_space<vmem>>, vector<1x2x32xf32>,
    %c3_i32_283 = arith.constant 3 : i32
    %733 = arith.index_cast %c3_i32_283 : i32 to index
    %c0_284 = arith.constant 0 : index
    %c0_285 = arith.constant 0 : index
    %734 = vector.load %arg13[%733, %c0_284, %c0_285] : memref<8x2x128xf32, #tpu.memory_space<vmem>>, vector<1x2x128xf32>
    %735 = vector.shape_cast %734 : vector<1x2x128xf32> to vector<2x128xf32>
    %cst_286 = arith.constant dense<0.000000e+00> : vector<2x128xf32>
    %736 = tpu.matmul %728, %656, %cst_286 {dimension_numbers = #tpu.dot_dimension_numbers<[1], [0], [0], [1], [0, 0, 1, 1], [], []>} : vector<2x32xf32>, vector<32x128xf32>, vector<2x128xf32> -> vector<2x128xf32>
    %737 = arith.addf %735, %736 : vector<2x128xf32>
    %738 = arith.negf %737 : vector<2x128xf32>
    %739 = math.exp %738 : vector<2x128xf32>
    %cst_287 = arith.constant 1.000000e+00 : f32
    %740 = vector.broadcast %cst_287 : f32 to vector<2x128xf32>
    %741 = arith.addf %740, %739 : vector<2x128xf32>
    %742 = arith.divf %740, %741 : vector<2x128xf32>
    %743 = math.tanh %737 : vector<2x128xf32>
    %744 = vector.extract_strided_slice %742 {offsets = [0, 0], sizes = [2, 32], strides = [1, 1]} : vector<2x128xf32> to vector<2x32xf32>
    %745 = vector.extract_strided_slice %742 {offsets = [0, 32], sizes = [2, 32], strides = [1, 1]} : vector<2x128xf32> to vector<2x32xf32>
    %746 = vector.extract_strided_slice %743 {offsets = [0, 64], sizes = [2, 32], strides = [1, 1]} : vector<2x128xf32> to vector<2x32xf32>
    %747 = vector.extract_strided_slice %742 {offsets = [0, 96], sizes = [2, 32], strides = [1, 1]} : vector<2x128xf32> to vector<2x32xf32>
    %748 = arith.mulf %745, %726 : vector<2x32xf32>
    %749 = arith.mulf %744, %746 : vector<2x32xf32>
    %750 = arith.addf %748, %749 : vector<2x32xf32>
    %751 = math.tanh %750 : vector<2x32xf32>
    %752 = arith.mulf %747, %751 : vector<2x32xf32>
    %753 = arith.index_cast %c3_i32_283 : i32 to index
    %c0_288 = arith.constant 0 : index
    %c0_289 = arith.constant 0 : index
    %754 = vector.load %arg12[%753, %c0_288, %c0_289] : memref<8x2x32xf32, #tpu.memory_space<vmem>>, vector<1x2x32xf32>
    %755 = vector.shape_cast %754 : vector<1x2x32xf32> to vector<2x32xf32>
    %756 = vector.shape_cast %752 : vector<2x32xf32> to vector<1x2x32xf32>
    tpu.vector_store %arg12[%753, %c0_288, %c0_289], %756 {strides = array<i32>} : memref<8x2x32xf32, #tpu.memory_space<vmem>>, vector<1x2x32xf32>,
    %c4_i32_290 = arith.constant 4 : i32
    %757 = arith.index_cast %c4_i32_290 : i32 to index
    %c0_291 = arith.constant 0 : index
    %c0_292 = arith.constant 0 : index
    %758 = vector.load %arg13[%757, %c0_291, %c0_292] : memref<8x2x128xf32, #tpu.memory_space<vmem>>, vector<1x2x128xf32>
    %759 = vector.shape_cast %758 : vector<1x2x128xf32> to vector<2x128xf32>
    %cst_293 = arith.constant dense<0.000000e+00> : vector<2x128xf32>
    %760 = tpu.matmul %752, %656, %cst_293 {dimension_numbers = #tpu.dot_dimension_numbers<[1], [0], [0], [1], [0, 0, 1, 1], [], []>} : vector<2x32xf32>, vector<32x128xf32>, vector<2x128xf32> -> vector<2x128xf32>
    %761 = arith.addf %759, %760 : vector<2x128xf32>
    %762 = arith.negf %761 : vector<2x128xf32>
    %763 = math.exp %762 : vector<2x128xf32>
    %cst_294 = arith.constant 1.000000e+00 : f32
    %764 = vector.broadcast %cst_294 : f32 to vector<2x128xf32>
    %765 = arith.addf %764, %763 : vector<2x128xf32>
    %766 = arith.divf %764, %765 : vector<2x128xf32>
    %767 = math.tanh %761 : vector<2x128xf32>
    %768 = vector.extract_strided_slice %766 {offsets = [0, 0], sizes = [2, 32], strides = [1, 1]} : vector<2x128xf32> to vector<2x32xf32>
    %769 = vector.extract_strided_slice %766 {offsets = [0, 32], sizes = [2, 32], strides = [1, 1]} : vector<2x128xf32> to vector<2x32xf32>
    %770 = vector.extract_strided_slice %767 {offsets = [0, 64], sizes = [2, 32], strides = [1, 1]} : vector<2x128xf32> to vector<2x32xf32>
    %771 = vector.extract_strided_slice %766 {offsets = [0, 96], sizes = [2, 32], strides = [1, 1]} : vector<2x128xf32> to vector<2x32xf32>
    %772 = arith.mulf %769, %750 : vector<2x32xf32>
    %773 = arith.mulf %768, %770 : vector<2x32xf32>
    %774 = arith.addf %772, %773 : vector<2x32xf32>
    %775 = math.tanh %774 : vector<2x32xf32>
    %776 = arith.mulf %771, %775 : vector<2x32xf32>
    %777 = arith.index_cast %c4_i32_290 : i32 to index
    %c0_295 = arith.constant 0 : index
    %c0_296 = arith.constant 0 : index
    %778 = vector.load %arg12[%777, %c0_295, %c0_296] : memref<8x2x32xf32, #tpu.memory_space<vmem>>, vector<1x2x32xf32>
    %779 = vector.shape_cast %778 : vector<1x2x32xf32> to vector<2x32xf32>
    %780 = vector.shape_cast %776 : vector<2x32xf32> to vector<1x2x32xf32>
    tpu.vector_store %arg12[%777, %c0_295, %c0_296], %780 {strides = array<i32>} : memref<8x2x32xf32, #tpu.memory_space<vmem>>, vector<1x2x32xf32>,
    %c5_i32_297 = arith.constant 5 : i32
    %781 = arith.index_cast %c5_i32_297 : i32 to index
    %c0_298 = arith.constant 0 : index
    %c0_299 = arith.constant 0 : index
    %782 = vector.load %arg13[%781, %c0_298, %c0_299] : memref<8x2x128xf32, #tpu.memory_space<vmem>>, vector<1x2x128xf32>
    %783 = vector.shape_cast %782 : vector<1x2x128xf32> to vector<2x128xf32>
    %cst_300 = arith.constant dense<0.000000e+00> : vector<2x128xf32>
    %784 = tpu.matmul %776, %656, %cst_300 {dimension_numbers = #tpu.dot_dimension_numbers<[1], [0], [0], [1], [0, 0, 1, 1], [], []>} : vector<2x32xf32>, vector<32x128xf32>, vector<2x128xf32> -> vector<2x128xf32>
    %785 = arith.addf %783, %784 : vector<2x128xf32>
    %786 = arith.negf %785 : vector<2x128xf32>
    %787 = math.exp %786 : vector<2x128xf32>
    %cst_301 = arith.constant 1.000000e+00 : f32
    %788 = vector.broadcast %cst_301 : f32 to vector<2x128xf32>
    %789 = arith.addf %788, %787 : vector<2x128xf32>
    %790 = arith.divf %788, %789 : vector<2x128xf32>
    %791 = math.tanh %785 : vector<2x128xf32>
    %792 = vector.extract_strided_slice %790 {offsets = [0, 0], sizes = [2, 32], strides = [1, 1]} : vector<2x128xf32> to vector<2x32xf32>
    %793 = vector.extract_strided_slice %790 {offsets = [0, 32], sizes = [2, 32], strides = [1, 1]} : vector<2x128xf32> to vector<2x32xf32>
    %794 = vector.extract_strided_slice %791 {offsets = [0, 64], sizes = [2, 32], strides = [1, 1]} : vector<2x128xf32> to vector<2x32xf32>
    %795 = vector.extract_strided_slice %790 {offsets = [0, 96], sizes = [2, 32], strides = [1, 1]} : vector<2x128xf32> to vector<2x32xf32>
    %796 = arith.mulf %793, %774 : vector<2x32xf32>
    %797 = arith.mulf %792, %794 : vector<2x32xf32>
    %798 = arith.addf %796, %797 : vector<2x32xf32>
    %799 = math.tanh %798 : vector<2x32xf32>
    %800 = arith.mulf %795, %799 : vector<2x32xf32>
    %801 = arith.index_cast %c5_i32_297 : i32 to index
    %c0_302 = arith.constant 0 : index
    %c0_303 = arith.constant 0 : index
    %802 = vector.load %arg12[%801, %c0_302, %c0_303] : memref<8x2x32xf32, #tpu.memory_space<vmem>>, vector<1x2x32xf32>
    %803 = vector.shape_cast %802 : vector<1x2x32xf32> to vector<2x32xf32>
    %804 = vector.shape_cast %800 : vector<2x32xf32> to vector<1x2x32xf32>
    tpu.vector_store %arg12[%801, %c0_302, %c0_303], %804 {strides = array<i32>} : memref<8x2x32xf32, #tpu.memory_space<vmem>>, vector<1x2x32xf32>,
    %c6_i32_304 = arith.constant 6 : i32
    %805 = arith.index_cast %c6_i32_304 : i32 to index
    %c0_305 = arith.constant 0 : index
    %c0_306 = arith.constant 0 : index
    %806 = vector.load %arg13[%805, %c0_305, %c0_306] : memref<8x2x128xf32, #tpu.memory_space<vmem>>, vector<1x2x128xf32>
    %807 = vector.shape_cast %806 : vector<1x2x128xf32> to vector<2x128xf32>
    %cst_307 = arith.constant dense<0.000000e+00> : vector<2x128xf32>
    %808 = tpu.matmul %800, %656, %cst_307 {dimension_numbers = #tpu.dot_dimension_numbers<[1], [0], [0], [1], [0, 0, 1, 1], [], []>} : vector<2x32xf32>, vector<32x128xf32>, vector<2x128xf32> -> vector<2x128xf32>
    %809 = arith.addf %807, %808 : vector<2x128xf32>
    %810 = arith.negf %809 : vector<2x128xf32>
    %811 = math.exp %810 : vector<2x128xf32>
    %cst_308 = arith.constant 1.000000e+00 : f32
    %812 = vector.broadcast %cst_308 : f32 to vector<2x128xf32>
    %813 = arith.addf %812, %811 : vector<2x128xf32>
    %814 = arith.divf %812, %813 : vector<2x128xf32>
    %815 = math.tanh %809 : vector<2x128xf32>
    %816 = vector.extract_strided_slice %814 {offsets = [0, 0], sizes = [2, 32], strides = [1, 1]} : vector<2x128xf32> to vector<2x32xf32>
    %817 = vector.extract_strided_slice %814 {offsets = [0, 32], sizes = [2, 32], strides = [1, 1]} : vector<2x128xf32> to vector<2x32xf32>
    %818 = vector.extract_strided_slice %815 {offsets = [0, 64], sizes = [2, 32], strides = [1, 1]} : vector<2x128xf32> to vector<2x32xf32>
    %819 = vector.extract_strided_slice %814 {offsets = [0, 96], sizes = [2, 32], strides = [1, 1]} : vector<2x128xf32> to vector<2x32xf32>
    %820 = arith.mulf %817, %798 : vector<2x32xf32>
    %821 = arith.mulf %816, %818 : vector<2x32xf32>
    %822 = arith.addf %820, %821 : vector<2x32xf32>
    %823 = math.tanh %822 : vector<2x32xf32>
    %824 = arith.mulf %819, %823 : vector<2x32xf32>
    %825 = arith.index_cast %c6_i32_304 : i32 to index
    %c0_309 = arith.constant 0 : index
    %c0_310 = arith.constant 0 : index
    %826 = vector.load %arg12[%825, %c0_309, %c0_310] : memref<8x2x32xf32, #tpu.memory_space<vmem>>, vector<1x2x32xf32>
    %827 = vector.shape_cast %826 : vector<1x2x32xf32> to vector<2x32xf32>
    %828 = vector.shape_cast %824 : vector<2x32xf32> to vector<1x2x32xf32>
    tpu.vector_store %arg12[%825, %c0_309, %c0_310], %828 {strides = array<i32>} : memref<8x2x32xf32, #tpu.memory_space<vmem>>, vector<1x2x32xf32>,
    %c7_i32_311 = arith.constant 7 : i32
    %829 = arith.index_cast %c7_i32_311 : i32 to index
    %c0_312 = arith.constant 0 : index
    %c0_313 = arith.constant 0 : index
    %830 = vector.load %arg13[%829, %c0_312, %c0_313] : memref<8x2x128xf32, #tpu.memory_space<vmem>>, vector<1x2x128xf32>
    %831 = vector.shape_cast %830 : vector<1x2x128xf32> to vector<2x128xf32>
    %cst_314 = arith.constant dense<0.000000e+00> : vector<2x128xf32>
    %832 = tpu.matmul %824, %656, %cst_314 {dimension_numbers = #tpu.dot_dimension_numbers<[1], [0], [0], [1], [0, 0, 1, 1], [], []>} : vector<2x32xf32>, vector<32x128xf32>, vector<2x128xf32> -> vector<2x128xf32>
    %833 = arith.addf %831, %832 : vector<2x128xf32>
    %834 = arith.negf %833 : vector<2x128xf32>
    %835 = math.exp %834 : vector<2x128xf32>
    %cst_315 = arith.constant 1.000000e+00 : f32
    %836 = vector.broadcast %cst_315 : f32 to vector<2x128xf32>
    %837 = arith.addf %836, %835 : vector<2x128xf32>
    %838 = arith.divf %836, %837 : vector<2x128xf32>
    %839 = math.tanh %833 : vector<2x128xf32>
    %840 = vector.extract_strided_slice %838 {offsets = [0, 0], sizes = [2, 32], strides = [1, 1]} : vector<2x128xf32> to vector<2x32xf32>
    %841 = vector.extract_strided_slice %838 {offsets = [0, 32], sizes = [2, 32], strides = [1, 1]} : vector<2x128xf32> to vector<2x32xf32>
    %842 = vector.extract_strided_slice %839 {offsets = [0, 64], sizes = [2, 32], strides = [1, 1]} : vector<2x128xf32> to vector<2x32xf32>
    %843 = vector.extract_strided_slice %838 {offsets = [0, 96], sizes = [2, 32], strides = [1, 1]} : vector<2x128xf32> to vector<2x32xf32>
    %844 = arith.mulf %841, %822 : vector<2x32xf32>
    %845 = arith.mulf %840, %842 : vector<2x32xf32>
    %846 = arith.addf %844, %845 : vector<2x32xf32>
    %847 = math.tanh %846 : vector<2x32xf32>
    %848 = arith.mulf %843, %847 : vector<2x32xf32>
    %849 = arith.index_cast %c7_i32_311 : i32 to index
    %c0_316 = arith.constant 0 : index
    %c0_317 = arith.constant 0 : index
    %850 = vector.load %arg12[%849, %c0_316, %c0_317] : memref<8x2x32xf32, #tpu.memory_space<vmem>>, vector<1x2x32xf32>
    %851 = vector.shape_cast %850 : vector<1x2x32xf32> to vector<2x32xf32>
    %852 = vector.shape_cast %848 : vector<2x32xf32> to vector<1x2x32xf32>
    tpu.vector_store %arg12[%849, %c0_316, %c0_317], %852 {strides = array<i32>} : memref<8x2x32xf32, #tpu.memory_space<vmem>>, vector<1x2x32xf32>,
    %c8_i32_318 = arith.constant 8 : i32
    %c3_319 = arith.constant 3 : index
    %c0_320 = arith.constant 0 : index
    %c0_321 = arith.constant 0 : index
    %853 = vector.load %arg10[%c3_319, %c0_320, %c0_321] : memref<4x2x32xf32, #tpu.memory_space<vmem>>, vector<1x2x32xf32>
    %854 = vector.shape_cast %853 : vector<1x2x32xf32> to vector<2x32xf32>
    %855 = vector.shape_cast %848 : vector<2x32xf32> to vector<1x2x32xf32>
    tpu.vector_store %arg10[%c3_319, %c0_320, %c0_321], %855 {strides = array<i32>} : memref<4x2x32xf32, #tpu.memory_space<vmem>>, vector<1x2x32xf32>,
    %c3_322 = arith.constant 3 : index
    %c0_323 = arith.constant 0 : index
    %c0_324 = arith.constant 0 : index
    %856 = vector.load %arg11[%c3_322, %c0_323, %c0_324] : memref<4x2x32xf32, #tpu.memory_space<vmem>>, vector<1x2x32xf32>
    %857 = vector.shape_cast %856 : vector<1x2x32xf32> to vector<2x32xf32>
    %858 = vector.shape_cast %846 : vector<2x32xf32> to vector<1x2x32xf32>
    tpu.vector_store %arg11[%c3_322, %c0_323, %c0_324], %858 {strides = array<i32>} : memref<4x2x32xf32, #tpu.memory_space<vmem>>, vector<1x2x32xf32>,
    %c0_325 = arith.constant 0 : index
    %c0_326 = arith.constant 0 : index
    %c0_327 = arith.constant 0 : index
    %859 = vector.load %arg12[%c0_325, %c0_326, %c0_327] : memref<8x2x32xf32, #tpu.memory_space<vmem>>, vector<8x2x32xf32>
    %860 = vector.shape_cast %859 : vector<8x2x32xf32> to vector<16x32xf32>
    %c0_328 = arith.constant 0 : index
    %c0_329 = arith.constant 0 : index
    %861 = vector.load %arg7[%c0_328, %c0_329] : memref<32x32xf32, #tpu.memory_space<vmem>>, vector<32x32xf32>
    %cst_330 = arith.constant dense<0.000000e+00> : vector<16x32xf32>
    %862 = tpu.matmul %860, %861, %cst_330 {dimension_numbers = #tpu.dot_dimension_numbers<[1], [0], [0], [1], [0, 0, 1, 1], [], []>} : vector<16x32xf32>, vector<32x32xf32>, vector<16x32xf32> -> vector<16x32xf32>
    %c0_331 = arith.constant 0 : index
    %c0_332 = arith.constant 0 : index
    %863 = vector.load %arg8[%c0_331, %c0_332] : memref<1x32xf32, #tpu.memory_space<vmem>>, vector<1x32xf32>
    %864 = vector.broadcast %863 : vector<1x32xf32> to vector<16x32xf32>
    %865 = arith.addf %862, %864 : vector<16x32xf32>
    %866 = vector.shape_cast %865 : vector<16x32xf32> to vector<8x2x32xf32>
    %c0_333 = arith.constant 0 : index
    %c0_334 = arith.constant 0 : index
    %c0_335 = arith.constant 0 : index
    %867 = vector.load %arg9[%c0_333, %c0_334, %c0_335] : memref<8x2x32xf32, #tpu.memory_space<vmem>>, vector<8x2x32xf32>
    tpu.vector_store %arg9[%c0_333, %c0_334, %c0_335], %866 {strides = array<i32>} : memref<8x2x32xf32, #tpu.memory_space<vmem>>, vector<8x2x32xf32>,
    return
  }
}

</mosaic_0001>

<llo_original>
// kernel: decoder_forward.1
$region0: #{decoder_forward.1}
  #allocation0 [shape = 'u32[]', space=smem, size = 0x4, offset = 0x4, fixed_abs, tag = 'smem constant byte address 0x4 - core index']
  #allocation1 [shape = 'u32[144,128]{1,0:T(1,128)}', space=vmem, size = 0x12000, scoped, tag = 'internal scratch']
  #allocation2 [shape = 'f32[8,2,32]{2,1,0:T(2,128)}', space=vmem, size = 0x2000, scoped, tag = 'scratch operand']
  #allocation3 [shape = 'f32[8,2,128]{2,1,0:T(2,128)}', space=vmem, size = 0x2000, scoped, tag = 'scratch operand']
  %s0 = inlined_call_operand.vmem [shape: f32[8,2,16], index: 0, kind: input, shape index: {}]
  %s1 = inlined_call_operand.hbm [shape: f32[4,2,32], index: 1, kind: input, shape index: {}]
  %s2 = inlined_call_operand.hbm [shape: f32[4,2,32], index: 2, kind: input, shape index: {}]
  %s3 = inlined_call_operand.vmem [shape: f32[16,128], index: 3, kind: input, shape index: {}]
  %s4 = inlined_call_operand.vmem [shape: f32[3,32,128], index: 4, kind: input, shape index: {}]
  %s5 = inlined_call_operand.vmem [shape: f32[4,32,128], index: 5, kind: input, shape index: {}]
  %s6 = inlined_call_operand.hbm [shape: f32[4,1,128], index: 6, kind: input, shape index: {}]
  %s7 = inlined_call_operand.vmem [shape: f32[32,32], index: 7, kind: input, shape index: {}]
  %s8 = inlined_call_operand.vmem [shape: f32[1,32], index: 8, kind: input, shape index: {}]
  %s9 = inlined_call_operand.vmem [shape: f32[8,2,32], index: 9, kind: output, shape index: {0}]
  %s10 = inlined_call_operand.hbm [shape: f32[4,2,32], index: 10, kind: output, shape index: {1}]
  %s11 = inlined_call_operand.hbm [shape: f32[4,2,32], index: 11, kind: output, shape index: {2}]
  %12 = xla_tuple %s9, %s10, %s11
  %s13 = sld [smem:[#allocation0]]
  $region74: #{decoder_forward.1} parent=0
    _
  %s15 = ssub.s32 1, %s13
  %s16 = scalar_select 0, %s15, %s13
  $region1: #{decoder_forward.1} parent=0
    #allocation4 [shape = 'u8[4096]{0}', space=vmem, size = 0x1000, scoped, tag = 'input window, operand 1, single buffered']
    #allocation5 [shape = 's32[1]{0}', space=sflag, size = 0x4, scoped, tag = 'scoped memory for decoder_forward.1']
    #allocation6 [shape = 's32[1]{0}', space=sflag, size = 0x4, scoped, tag = 'scoped memory for decoder_forward.1']
    #allocation7 [shape = 'u8[4096]{0}', space=vmem, size = 0x1000, scoped, tag = 'input window, operand 2, single buffered']
    #allocation8 [shape = 's32[1]{0}', space=sflag, size = 0x4, scoped, tag = 'scoped memory for decoder_forward.1']
    #allocation9 [shape = 'u8[2048]{0}', space=vmem, size = 0x800, scoped, tag = 'input window, operand 6, single buffered']
    #allocation10 [shape = 'u8[4096]{0}', space=vmem, size = 0x1000, scoped, tag = 'output window, operand 1, single buffered']
    #allocation11 [shape = 'u8[4096]{0}', space=vmem, size = 0x1000, scoped, tag = 'output window, operand 2, single buffered']
    #allocation12 [shape = 's32[1]{0}', space=sflag, size = 0x4, scoped, tag = 'scoped memory for decoder_forward.1']
    %17 = vsyncpa [#allocation5], 0
    %18 = vsyncpa [#allocation8], 0
    %19 = vsyncpa [#allocation6], 0
    %20 = vsyncpa [#allocation12], 0
    // Predicated region
    $region2: #{decoder_forward.1} parent=1 // pred_check
      _
    $region3: #{decoder_forward.1} parent=1 // pred_check_branch
      %22 = sbr.rel (0) target = $region5
    $region4: #{decoder_forward.1} parent=1 // pred_region
      _
    $region5: #{decoder_forward.1} parent=1 // pred_fallthru
      _
    // Predicated region
    $region6: #{decoder_forward.1} parent=1 // pred_check
      _
    $region7: #{decoder_forward.1} parent=1 // pred_check_branch
      %24 = sbr.rel (0) target = $region9
    $region8: #{decoder_forward.1} parent=1 // pred_region
      %s26 = ssub.s32 128, 128
      %27 = vsyncadd [#allocation5], %s26
      %s28 = sshll.u32 [#allocation4], 4
      %s29 = int_to_ptr.vmem [resolvable:$true] %s28
      %34 = dma.hbm_to_vmem [thread:$0]  %s1, 128, %s29, [#allocation5], 32, 32, 2
    $region9: #{decoder_forward.1} parent=1 // pred_fallthru
      _
    // Predicated region
    $region10: #{decoder_forward.1} parent=1 // pred_check
      _
    $region11: #{decoder_forward.1} parent=1 // pred_check_branch
      %36 = sbr.rel (0) target = $region13
    $region12: #{decoder_forward.1} parent=1 // pred_region
      %s38 = ssub.s32 128, 128
      %39 = vsyncadd [#allocation8], %s38
      %s40 = sshll.u32 [#allocation7], 4
      %s41 = int_to_ptr.vmem [resolvable:$true] %s40
      %46 = dma.hbm_to_vmem [thread:$0]  %s2, 128, %s41, [#allocation8], 32, 32, 2
    $region13: #{decoder_forward.1} parent=1 // pred_fallthru
      _
    // Predicated region
    $region14: #{decoder_forward.1} parent=1 // pred_check
      _
    $region15: #{decoder_forward.1} parent=1 // pred_check_branch
      %48 = sbr.rel (0) target = $region17
    $region16: #{decoder_forward.1} parent=1 // pred_region
      _
    $region17: #{decoder_forward.1} parent=1 // pred_fallthru
      _
    // Predicated region
    $region18: #{decoder_forward.1} parent=1 // pred_check
      _
    $region19: #{decoder_forward.1} parent=1 // pred_check_branch
      %50 = sbr.rel (0) target = $region21
    $region20: #{decoder_forward.1} parent=1 // pred_region
      _
    $region21: #{decoder_forward.1} parent=1 // pred_fallthru
      _
    // Predicated region
    $region22: #{decoder_forward.1} parent=1 // pred_check
      _
    $region23: #{decoder_forward.1} parent=1 // pred_check_branch
      %52 = sbr.rel (0) target = $region25
    $region24: #{decoder_forward.1} parent=1 // pred_region
      _
    $region25: #{decoder_forward.1} parent=1 // pred_fallthru
      _
    // Predicated region
    $region26: #{decoder_forward.1} parent=1 // pred_check
      _
    $region27: #{decoder_forward.1} parent=1 // pred_check_branch
      %54 = sbr.rel (0) target = $region29
    $region28: #{decoder_forward.1} parent=1 // pred_region
      %s56 = ssub.s32 64, 64
      %57 = vsyncadd [#allocation8], %s56
      %s58 = sshll.u32 [#allocation9], 4
      %s59 = int_to_ptr.vmem [resolvable:$true] %s58
      %64 = dma.hbm_to_vmem [thread:$0]  %s6, 64, %s59, [#allocation8], 16, 16, 1
    $region29: #{decoder_forward.1} parent=1 // pred_fallthru
      _
    // Predicated region
    $region30: #{decoder_forward.1} parent=1 // pred_check
      _
    $region31: #{decoder_forward.1} parent=1 // pred_check_branch
      %66 = sbr.rel (0) target = $region33
    $region32: #{decoder_forward.1} parent=1 // pred_region
      _
    $region33: #{decoder_forward.1} parent=1 // pred_fallthru
      _
    // Predicated region
    $region34: #{decoder_forward.1} parent=1 // pred_check
      _
    $region35: #{decoder_forward.1} parent=1 // pred_check_branch
      %68 = sbr.rel (0) target = $region37
    $region36: #{decoder_forward.1} parent=1 // pred_region
      _
    $region37: #{decoder_forward.1} parent=1 // pred_fallthru
      _
    // Predicated region
    $region38: #{decoder_forward.1} parent=1 // pred_check
      _
    $region39: #{decoder_forward.1} parent=1 // pred_check_branch
      %70 = sbr.rel (0) target = $region41
    $region40: #{decoder_forward.1} parent=1 // pred_region
      %71 = dma.done [#allocation5], 128
    $region41: #{decoder_forward.1} parent=1 // pred_fallthru
      _
    // Predicated region
    $region42: #{decoder_forward.1} parent=1 // pred_check
      _
    $region43: #{decoder_forward.1} parent=1 // pred_check_branch
      %73 = sbr.rel (0) target = $region45
    $region44: #{decoder_forward.1} parent=1 // pred_region
      %74 = dma.done [#allocation8], 128
    $region45: #{decoder_forward.1} parent=1 // pred_fallthru
      _
    // Predicated region
    $region46: #{decoder_forward.1} parent=1 // pred_check
      _
    $region47: #{decoder_forward.1} parent=1 // pred_check_branch
      %76 = sbr.rel (0) target = $region49
    $region48: #{decoder_forward.1} parent=1 // pred_region
      %77 = dma.done [#allocation8], 64
    $region49: #{decoder_forward.1} parent=1 // pred_fallthru
      _
    %v78 = vld [vmem:[%s0] sm:$0x3]
    %v79 = vld [vmem:[%s0 + $0x2] sm:$0x3]
    %v80 = vld [vmem:[%s0 + $0x4] sm:$0x3]
    %v81 = vld [vmem:[%s0 + $0x6] sm:$0x3]
    %v82 = vld [vmem:[%s0 + $0x8] sm:$0x3]
    %v83 = vld [vmem:[%s0 + $0xa] sm:$0x3]
    %v84 = vld [vmem:[%s0 + $0xc] sm:$0x3]
    %v85 = vld [vmem:[%s0 + $0xe] sm:$0x3]
    %v86 = vld [vmem:[%s3] sm:$0xff]
    %v87 = vld [vmem:[%s3 + $0x8] sm:$0xff]
    %v88 = vld [vmem:[#allocation9] sm:$0x1]
    %v90 = vlaneseq
    %v91 = vshrl.u32 %v90, 7
    %v92 = vsub.s32 0, %v91
    %v93 = vrot.slane %v88, %v92
    %v103 = vcombine.low %v78, %v79
    %v104 = vcombine.low %v80, %v81
    %v106 = vunpack.c.l.s4 1983009808
    %v107 = vunpack.c.0.s8 %v106
    %v108 = vlaneseq
    %v109 = vshrl.u32 %v108, 7
    %v110 = vsub.s32 %v107, %v109
    %v111 = vrot.slane %v103, %v110
    %v113 = vunpack.c.l.s4 1983009808
    %v114 = vunpack.c.0.s8 %v113
    %v115 = vlaneseq
    %v116 = vshrl.u32 %v115, 7
    %v117 = vsub.s32 %v114, %v116
    %v118 = vrot.slane %v104, %v117
    %v119 = vcombine.low %v111, %v118
    %v120 = vcombine.low %v82, %v83
    %v121 = vcombine.low %v84, %v85
    %v123 = vunpack.c.l.s4 1983009808
    %v124 = vunpack.c.0.s8 %v123
    %v125 = vlaneseq
    %v126 = vshrl.u32 %v125, 7
    %v127 = vsub.s32 %v124, %v126
    %v128 = vrot.slane %v120, %v127
    %v130 = vunpack.c.l.s4 1983009808
    %v131 = vunpack.c.0.s8 %v130
    %v132 = vlaneseq
    %v133 = vshrl.u32 %v132, 7
    %v134 = vsub.s32 %v131, %v133
    %v135 = vrot.slane %v121, %v134
    %v136 = vcombine.low %v128, %v135
    %vm137 = vcmask 130048
    %v138 = vsel %vm137, %v119, 0
    %v140 = vsel %vm137, %v136, 0
    %142 = vmatprep.subr.mxu0 0.0
    %143 = vmatpush1.msra.mxu0 %v86
    %144 = vmatprep.subr.mxu0 0.0
    %145 = vmatpush1.msra.mxu0 %v87
    %146 = vmatprep.subr.mxu0 0.0
    %147 = vmatpush1.msra.mxu0 0.0
    %148 = vmatprep.subr.mxu0 0.0
    %149 = vmatpush1.msra.mxu0 0.0
    %150 = vmatprep.subr.mxu0 0.0
    %151 = vmatpush1.msra.mxu0 0.0
    %152 = vmatprep.subr.mxu0 0.0
    %153 = vmatpush1.msra.mxu0 0.0
    %154 = vmatprep.subr.mxu0 0.0
    %155 = vmatpush1.msra.mxu0 0.0
    %156 = vmatprep.subr.mxu0 0.0
    %157 = vmatpush1.msra.mxu0 0.0
    %158 = vmatprep.subr.mxu0 0.0
    %159 = vmatpush1.msra.mxu0 0.0
    %160 = vmatprep.subr.mxu0 0.0
    %161 = vmatpush1.msra.mxu0 0.0
    %162 = vmatprep.subr.mxu0 0.0
    %163 = vmatpush1.msra.mxu0 0.0
    %164 = vmatprep.subr.mxu0 0.0
    %165 = vmatpush1.msra.mxu0 0.0
    %166 = vmatprep.subr.mxu0 0.0
    %167 = vmatpush1.msra.mxu0 0.0
    %168 = vmatprep.subr.mxu0 0.0
    %169 = vmatpush1.msra.mxu0 0.0
    %170 = vmatprep.subr.mxu0 0.0
    %171 = vmatpush1.msra.mxu0 0.0
    %172 = vmatprep.subr.mxu0 0.0
    %173 = vmatpush1.msra.mxu0 0.0
    %174 = vmatprep.subr.mxu0 0.0
    %175 = vmatpush1.msra.mxu0 0.0
    %176 = vmatprep.subr.mxu0 0.0
    %177 = vmatpush1.msra.mxu0 0.0
    %178 = vmatprep.subr.mxu0 0.0
    %179 = vmatpush1.msra.mxu0 0.0
    %180 = vmatprep.subr.mxu0 0.0
    %181 = vmatpush1.msra.mxu0 0.0
    %182 = vmatprep.subr.mxu0 0.0
    %183 = vmatpush1.msra.mxu0 0.0
    %184 = vmatprep.subr.mxu0 0.0
    %185 = vmatpush1.msra.mxu0 0.0
    %186 = vmatprep.subr.mxu0 0.0
    %187 = vmatpush1.msra.mxu0 0.0
    %188 = vmatprep.subr.mxu0 0.0
    %189 = vmatpush1.msra.mxu0 0.0
    %190 = vmatprep.subr.mxu0 0.0
    %191 = vmatpush1.msra.mxu0 0.0
    %192 = vmatprep.subr.mxu0 0.0
    %193 = vmatpush1.msra.mxu0 0.0
    %194 = vmatprep.subr.mxu0 0.0
    %195 = vmatpush1.msra.mxu0 0.0
    %196 = vmatprep.subr.mxu0 0.0
    %197 = vmatpush1.msra.mxu0 0.0
    %198 = vmatprep.subr.mxu0 0.0
    %199 = vmatpush1.msra.mxu0 0.0
    %200 = vmatprep.subr.mxu0 0.0
    %201 = vmatpush1.msra.mxu0 0.0
    %202 = vmatprep.subr.mxu0 0.0
    %203 = vmatpush1.msra.mxu0 0.0
    %204 = vmatprep.subr.mxu0 0.0
    %205 = vmatpush1.msra.mxu0 0.0
    %206 = vmatprep.mubr.f32.mxu0 0.0
    %207 = vmatmul.mubr.f32.gmra.mrb[0].mxu0 %v138
    %v208 = vpop.f32.mrb[0].mxu0
    %v209 = vadd.f32 %v93, %v208
    %v210 = vpop.f32.mrb[0].mxu0
    %211 = vmatprep.mubr.f32.mxu0 0.0
    %212 = vmatmul.mubr.f32.gmra.mrb[0].mxu0 %v140
    %v213 = vpop.f32.mrb[0].mxu0
    %v214 = vadd.f32 %v93, %v213
    %v215 = vpop.f32.mrb[0].mxu0
    %216 = vdwg.mxu0
    %v219 = vcombine.high %v209, %v209
    %v221 = vunpack.c.l.s4 1983009808
    %v222 = vunpack.c.0.s8 %v221
    %v223 = vlaneseq
    %v224 = vshrl.u32 %v223, 7
    %v225 = vsub.s32 %v222, %v224
    %v226 = vrot.slane %v209, %v225
    %v228 = vunpack.c.l.s4 1983009808
    %v229 = vunpack.c.0.s8 %v228
    %v230 = vlaneseq
    %v231 = vshrl.u32 %v230, 7
    %v232 = vsub.s32 %v229, %v231
    %v233 = vrot.slane %v219, %v232
    %v234 = vcombine.high %v226, %v226
    %v235 = vcombine.high %v233, %v233
    %v236 = vcombine.high %v214, %v214
    %v238 = vunpack.c.l.s4 1983009808
    %v239 = vunpack.c.0.s8 %v238
    %v240 = vlaneseq
    %v241 = vshrl.u32 %v240, 7
    %v242 = vsub.s32 %v239, %v241
    %v243 = vrot.slane %v214, %v242
    %v245 = vunpack.c.l.s4 1983009808
    %v246 = vunpack.c.0.s8 %v245
    %v247 = vlaneseq
    %v248 = vshrl.u32 %v247, 7
    %v249 = vsub.s32 %v246, %v248
    %v250 = vrot.slane %v236, %v249
    %v251 = vcombine.high %v243, %v243
    %v252 = vcombine.high %v250, %v250
    %261 = vst [vmem:[#allocation3] sm:$0x3] %v226
    %262 = vst [vmem:[#allocation3 + $0x2] sm:$0x3] %v234
    %263 = vst [vmem:[#allocation3 + $0x4] sm:$0x3] %v233
    %264 = vst [vmem:[#allocation3 + $0x6] sm:$0x3] %v235
    %265 = vst [vmem:[#allocation3 + $0x8] sm:$0x3] %v243
    %266 = vst [vmem:[#allocation3 + $0xa] sm:$0x3] %v251
    %267 = vst [vmem:[#allocation3 + $0xc] sm:$0x3] %v250
    %268 = vst [vmem:[#allocation3 + $0xe] sm:$0x3] %v252
    %v269 = vld [vmem:[%s5] sm:$0xff]
    %v270 = vld [vmem:[%s5 + $0x8] sm:$0xff]
    %v271 = vld [vmem:[%s5 + $0x10] sm:$0xff]
    %v272 = vld [vmem:[%s5 + $0x18] sm:$0xff]
    %v273 = vld [vmem:[#allocation4] sm:$0x3]
    %v274 = vld [vmem:[#allocation7] sm:$0x3]
    %v275 = vld [vmem:[#allocation3] sm:$0x3]
    %vm276 = vcmask 261120
    %v278 = vsel %vm276, %v273, 0
    %280 = vmatprep.subr.mxu0 0.0
    %281 = vmatpush1.msra.mxu0 %v269
    %282 = vmatprep.subr.mxu0 0.0
    %283 = vmatpush1.msra.mxu0 %v270
    %284 = vmatprep.subr.mxu0 0.0
    %285 = vmatpush1.msra.mxu0 %v271
    %286 = vmatprep.subr.mxu0 0.0
    %287 = vmatpush1.msra.mxu0 %v272
    %288 = vmatprep.subr.mxu0 0.0
    %289 = vmatpush1.msra.mxu0 0.0
    %290 = vmatprep.subr.mxu0 0.0
    %291 = vmatpush1.msra.mxu0 0.0
    %292 = vmatprep.subr.mxu0 0.0
    %293 = vmatpush1.msra.mxu0 0.0
    %294 = vmatprep.subr.mxu0 0.0
    %295 = vmatpush1.msra.mxu0 0.0
    %296 = vmatprep.subr.mxu0 0.0
    %297 = vmatpush1.msra.mxu0 0.0
    %298 = vmatprep.subr.mxu0 0.0
    %299 = vmatpush1.msra.mxu0 0.0
    %300 = vmatprep.subr.mxu0 0.0
    %301 = vmatpush1.msra.mxu0 0.0
    %302 = vmatprep.subr.mxu0 0.0
    %303 = vmatpush1.msra.mxu0 0.0
    %304 = vmatprep.subr.mxu0 0.0
    %305 = vmatpush1.msra.mxu0 0.0
    %306 = vmatprep.subr.mxu0 0.0
    %307 = vmatpush1.msra.mxu0 0.0
    %308 = vmatprep.subr.mxu0 0.0
    %309 = vmatpush1.msra.mxu0 0.0
    %310 = vmatprep.subr.mxu0 0.0
    %311 = vmatpush1.msra.mxu0 0.0
    %312 = vmatprep.subr.mxu0 0.0
    %313 = vmatpush1.msra.mxu0 0.0
    %314 = vmatprep.subr.mxu0 0.0
    %315 = vmatpush1.msra.mxu0 0.0
    %316 = vmatprep.subr.mxu0 0.0
    %317 = vmatpush1.msra.mxu0 0.0
    %318 = vmatprep.subr.mxu0 0.0
    %319 = vmatpush1.msra.mxu0 0.0
    %320 = vmatprep.subr.mxu0 0.0
    %321 = vmatpush1.msra.mxu0 0.0
    %322 = vmatprep.subr.mxu0 0.0
    %323 = vmatpush1.msra.mxu0 0.0
    %324 = vmatprep.subr.mxu0 0.0
    %325 = vmatpush1.msra.mxu0 0.0
    %326 = vmatprep.subr.mxu0 0.0
    %327 = vmatpush1.msra.mxu0 0.0
    %328 = vmatprep.subr.mxu0 0.0
    %329 = vmatpush1.msra.mxu0 0.0
    %330 = vmatprep.subr.mxu0 0.0
    %331 = vmatpush1.msra.mxu0 0.0
    %332 = vmatprep.subr.mxu0 0.0
    %333 = vmatpush1.msra.mxu0 0.0
    %334 = vmatprep.subr.mxu0 0.0
    %335 = vmatpush1.msra.mxu0 0.0
    %336 = vmatprep.subr.mxu0 0.0
    %337 = vmatpush1.msra.mxu0 0.0
    %338 = vmatprep.subr.mxu0 0.0
    %339 = vmatpush1.msra.mxu0 0.0
    %340 = vmatprep.subr.mxu0 0.0
    %341 = vmatpush1.msra.mxu0 0.0
    %342 = vmatprep.subr.mxu0 0.0
    %343 = vmatpush1.msra.mxu0 0.0
    %344 = vmatprep.mubr.f32.mxu0 0.0
    %345 = vmatmul.mubr.f32.gmra.mrb[0].mxu0 %v278
    %v346 = vpop.f32.mrb[0].mxu0
    %v347 = vadd.f32 0.0, %v346
    %v348 = vpop.f32.mrb[0].mxu0
    %349 = vdwg.mxu0
    %v350 = vadd.f32 %v275, %v347
    %v351 = vxor.u32 %v350, 2147483648
    %v352 = vmul.f32 %v351, 1.442695
    %v353 = vpow.pop %v352
    %v354 = vadd.f32 %v353, 1.0
    %v355 = vrcp.pop %v354
    %v356 = vmul.f32 1.0, %v355
    %v357 = vtanh.pop %v350
    %359 = vrot.lane.b32.xlu0 %v274, 32
    %v360 = vpop.permute.xlu0 %359
    %v362 = vmul.f32 %v356, %v360
    %364 = vrot.lane.b32.xlu0 %v357, 64
    %v365 = vpop.permute.xlu0 %364
    %v367 = vmul.f32 %v356, %v365
    %369 = vrot.lane.b32.xlu0 %v367, 32
    %v370 = vpop.permute.xlu0 %369
    %v372 = vadd.f32 %v362, %v370
    %v373 = vtanh.pop %v372
    %375 = vrot.lane.b32.xlu0 %v373, 64
    %v376 = vpop.permute.xlu0 %375
    %v378 = vmul.f32 %v356, %v376
    %380 = vrot.lane.b32.xlu0 %v378, 32
    %v381 = vpop.permute.xlu0 %380
    %vm383 = vcmask 254976
    %384 = vst.msk [vmem:[#allocation2] sm:$0x3] %vm383, %v381
    %s385 = scalar_lea.vmem [#allocation3], 2
    %v386 = vld [vmem:[%s385] sm:$0x3]
    %v387 = vsel %vm276, %v381, 0
    %389 = vmatprep.subr.mxu0 0.0
    %390 = vmatpush1.msra.mxu0 %v269
    %391 = vmatprep.subr.mxu0 0.0
    %392 = vmatpush1.msra.mxu0 %v270
    %393 = vmatprep.subr.mxu0 0.0
    %394 = vmatpush1.msra.mxu0 %v271
    %395 = vmatprep.subr.mxu0 0.0
    %396 = vmatpush1.msra.mxu0 %v272
    %397 = vmatprep.subr.mxu0 0.0
    %398 = vmatpush1.msra.mxu0 0.0
    %399 = vmatprep.subr.mxu0 0.0
    %400 = vmatpush1.msra.mxu0 0.0
    %401 = vmatprep.subr.mxu0 0.0
    %402 = vmatpush1.msra.mxu0 0.0
    %403 = vmatprep.subr.mxu0 0.0
    %404 = vmatpush1.msra.mxu0 0.0
    %405 = vmatprep.subr.mxu0 0.0
    %406 = vmatpush1.msra.mxu0 0.0
    %407 = vmatprep.subr.mxu0 0.0
    %408 = vmatpush1.msra.mxu0 0.0
    %409 = vmatprep.subr.mxu0 0.0
    %410 = vmatpush1.msra.mxu0 0.0
    %411 = vmatprep.subr.mxu0 0.0
    %412 = vmatpush1.msra.mxu0 0.0
    %413 = vmatprep.subr.mxu0 0.0
    %414 = vmatpush1.msra.mxu0 0.0
    %415 = vmatprep.subr.mxu0 0.0
    %416 = vmatpush1.msra.mxu0 0.0
    %417 = vmatprep.subr.mxu0 0.0
    %418 = vmatpush1.msra.mxu0 0.0
    %419 = vmatprep.subr.mxu0 0.0
    %420 = vmatpush1.msra.mxu0 0.0
    %421 = vmatprep.subr.mxu0 0.0
    %422 = vmatpush1.msra.mxu0 0.0
    %423 = vmatprep.subr.mxu0 0.0
    %424 = vmatpush1.msra.mxu0 0.0
    %425 = vmatprep.subr.mxu0 0.0
    %426 = vmatpush1.msra.mxu0 0.0
    %427 = vmatprep.subr.mxu0 0.0
    %428 = vmatpush1.msra.mxu0 0.0
    %429 = vmatprep.subr.mxu0 0.0
    %430 = vmatpush1.msra.mxu0 0.0
    %431 = vmatprep.subr.mxu0 0.0
    %432 = vmatpush1.msra.mxu0 0.0
    %433 = vmatprep.subr.mxu0 0.0
    %434 = vmatpush1.msra.mxu0 0.0
    %435 = vmatprep.subr.mxu0 0.0
    %436 = vmatpush1.msra.mxu0 0.0
    %437 = vmatprep.subr.mxu0 0.0
    %438 = vmatpush1.msra.mxu0 0.0
    %439 = vmatprep.subr.mxu0 0.0
    %440 = vmatpush1.msra.mxu0 0.0
    %441 = vmatprep.subr.mxu0 0.0
    %442 = vmatpush1.msra.mxu0 0.0
    %443 = vmatprep.subr.mxu0 0.0
    %444 = vmatpush1.msra.mxu0 0.0
    %445 = vmatprep.subr.mxu0 0.0
    %446 = vmatpush1.msra.mxu0 0.0
    %447 = vmatprep.subr.mxu0 0.0
    %448 = vmatpush1.msra.mxu0 0.0
    %449 = vmatprep.subr.mxu0 0.0
    %450 = vmatpush1.msra.mxu0 0.0
    %451 = vmatprep.subr.mxu0 0.0
    %452 = vmatpush1.msra.mxu0 0.0
    %453 = vmatprep.mubr.f32.mxu0 0.0
    %454 = vmatmul.mubr.f32.gmra.mrb[0].mxu0 %v387
    %v455 = vpop.f32.mrb[0].mxu0
    %v456 = vadd.f32 0.0, %v455
    %v457 = vpop.f32.mrb[0].mxu0
    %458 = vdwg.mxu0
    %v459 = vadd.f32 %v386, %v456
    %v460 = vxor.u32 %v459, 2147483648
    %v461 = vmul.f32 %v460, 1.442695
    %v462 = vpow.pop %v461
    %v463 = vadd.f32 %v462, 1.0
    %v464 = vrcp.pop %v463
    %v465 = vmul.f32 1.0, %v464
    %v466 = vtanh.pop %v459
    %v467 = vmul.f32 %v465, %v372
    %469 = vrot.lane.b32.xlu0 %v466, 64
    %v470 = vpop.permute.xlu0 %469
    %v472 = vmul.f32 %v465, %v470
    %474 = vrot.lane.b32.xlu0 %v472, 32
    %v475 = vpop.permute.xlu0 %474
    %v477 = vadd.f32 %v467, %v475
    %v478 = vtanh.pop %v477
    %480 = vrot.lane.b32.xlu0 %v478, 64
    %v481 = vpop.permute.xlu0 %480
    %v483 = vmul.f32 %v465, %v481
    %485 = vrot.lane.b32.xlu0 %v483, 32
    %v486 = vpop.permute.xlu0 %485
    %s488 = scalar_lea.vmem [#allocation2], 2
    %489 = vst.msk [vmem:[%s488] sm:$0x3] %vm383, %v486
    %s490 = scalar_lea.vmem [#allocation3], 4
    %v491 = vld [vmem:[%s490] sm:$0x3]
    %v492 = vsel %vm276, %v486, 0
    %494 = vmatprep.subr.mxu0 0.0
    %495 = vmatpush1.msra.mxu0 %v269
    %496 = vmatprep.subr.mxu0 0.0
    %497 = vmatpush1.msra.mxu0 %v270
    %498 = vmatprep.subr.mxu0 0.0
    %499 = vmatpush1.msra.mxu0 %v271
    %500 = vmatprep.subr.mxu0 0.0
    %501 = vmatpush1.msra.mxu0 %v272
    %502 = vmatprep.subr.mxu0 0.0
    %503 = vmatpush1.msra.mxu0 0.0
    %504 = vmatprep.subr.mxu0 0.0
    %505 = vmatpush1.msra.mxu0 0.0
    %506 = vmatprep.subr.mxu0 0.0
    %507 = vmatpush1.msra.mxu0 0.0
    %508 = vmatprep.subr.mxu0 0.0
    %509 = vmatpush1.msra.mxu0 0.0
    %510 = vmatprep.subr.mxu0 0.0
    %511 = vmatpush1.msra.mxu0 0.0
    %512 = vmatprep.subr.mxu0 0.0
    %513 = vmatpush1.msra.mxu0 0.0
    %514 = vmatprep.subr.mxu0 0.0
    %515 = vmatpush1.msra.mxu0 0.0
    %516 = vmatprep.subr.mxu0 0.0
    %517 = vmatpush1.msra.mxu0 0.0
    %518 = vmatprep.subr.mxu0 0.0
    %519 = vmatpush1.msra.mxu0 0.0
    %520 = vmatprep.subr.mxu0 0.0
    %521 = vmatpush1.msra.mxu0 0.0
    %522 = vmatprep.subr.mxu0 0.0
    %523 = vmatpush1.msra.mxu0 0.0
    %524 = vmatprep.subr.mxu0 0.0
    %525 = vmatpush1.msra.mxu0 0.0
    %526 = vmatprep.subr.mxu0 0.0
    %527 = vmatpush1.msra.mxu0 0.0
    %528 = vmatprep.subr.mxu0 0.0
    %529 = vmatpush1.msra.mxu0 0.0
    %530 = vmatprep.subr.mxu0 0.0
    %531 = vmatpush1.msra.mxu0 0.0
    %532 = vmatprep.subr.mxu0 0.0
    %533 = vmatpush1.msra.mxu0 0.0
    %534 = vmatprep.subr.mxu0 0.0
    %535 = vmatpush1.msra.mxu0 0.0
    %536 = vmatprep.subr.mxu0 0.0
    %537 = vmatpush1.msra.mxu0 0.0
    %538 = vmatprep.subr.mxu0 0.0
    %539 = vmatpush1.msra.mxu0 0.0
    %540 = vmatprep.subr.mxu0 0.0
    %541 = vmatpush1.msra.mxu0 0.0
    %542 = vmatprep.subr.mxu0 0.0
    %543 = vmatpush1.msra.mxu0 0.0
    %544 = vmatprep.subr.mxu0 0.0
    %545 = vmatpush1.msra.mxu0 0.0
    %546 = vmatprep.subr.mxu0 0.0
    %547 = vmatpush1.msra.mxu0 0.0
    %548 = vmatprep.subr.mxu0 0.0
    %549 = vmatpush1.msra.mxu0 0.0
    %550 = vmatprep.subr.mxu0 0.0
    %551 = vmatpush1.msra.mxu0 0.0
    %552 = vmatprep.subr.mxu0 0.0
    %553 = vmatpush1.msra.mxu0 0.0
    %554 = vmatprep.subr.mxu0 0.0
    %555 = vmatpush1.msra.mxu0 0.0
    %556 = vmatprep.subr.mxu0 0.0
    %557 = vmatpush1.msra.mxu0 0.0
    %558 = vmatprep.mubr.f32.mxu0 0.0
    %559 = vmatmul.mubr.f32.gmra.mrb[0].mxu0 %v492
    %v560 = vpop.f32.mrb[0].mxu0
    %v561 = vadd.f32 0.0, %v560
    %v562 = vpop.f32.mrb[0].mxu0
    %563 = vdwg.mxu0
    %v564 = vadd.f32 %v491, %v561
    %v565 = vxor.u32 %v564, 2147483648
    %v566 = vmul.f32 %v565, 1.442695
    %v567 = vpow.pop %v566
    %v568 = vadd.f32 %v567, 1.0
    %v569 = vrcp.pop %v568
    %v570 = vmul.f32 1.0, %v569
    %v571 = vtanh.pop %v564
    %v572 = vmul.f32 %v570, %v477
    %574 = vrot.lane.b32.xlu0 %v571, 64
    %v575 = vpop.permute.xlu0 %574
    %v577 = vmul.f32 %v570, %v575
    %579 = vrot.lane.b32.xlu0 %v577, 32
    %v580 = vpop.permute.xlu0 %579
    %v582 = vadd.f32 %v572, %v580
    %v583 = vtanh.pop %v582
    %585 = vrot.lane.b32.xlu0 %v583, 64
    %v586 = vpop.permute.xlu0 %585
    %v588 = vmul.f32 %v570, %v586
    %590 = vrot.lane.b32.xlu0 %v588, 32
    %v591 = vpop.permute.xlu0 %590
    %s593 = scalar_lea.vmem [#allocation2], 4
    %594 = vst.msk [vmem:[%s593] sm:$0x3] %vm383, %v591
    %s595 = scalar_lea.vmem [#allocation3], 6
    %v596 = vld [vmem:[%s595] sm:$0x3]
    %v597 = vsel %vm276, %v591, 0
    %599 = vmatprep.subr.mxu0 0.0
    %600 = vmatpush1.msra.mxu0 %v269
    %601 = vmatprep.subr.mxu0 0.0
    %602 = vmatpush1.msra.mxu0 %v270
    %603 = vmatprep.subr.mxu0 0.0
    %604 = vmatpush1.msra.mxu0 %v271
    %605 = vmatprep.subr.mxu0 0.0
    %606 = vmatpush1.msra.mxu0 %v272
    %607 = vmatprep.subr.mxu0 0.0
    %608 = vmatpush1.msra.mxu0 0.0
    %609 = vmatprep.subr.mxu0 0.0
    %610 = vmatpush1.msra.mxu0 0.0
    %611 = vmatprep.subr.mxu0 0.0
    %612 = vmatpush1.msra.mxu0 0.0
    %613 = vmatprep.subr.mxu0 0.0
    %614 = vmatpush1.msra.mxu0 0.0
    %615 = vmatprep.subr.mxu0 0.0
    %616 = vmatpush1.msra.mxu0 0.0
    %617 = vmatprep.subr.mxu0 0.0
    %618 = vmatpush1.msra.mxu0 0.0
    %619 = vmatprep.subr.mxu0 0.0
    %620 = vmatpush1.msra.mxu0 0.0
    %621 = vmatprep.subr.mxu0 0.0
    %622 = vmatpush1.msra.mxu0 0.0
    %623 = vmatprep.subr.mxu0 0.0
    %624 = vmatpush1.msra.mxu0 0.0
    %625 = vmatprep.subr.mxu0 0.0
    %626 = vmatpush1.msra.mxu0 0.0
    %627 = vmatprep.subr.mxu0 0.0
    %628 = vmatpush1.msra.mxu0 0.0
    %629 = vmatprep.subr.mxu0 0.0
    %630 = vmatpush1.msra.mxu0 0.0
    %631 = vmatprep.subr.mxu0 0.0
    %632 = vmatpush1.msra.mxu0 0.0
    %633 = vmatprep.subr.mxu0 0.0
    %634 = vmatpush1.msra.mxu0 0.0
    %635 = vmatprep.subr.mxu0 0.0
    %636 = vmatpush1.msra.mxu0 0.0
    %637 = vmatprep.subr.mxu0 0.0
    %638 = vmatpush1.msra.mxu0 0.0
    %639 = vmatprep.subr.mxu0 0.0
    %640 = vmatpush1.msra.mxu0 0.0
    %641 = vmatprep.subr.mxu0 0.0
    %642 = vmatpush1.msra.mxu0 0.0
    %643 = vmatprep.subr.mxu0 0.0
    %644 = vmatpush1.msra.mxu0 0.0
    %645 = vmatprep.subr.mxu0 0.0
    %646 = vmatpush1.msra.mxu0 0.0
    %647 = vmatprep.subr.mxu0 0.0
    %648 = vmatpush1.msra.mxu0 0.0
    %649 = vmatprep.subr.mxu0 0.0
    %650 = vmatpush1.msra.mxu0 0.0
    %651 = vmatprep.subr.mxu0 0.0
    %652 = vmatpush1.msra.mxu0 0.0
    %653 = vmatprep.subr.mxu0 0.0
    %654 = vmatpush1.msra.mxu0 0.0
    %655 = vmatprep.subr.mxu0 0.0
    %656 = vmatpush1.msra.mxu0 0.0
    %657 = vmatprep.subr.mxu0 0.0
    %658 = vmatpush1.msra.mxu0 0.0
    %659 = vmatprep.subr.mxu0 0.0
    %660 = vmatpush1.msra.mxu0 0.0
    %661 = vmatprep.subr.mxu0 0.0
    %662 = vmatpush1.msra.mxu0 0.0
    %663 = vmatprep.mubr.f32.mxu0 0.0
    %664 = vmatmul.mubr.f32.gmra.mrb[0].mxu0 %v597
    %v665 = vpop.f32.mrb[0].mxu0
    %v666 = vadd.f32 0.0, %v665
    %v667 = vpop.f32.mrb[0].mxu0
    %668 = vdwg.mxu0
    %v669 = vadd.f32 %v596, %v666
    %v670 = vxor.u32 %v669, 2147483648
    %v671 = vmul.f32 %v670, 1.442695
    %v672 = vpow.pop %v671
    %v673 = vadd.f32 %v672, 1.0
    %v674 = vrcp.pop %v673
    %v675 = vmul.f32 1.0, %v674
    %v676 = vtanh.pop %v669
    %v677 = vmul.f32 %v675, %v582
    %679 = vrot.lane.b32.xlu0 %v676, 64
    %v680 = vpop.permute.xlu0 %679
    %v682 = vmul.f32 %v675, %v680
    %684 = vrot.lane.b32.xlu0 %v682, 32
    %v685 = vpop.permute.xlu0 %684
    %v687 = vadd.f32 %v677, %v685
    %v688 = vtanh.pop %v687
    %690 = vrot.lane.b32.xlu0 %v688, 64
    %v691 = vpop.permute.xlu0 %690
    %v693 = vmul.f32 %v675, %v691
    %695 = vrot.lane.b32.xlu0 %v693, 32
    %v696 = vpop.permute.xlu0 %695
    %s698 = scalar_lea.vmem [#allocation2], 6
    %699 = vst.msk [vmem:[%s698] sm:$0x3] %vm383, %v696
    %s700 = scalar_lea.vmem [#allocation3], 8
    %v701 = vld [vmem:[%s700] sm:$0x3]
    %v702 = vsel %vm276, %v696, 0
    %704 = vmatprep.subr.mxu0 0.0
    %705 = vmatpush1.msra.mxu0 %v269
    %706 = vmatprep.subr.mxu0 0.0
    %707 = vmatpush1.msra.mxu0 %v270
    %708 = vmatprep.subr.mxu0 0.0
    %709 = vmatpush1.msra.mxu0 %v271
    %710 = vmatprep.subr.mxu0 0.0
    %711 = vmatpush1.msra.mxu0 %v272
    %712 = vmatprep.subr.mxu0 0.0
    %713 = vmatpush1.msra.mxu0 0.0
    %714 = vmatprep.subr.mxu0 0.0
    %715 = vmatpush1.msra.mxu0 0.0
    %716 = vmatprep.subr.mxu0 0.0
    %717 = vmatpush1.msra.mxu0 0.0
    %718 = vmatprep.subr.mxu0 0.0
    %719 = vmatpush1.msra.mxu0 0.0
    %720 = vmatprep.subr.mxu0 0.0
    %721 = vmatpush1.msra.mxu0 0.0
    %722 = vmatprep.subr.mxu0 0.0
    %723 = vmatpush1.msra.mxu0 0.0
    %724 = vmatprep.subr.mxu0 0.0
    %725 = vmatpush1.msra.mxu0 0.0
    %726 = vmatprep.subr.mxu0 0.0
    %727 = vmatpush1.msra.mxu0 0.0
    %728 = vmatprep.subr.mxu0 0.0
    %729 = vmatpush1.msra.mxu0 0.0
    %730 = vmatprep.subr.mxu0 0.0
    %731 = vmatpush1.msra.mxu0 0.0
    %732 = vmatprep.subr.mxu0 0.0
    %733 = vmatpush1.msra.mxu0 0.0
    %734 = vmatprep.subr.mxu0 0.0
    %735 = vmatpush1.msra.mxu0 0.0
    %736 = vmatprep.subr.mxu0 0.0
    %737 = vmatpush1.msra.mxu0 0.0
    %738 = vmatprep.subr.mxu0 0.0
    %739 = vmatpush1.msra.mxu0 0.0
    %740 = vmatprep.subr.mxu0 0.0
    %741 = vmatpush1.msra.mxu0 0.0
    %742 = vmatprep.subr.mxu0 0.0
    %743 = vmatpush1.msra.mxu0 0.0
    %744 = vmatprep.subr.mxu0 0.0
    %745 = vmatpush1.msra.mxu0 0.0
    %746 = vmatprep.subr.mxu0 0.0
    %747 = vmatpush1.msra.mxu0 0.0
    %748 = vmatprep.subr.mxu0 0.0
    %749 = vmatpush1.msra.mxu0 0.0
    %750 = vmatprep.subr.mxu0 0.0
    %751 = vmatpush1.msra.mxu0 0.0
    %752 = vmatprep.subr.mxu0 0.0
    %753 = vmatpush1.msra.mxu0 0.0
    %754 = vmatprep.subr.mxu0 0.0
    %755 = vmatpush1.msra.mxu0 0.0
    %756 = vmatprep.subr.mxu0 0.0
    %757 = vmatpush1.msra.mxu0 0.0
    %758 = vmatprep.subr.mxu0 0.0
    %759 = vmatpush1.msra.mxu0 0.0
    %760 = vmatprep.subr.mxu0 0.0
    %761 = vmatpush1.msra.mxu0 0.0
    %762 = vmatprep.subr.mxu0 0.0
    %763 = vmatpush1.msra.mxu0 0.0
    %764 = vmatprep.subr.mxu0 0.0
    %765 = vmatpush1.msra.mxu0 0.0
    %766 = vmatprep.subr.mxu0 0.0
    %767 = vmatpush1.msra.mxu0 0.0
    %768 = vmatprep.mubr.f32.mxu0 0.0
    %769 = vmatmul.mubr.f32.gmra.mrb[0].mxu0 %v702
    %v770 = vpop.f32.mrb[0].mxu0
    %v771 = vadd.f32 0.0, %v770
    %v772 = vpop.f32.mrb[0].mxu0
    %773 = vdwg.mxu0
    %v774 = vadd.f32 %v701, %v771
    %v775 = vxor.u32 %v774, 2147483648
    %v776 = vmul.f32 %v775, 1.442695
    %v777 = vpow.pop %v776
    %v778 = vadd.f32 %v777, 1.0
    %v779 = vrcp.pop %v778
    %v780 = vmul.f32 1.0, %v779
    %v781 = vtanh.pop %v774
    %v782 = vmul.f32 %v780, %v687
    %784 = vrot.lane.b32.xlu0 %v781, 64
    %v785 = vpop.permute.xlu0 %784
    %v787 = vmul.f32 %v780, %v785
    %789 = vrot.lane.b32.xlu0 %v787, 32
    %v790 = vpop.permute.xlu0 %789
    %v792 = vadd.f32 %v782, %v790
    %v793 = vtanh.pop %v792
    %795 = vrot.lane.b32.xlu0 %v793, 64
    %v796 = vpop.permute.xlu0 %795
    %v798 = vmul.f32 %v780, %v796
    %800 = vrot.lane.b32.xlu0 %v798, 32
    %v801 = vpop.permute.xlu0 %800
    %s803 = scalar_lea.vmem [#allocation2], 8
    %804 = vst.msk [vmem:[%s803] sm:$0x3] %vm383, %v801
    %s805 = scalar_lea.vmem [#allocation3], 10
    %v806 = vld [vmem:[%s805] sm:$0x3]
    %v807 = vsel %vm276, %v801, 0
    %809 = vmatprep.subr.mxu0 0.0
    %810 = vmatpush1.msra.mxu0 %v269
    %811 = vmatprep.subr.mxu0 0.0
    %812 = vmatpush1.msra.mxu0 %v270
    %813 = vmatprep.subr.mxu0 0.0
    %814 = vmatpush1.msra.mxu0 %v271
    %815 = vmatprep.subr.mxu0 0.0
    %816 = vmatpush1.msra.mxu0 %v272
    %817 = vmatprep.subr.mxu0 0.0
    %818 = vmatpush1.msra.mxu0 0.0
    %819 = vmatprep.subr.mxu0 0.0
    %820 = vmatpush1.msra.mxu0 0.0
    %821 = vmatprep.subr.mxu0 0.0
    %822 = vmatpush1.msra.mxu0 0.0
    %823 = vmatprep.subr.mxu0 0.0
    %824 = vmatpush1.msra.mxu0 0.0
    %825 = vmatprep.subr.mxu0 0.0
    %826 = vmatpush1.msra.mxu0 0.0
    %827 = vmatprep.subr.mxu0 0.0
    %828 = vmatpush1.msra.mxu0 0.0
    %829 = vmatprep.subr.mxu0 0.0
    %830 = vmatpush1.msra.mxu0 0.0
    %831 = vmatprep.subr.mxu0 0.0
    %832 = vmatpush1.msra.mxu0 0.0
    %833 = vmatprep.subr.mxu0 0.0
    %834 = vmatpush1.msra.mxu0 0.0
    %835 = vmatprep.subr.mxu0 0.0
    %836 = vmatpush1.msra.mxu0 0.0
    %837 = vmatprep.subr.mxu0 0.0
    %838 = vmatpush1.msra.mxu0 0.0
    %839 = vmatprep.subr.mxu0 0.0
    %840 = vmatpush1.msra.mxu0 0.0
    %841 = vmatprep.subr.mxu0 0.0
    %842 = vmatpush1.msra.mxu0 0.0
    %843 = vmatprep.subr.mxu0 0.0
    %844 = vmatpush1.msra.mxu0 0.0
    %845 = vmatprep.subr.mxu0 0.0
    %846 = vmatpush1.msra.mxu0 0.0
    %847 = vmatprep.subr.mxu0 0.0
    %848 = vmatpush1.msra.mxu0 0.0
    %849 = vmatprep.subr.mxu0 0.0
    %850 = vmatpush1.msra.mxu0 0.0
    %851 = vmatprep.subr.mxu0 0.0
    %852 = vmatpush1.msra.mxu0 0.0
    %853 = vmatprep.subr.mxu0 0.0
    %854 = vmatpush1.msra.mxu0 0.0
    %855 = vmatprep.subr.mxu0 0.0
    %856 = vmatpush1.msra.mxu0 0.0
    %857 = vmatprep.subr.mxu0 0.0
    %858 = vmatpush1.msra.mxu0 0.0
    %859 = vmatprep.subr.mxu0 0.0
    %860 = vmatpush1.msra.mxu0 0.0
    %861 = vmatprep.subr.mxu0 0.0
    %862 = vmatpush1.msra.mxu0 0.0
    %863 = vmatprep.subr.mxu0 0.0
    %864 = vmatpush1.msra.mxu0 0.0
    %865 = vmatprep.subr.mxu0 0.0
    %866 = vmatpush1.msra.mxu0 0.0
    %867 = vmatprep.subr.mxu0 0.0
    %868 = vmatpush1.msra.mxu0 0.0
    %869 = vmatprep.subr.mxu0 0.0
    %870 = vmatpush1.msra.mxu0 0.0
    %871 = vmatprep.subr.mxu0 0.0
    %872 = vmatpush1.msra.mxu0 0.0
    %873 = vmatprep.mubr.f32.mxu0 0.0
    %874 = vmatmul.mubr.f32.gmra.mrb[0].mxu0 %v807
    %v875 = vpop.f32.mrb[0].mxu0
    %v876 = vadd.f32 0.0, %v875
    %v877 = vpop.f32.mrb[0].mxu0
    %878 = vdwg.mxu0
    %v879 = vadd.f32 %v806, %v876
    %v880 = vxor.u32 %v879, 2147483648
    %v881 = vmul.f32 %v880, 1.442695
    %v882 = vpow.pop %v881
    %v883 = vadd.f32 %v882, 1.0
    %v884 = vrcp.pop %v883
    %v885 = vmul.f32 1.0, %v884
    %v886 = vtanh.pop %v879
    %v887 = vmul.f32 %v885, %v792
    %889 = vrot.lane.b32.xlu0 %v886, 64
    %v890 = vpop.permute.xlu0 %889
    %v892 = vmul.f32 %v885, %v890
    %894 = vrot.lane.b32.xlu0 %v892, 32
    %v895 = vpop.permute.xlu0 %894
    %v897 = vadd.f32 %v887, %v895
    %v898 = vtanh.pop %v897
    %900 = vrot.lane.b32.xlu0 %v898, 64
    %v901 = vpop.permute.xlu0 %900
    %v903 = vmul.f32 %v885, %v901
    %905 = vrot.lane.b32.xlu0 %v903, 32
    %v906 = vpop.permute.xlu0 %905
    %s908 = scalar_lea.vmem [#allocation2], 10
    %909 = vst.msk [vmem:[%s908] sm:$0x3] %vm383, %v906
    %s910 = scalar_lea.vmem [#allocation3], 12
    %v911 = vld [vmem:[%s910] sm:$0x3]
    %v912 = vsel %vm276, %v906, 0
    %914 = vmatprep.subr.mxu0 0.0
    %915 = vmatpush1.msra.mxu0 %v269
    %916 = vmatprep.subr.mxu0 0.0
    %917 = vmatpush1.msra.mxu0 %v270
    %918 = vmatprep.subr.mxu0 0.0
    %919 = vmatpush1.msra.mxu0 %v271
    %920 = vmatprep.subr.mxu0 0.0
    %921 = vmatpush1.msra.mxu0 %v272
    %922 = vmatprep.subr.mxu0 0.0
    %923 = vmatpush1.msra.mxu0 0.0
    %924 = vmatprep.subr.mxu0 0.0
    %925 = vmatpush1.msra.mxu0 0.0
    %926 = vmatprep.subr.mxu0 0.0
    %927 = vmatpush1.msra.mxu0 0.0
    %928 = vmatprep.subr.mxu0 0.0
    %929 = vmatpush1.msra.mxu0 0.0
    %930 = vmatprep.subr.mxu0 0.0
    %931 = vmatpush1.msra.mxu0 0.0
    %932 = vmatprep.subr.mxu0 0.0
    %933 = vmatpush1.msra.mxu0 0.0
    %934 = vmatprep.subr.mxu0 0.0
    %935 = vmatpush1.msra.mxu0 0.0
    %936 = vmatprep.subr.mxu0 0.0
    %937 = vmatpush1.msra.mxu0 0.0
    %938 = vmatprep.subr.mxu0 0.0
    %939 = vmatpush1.msra.mxu0 0.0
    %940 = vmatprep.subr.mxu0 0.0
    %941 = vmatpush1.msra.mxu0 0.0
    %942 = vmatprep.subr.mxu0 0.0
    %943 = vmatpush1.msra.mxu0 0.0
    %944 = vmatprep.subr.mxu0 0.0
    %945 = vmatpush1.msra.mxu0 0.0
    %946 = vmatprep.subr.mxu0 0.0
    %947 = vmatpush1.msra.mxu0 0.0
    %948 = vmatprep.subr.mxu0 0.0
    %949 = vmatpush1.msra.mxu0 0.0
    %950 = vmatprep.subr.mxu0 0.0
    %951 = vmatpush1.msra.mxu0 0.0
    %952 = vmatprep.subr.mxu0 0.0
    %953 = vmatpush1.msra.mxu0 0.0
    %954 = vmatprep.subr.mxu0 0.0
    %955 = vmatpush1.msra.mxu0 0.0
    %956 = vmatprep.subr.mxu0 0.0
    %957 = vmatpush1.msra.mxu0 0.0
    %958 = vmatprep.subr.mxu0 0.0
    %959 = vmatpush1.msra.mxu0 0.0
    %960 = vmatprep.subr.mxu0 0.0
    %961 = vmatpush1.msra.mxu0 0.0
    %962 = vmatprep.subr.mxu0 0.0
    %963 = vmatpush1.msra.mxu0 0.0
    %964 = vmatprep.subr.mxu0 0.0
    %965 = vmatpush1.msra.mxu0 0.0
    %966 = vmatprep.subr.mxu0 0.0
    %967 = vmatpush1.msra.mxu0 0.0
    %968 = vmatprep.subr.mxu0 0.0
    %969 = vmatpush1.msra.mxu0 0.0
    %970 = vmatprep.subr.mxu0 0.0
    %971 = vmatpush1.msra.mxu0 0.0
    %972 = vmatprep.subr.mxu0 0.0
    %973 = vmatpush1.msra.mxu0 0.0
    %974 = vmatprep.subr.mxu0 0.0
    %975 = vmatpush1.msra.mxu0 0.0
    %976 = vmatprep.subr.mxu0 0.0
    %977 = vmatpush1.msra.mxu0 0.0
    %978 = vmatprep.mubr.f32.mxu0 0.0
    %979 = vmatmul.mubr.f32.gmra.mrb[0].mxu0 %v912
    %v980 = vpop.f32.mrb[0].mxu0
    %v981 = vadd.f32 0.0, %v980
    %v982 = vpop.f32.mrb[0].mxu0
    %983 = vdwg.mxu0
    %v984 = vadd.f32 %v911, %v981
    %v985 = vxor.u32 %v984, 2147483648
    %v986 = vmul.f32 %v985, 1.442695
    %v987 = vpow.pop %v986
    %v988 = vadd.f32 %v987, 1.0
    %v989 = vrcp.pop %v988
    %v990 = vmul.f32 1.0, %v989
    %v991 = vtanh.pop %v984
    %v992 = vmul.f32 %v990, %v897
    %994 = vrot.lane.b32.xlu0 %v991, 64
    %v995 = vpop.permute.xlu0 %994
    %v997 = vmul.f32 %v990, %v995
    %999 = vrot.lane.b32.xlu0 %v997, 32
    %v1000 = vpop.permute.xlu0 %999
    %v1002 = vadd.f32 %v992, %v1000
    %v1003 = vtanh.pop %v1002
    %1005 = vrot.lane.b32.xlu0 %v1003, 64
    %v1006 = vpop.permute.xlu0 %1005
    %v1008 = vmul.f32 %v990, %v1006
    %1010 = vrot.lane.b32.xlu0 %v1008, 32
    %v1011 = vpop.permute.xlu0 %1010
    %s1013 = scalar_lea.vmem [#allocation2], 12
    %1014 = vst.msk [vmem:[%s1013] sm:$0x3] %vm383, %v1011
    %s1015 = scalar_lea.vmem [#allocation3], 14
    %v1016 = vld [vmem:[%s1015] sm:$0x3]
    %v1017 = vsel %vm276, %v1011, 0
    %1019 = vmatprep.subr.mxu0 0.0
    %1020 = vmatpush1.msra.mxu0 %v269
    %1021 = vmatprep.subr.mxu0 0.0
    %1022 = vmatpush1.msra.mxu0 %v270
    %1023 = vmatprep.subr.mxu0 0.0
    %1024 = vmatpush1.msra.mxu0 %v271
    %1025 = vmatprep.subr.mxu0 0.0
    %1026 = vmatpush1.msra.mxu0 %v272
    %1027 = vmatprep.subr.mxu0 0.0
    %1028 = vmatpush1.msra.mxu0 0.0
    %1029 = vmatprep.subr.mxu0 0.0
    %1030 = vmatpush1.msra.mxu0 0.0
    %1031 = vmatprep.subr.mxu0 0.0
    %1032 = vmatpush1.msra.mxu0 0.0
    %1033 = vmatprep.subr.mxu0 0.0
    %1034 = vmatpush1.msra.mxu0 0.0
    %1035 = vmatprep.subr.mxu0 0.0
    %1036 = vmatpush1.msra.mxu0 0.0
    %1037 = vmatprep.subr.mxu0 0.0
    %1038 = vmatpush1.msra.mxu0 0.0
    %1039 = vmatprep.subr.mxu0 0.0
    %1040 = vmatpush1.msra.mxu0 0.0
    %1041 = vmatprep.subr.mxu0 0.0
    %1042 = vmatpush1.msra.mxu0 0.0
    %1043 = vmatprep.subr.mxu0 0.0
    %1044 = vmatpush1.msra.mxu0 0.0
    %1045 = vmatprep.subr.mxu0 0.0
    %1046 = vmatpush1.msra.mxu0 0.0
    %1047 = vmatprep.subr.mxu0 0.0
    %1048 = vmatpush1.msra.mxu0 0.0
    %1049 = vmatprep.subr.mxu0 0.0
    %1050 = vmatpush1.msra.mxu0 0.0
    %1051 = vmatprep.subr.mxu0 0.0
    %1052 = vmatpush1.msra.mxu0 0.0
    %1053 = vmatprep.subr.mxu0 0.0
    %1054 = vmatpush1.msra.mxu0 0.0
    %1055 = vmatprep.subr.mxu0 0.0
    %1056 = vmatpush1.msra.mxu0 0.0
    %1057 = vmatprep.subr.mxu0 0.0
    %1058 = vmatpush1.msra.mxu0 0.0
    %1059 = vmatprep.subr.mxu0 0.0
    %1060 = vmatpush1.msra.mxu0 0.0
    %1061 = vmatprep.subr.mxu0 0.0
    %1062 = vmatpush1.msra.mxu0 0.0
    %1063 = vmatprep.subr.mxu0 0.0
    %1064 = vmatpush1.msra.mxu0 0.0
    %1065 = vmatprep.subr.mxu0 0.0
    %1066 = vmatpush1.msra.mxu0 0.0
    %1067 = vmatprep.subr.mxu0 0.0
    %1068 = vmatpush1.msra.mxu0 0.0
    %1069 = vmatprep.subr.mxu0 0.0
    %1070 = vmatpush1.msra.mxu0 0.0
    %1071 = vmatprep.subr.mxu0 0.0
    %1072 = vmatpush1.msra.mxu0 0.0
    %1073 = vmatprep.subr.mxu0 0.0
    %1074 = vmatpush1.msra.mxu0 0.0
    %1075 = vmatprep.subr.mxu0 0.0
    %1076 = vmatpush1.msra.mxu0 0.0
    %1077 = vmatprep.subr.mxu0 0.0
    %1078 = vmatpush1.msra.mxu0 0.0
    %1079 = vmatprep.subr.mxu0 0.0
    %1080 = vmatpush1.msra.mxu0 0.0
    %1081 = vmatprep.subr.mxu0 0.0
    %1082 = vmatpush1.msra.mxu0 0.0
    %1083 = vmatprep.mubr.f32.mxu0 0.0
    %1084 = vmatmul.mubr.f32.gmra.mrb[0].mxu0 %v1017
    %v1085 = vpop.f32.mrb[0].mxu0
    %v1086 = vadd.f32 0.0, %v1085
    %v1087 = vpop.f32.mrb[0].mxu0
    %1088 = vdwg.mxu0
    %v1089 = vadd.f32 %v1016, %v1086
    %v1090 = vxor.u32 %v1089, 2147483648
    %v1091 = vmul.f32 %v1090, 1.442695
    %v1092 = vpow.pop %v1091
    %v1093 = vadd.f32 %v1092, 1.0
    %v1094 = vrcp.pop %v1093
    %v1095 = vmul.f32 1.0, %v1094
    %v1096 = vtanh.pop %v1089
    %v1097 = vmul.f32 %v1095, %v1002
    %1099 = vrot.lane.b32.xlu0 %v1096, 64
    %v1100 = vpop.permute.xlu0 %1099
    %v1102 = vmul.f32 %v1095, %v1100
    %1104 = vrot.lane.b32.xlu0 %v1102, 32
    %v1105 = vpop.permute.xlu0 %1104
    %v1107 = vadd.f32 %v1097, %v1105
    %v1108 = vtanh.pop %v1107
    %1110 = vrot.lane.b32.xlu0 %v1108, 64
    %v1111 = vpop.permute.xlu0 %1110
    %v1113 = vmul.f32 %v1095, %v1111
    %1115 = vrot.lane.b32.xlu0 %v1113, 32
    %v1116 = vpop.permute.xlu0 %1115
    %s1118 = scalar_lea.vmem [#allocation2], 14
    %1119 = vst.msk [vmem:[%s1118] sm:$0x3] %vm383, %v1116
    %1120 = vst.msk [vmem:[#allocation10] sm:$0x3] %vm383, %v1116
    %1122 = vrot.lane.b32.xlu0 %v1107, 96
    %v1123 = vpop.permute.xlu0 %1122
    %1125 = vst.msk [vmem:[#allocation11] sm:$0x3] %vm383, %v1123
    %v1126 = vld [vmem:[#allocation2] sm:$0x3]
    %v1127 = vld [vmem:[#allocation2 + $0x2] sm:$0x3]
    %v1128 = vld [vmem:[#allocation2 + $0x4] sm:$0x3]
    %v1129 = vld [vmem:[#allocation2 + $0x6] sm:$0x3]
    %v1130 = vld [vmem:[#allocation2 + $0x8] sm:$0x3]
    %v1131 = vld [vmem:[#allocation2 + $0xa] sm:$0x3]
    %v1132 = vld [vmem:[#allocation2 + $0xc] sm:$0x3]
    %v1133 = vld [vmem:[#allocation2 + $0xe] sm:$0x3]
    %v1134 = vld [vmem:[%s4] sm:$0xff]
    %v1135 = vld [vmem:[%s4 + $0x8] sm:$0xff]
    %v1136 = vld [vmem:[%s4 + $0x10] sm:$0xff]
    %v1137 = vld [vmem:[%s4 + $0x18] sm:$0xff]
    %s1138 = scalar_lea.vmem [#allocation9], 1
    %v1139 = vld [vmem:[%s1138] sm:$0x1]
    %v1141 = vlaneseq
    %v1142 = vshrl.u32 %v1141, 7
    %v1143 = vsub.s32 0, %v1142
    %v1144 = vrot.slane %v1139, %v1143
    %v1154 = vcombine.low %v1126, %v1127
    %v1155 = vcombine.low %v1128, %v1129
    %v1157 = vunpack.c.l.s4 1983009808
    %v1158 = vunpack.c.0.s8 %v1157
    %v1159 = vlaneseq
    %v1160 = vshrl.u32 %v1159, 7
    %v1161 = vsub.s32 %v1158, %v1160
    %v1162 = vrot.slane %v1154, %v1161
    %v1164 = vunpack.c.l.s4 1983009808
    %v1165 = vunpack.c.0.s8 %v1164
    %v1166 = vlaneseq
    %v1167 = vshrl.u32 %v1166, 7
    %v1168 = vsub.s32 %v1165, %v1167
    %v1169 = vrot.slane %v1155, %v1168
    %v1170 = vcombine.low %v1162, %v1169
    %v1171 = vcombine.low %v1130, %v1131
    %v1172 = vcombine.low %v1132, %v1133
    %v1174 = vunpack.c.l.s4 1983009808
    %v1175 = vunpack.c.0.s8 %v1174
    %v1176 = vlaneseq
    %v1177 = vshrl.u32 %v1176, 7
    %v1178 = vsub.s32 %v1175, %v1177
    %v1179 = vrot.slane %v1171, %v1178
    %v1181 = vunpack.c.l.s4 1983009808
    %v1182 = vunpack.c.0.s8 %v1181
    %v1183 = vlaneseq
    %v1184 = vshrl.u32 %v1183, 7
    %v1185 = vsub.s32 %v1182, %v1184
    %v1186 = vrot.slane %v1172, %v1185
    %v1187 = vcombine.low %v1179, %v1186
    %v1188 = vsel %vm276, %v1170, 0
    %v1190 = vsel %vm276, %v1187, 0
    %1192 = vmatprep.subr.mxu0 0.0
    %1193 = vmatpush1.msra.mxu0 %v1134
    %1194 = vmatprep.subr.mxu0 0.0
    %1195 = vmatpush1.msra.mxu0 %v1135
    %1196 = vmatprep.subr.mxu0 0.0
    %1197 = vmatpush1.msra.mxu0 %v1136
    %1198 = vmatprep.subr.mxu0 0.0
    %1199 = vmatpush1.msra.mxu0 %v1137
    %1200 = vmatprep.subr.mxu0 0.0
    %1201 = vmatpush1.msra.mxu0 0.0
    %1202 = vmatprep.subr.mxu0 0.0
    %1203 = vmatpush1.msra.mxu0 0.0
    %1204 = vmatprep.subr.mxu0 0.0
    %1205 = vmatpush1.msra.mxu0 0.0
    %1206 = vmatprep.subr.mxu0 0.0
    %1207 = vmatpush1.msra.mxu0 0.0
    %1208 = vmatprep.subr.mxu0 0.0
    %1209 = vmatpush1.msra.mxu0 0.0
    %1210 = vmatprep.subr.mxu0 0.0
    %1211 = vmatpush1.msra.mxu0 0.0
    %1212 = vmatprep.subr.mxu0 0.0
    %1213 = vmatpush1.msra.mxu0 0.0
    %1214 = vmatprep.subr.mxu0 0.0
    %1215 = vmatpush1.msra.mxu0 0.0
    %1216 = vmatprep.subr.mxu0 0.0
    %1217 = vmatpush1.msra.mxu0 0.0
    %1218 = vmatprep.subr.mxu0 0.0
    %1219 = vmatpush1.msra.mxu0 0.0
    %1220 = vmatprep.subr.mxu0 0.0
    %1221 = vmatpush1.msra.mxu0 0.0
    %1222 = vmatprep.subr.mxu0 0.0
    %1223 = vmatpush1.msra.mxu0 0.0
    %1224 = vmatprep.subr.mxu0 0.0
    %1225 = vmatpush1.msra.mxu0 0.0
    %1226 = vmatprep.subr.mxu0 0.0
    %1227 = vmatpush1.msra.mxu0 0.0
    %1228 = vmatprep.subr.mxu0 0.0
    %1229 = vmatpush1.msra.mxu0 0.0
    %1230 = vmatprep.subr.mxu0 0.0
    %1231 = vmatpush1.msra.mxu0 0.0
    %1232 = vmatprep.subr.mxu0 0.0
    %1233 = vmatpush1.msra.mxu0 0.0
    %1234 = vmatprep.subr.mxu0 0.0
    %1235 = vmatpush1.msra.mxu0 0.0
    %1236 = vmatprep.subr.mxu0 0.0
    %1237 = vmatpush1.msra.mxu0 0.0
    %1238 = vmatprep.subr.mxu0 0.0
    %1239 = vmatpush1.msra.mxu0 0.0
    %1240 = vmatprep.subr.mxu0 0.0
    %1241 = vmatpush1.msra.mxu0 0.0
    %1242 = vmatprep.subr.mxu0 0.0
    %1243 = vmatpush1.msra.mxu0 0.0
    %1244 = vmatprep.subr.mxu0 0.0
    %1245 = vmatpush1.msra.mxu0 0.0
    %1246 = vmatprep.subr.mxu0 0.0
    %1247 = vmatpush1.msra.mxu0 0.0
    %1248 = vmatprep.subr.mxu0 0.0
    %1249 = vmatpush1.msra.mxu0 0.0
    %1250 = vmatprep.subr.mxu0 0.0
    %1251 = vmatpush1.msra.mxu0 0.0
    %1252 = vmatprep.subr.mxu0 0.0
    %1253 = vmatpush1.msra.mxu0 0.0
    %1254 = vmatprep.subr.mxu0 0.0
    %1255 = vmatpush1.msra.mxu0 0.0
    %1256 = vmatprep.mubr.f32.mxu0 0.0
    %1257 = vmatmul.mubr.f32.gmra.mrb[0].mxu0 %v1188
    %v1258 = vpop.f32.mrb[0].mxu0
    %v1259 = vadd.f32 %v1144, %v1258
    %v1260 = vpop.f32.mrb[0].mxu0
    %1261 = vmatprep.mubr.f32.mxu0 0.0
    %1262 = vmatmul.mubr.f32.gmra.mrb[0].mxu0 %v1190
    %v1263 = vpop.f32.mrb[0].mxu0
    %v1264 = vadd.f32 %v1144, %v1263
    %v1265 = vpop.f32.mrb[0].mxu0
    %1266 = vdwg.mxu0
    %v1269 = vcombine.high %v1259, %v1259
    %v1271 = vunpack.c.l.s4 1983009808
    %v1272 = vunpack.c.0.s8 %v1271
    %v1273 = vlaneseq
    %v1274 = vshrl.u32 %v1273, 7
    %v1275 = vsub.s32 %v1272, %v1274
    %v1276 = vrot.slane %v1259, %v1275
    %v1278 = vunpack.c.l.s4 1983009808
    %v1279 = vunpack.c.0.s8 %v1278
    %v1280 = vlaneseq
    %v1281 = vshrl.u32 %v1280, 7
    %v1282 = vsub.s32 %v1279, %v1281
    %v1283 = vrot.slane %v1269, %v1282
    %v1284 = vcombine.high %v1276, %v1276
    %v1285 = vcombine.high %v1283, %v1283
    %v1286 = vcombine.high %v1264, %v1264
    %v1288 = vunpack.c.l.s4 1983009808
    %v1289 = vunpack.c.0.s8 %v1288
    %v1290 = vlaneseq
    %v1291 = vshrl.u32 %v1290, 7
    %v1292 = vsub.s32 %v1289, %v1291
    %v1293 = vrot.slane %v1264, %v1292
    %v1295 = vunpack.c.l.s4 1983009808
    %v1296 = vunpack.c.0.s8 %v1295
    %v1297 = vlaneseq
    %v1298 = vshrl.u32 %v1297, 7
    %v1299 = vsub.s32 %v1296, %v1298
    %v1300 = vrot.slane %v1286, %v1299
    %v1301 = vcombine.high %v1293, %v1293
    %v1302 = vcombine.high %v1300, %v1300
    %1311 = vst [vmem:[#allocation3] sm:$0x3] %v1276
    %1312 = vst [vmem:[#allocation3 + $0x2] sm:$0x3] %v1284
    %1313 = vst [vmem:[#allocation3 + $0x4] sm:$0x3] %v1283
    %1314 = vst [vmem:[#allocation3 + $0x6] sm:$0x3] %v1285
    %1315 = vst [vmem:[#allocation3 + $0x8] sm:$0x3] %v1293
    %1316 = vst [vmem:[#allocation3 + $0xa] sm:$0x3] %v1301
    %1317 = vst [vmem:[#allocation3 + $0xc] sm:$0x3] %v1300
    %1318 = vst [vmem:[#allocation3 + $0xe] sm:$0x3] %v1302
    %s1319 = scalar_lea.vmem %s5, 32
    %v1320 = vld [vmem:[%s1319] sm:$0xff]
    %v1321 = vld [vmem:[%s1319 + $0x8] sm:$0xff]
    %v1322 = vld [vmem:[%s1319 + $0x10] sm:$0xff]
    %v1323 = vld [vmem:[%s1319 + $0x18] sm:$0xff]
    %s1324 = scalar_lea.vmem [#allocation4], 2
    %v1325 = vld [vmem:[%s1324] sm:$0x3]
    %s1326 = scalar_lea.vmem [#allocation7], 2
    %v1327 = vld [vmem:[%s1326] sm:$0x3]
    %v1328 = vld [vmem:[#allocation3] sm:$0x3]
    %v1330 = vsel %vm276, %v1325, 0
    %1332 = vmatprep.subr.mxu0 0.0
    %1333 = vmatpush1.msra.mxu0 %v1320
    %1334 = vmatprep.subr.mxu0 0.0
    %1335 = vmatpush1.msra.mxu0 %v1321
    %1336 = vmatprep.subr.mxu0 0.0
    %1337 = vmatpush1.msra.mxu0 %v1322
    %1338 = vmatprep.subr.mxu0 0.0
    %1339 = vmatpush1.msra.mxu0 %v1323
    %1340 = vmatprep.subr.mxu0 0.0
    %1341 = vmatpush1.msra.mxu0 0.0
    %1342 = vmatprep.subr.mxu0 0.0
    %1343 = vmatpush1.msra.mxu0 0.0
    %1344 = vmatprep.subr.mxu0 0.0
    %1345 = vmatpush1.msra.mxu0 0.0
    %1346 = vmatprep.subr.mxu0 0.0
    %1347 = vmatpush1.msra.mxu0 0.0
    %1348 = vmatprep.subr.mxu0 0.0
    %1349 = vmatpush1.msra.mxu0 0.0
    %1350 = vmatprep.subr.mxu0 0.0
    %1351 = vmatpush1.msra.mxu0 0.0
    %1352 = vmatprep.subr.mxu0 0.0
    %1353 = vmatpush1.msra.mxu0 0.0
    %1354 = vmatprep.subr.mxu0 0.0
    %1355 = vmatpush1.msra.mxu0 0.0
    %1356 = vmatprep.subr.mxu0 0.0
    %1357 = vmatpush1.msra.mxu0 0.0
    %1358 = vmatprep.subr.mxu0 0.0
    %1359 = vmatpush1.msra.mxu0 0.0
    %1360 = vmatprep.subr.mxu0 0.0
    %1361 = vmatpush1.msra.mxu0 0.0
    %1362 = vmatprep.subr.mxu0 0.0
    %1363 = vmatpush1.msra.mxu0 0.0
    %1364 = vmatprep.subr.mxu0 0.0
    %1365 = vmatpush1.msra.mxu0 0.0
    %1366 = vmatprep.subr.mxu0 0.0
    %1367 = vmatpush1.msra.mxu0 0.0
    %1368 = vmatprep.subr.mxu0 0.0
    %1369 = vmatpush1.msra.mxu0 0.0
    %1370 = vmatprep.subr.mxu0 0.0
    %1371 = vmatpush1.msra.mxu0 0.0
    %1372 = vmatprep.subr.mxu0 0.0
    %1373 = vmatpush1.msra.mxu0 0.0
    %1374 = vmatprep.subr.mxu0 0.0
    %1375 = vmatpush1.msra.mxu0 0.0
    %1376 = vmatprep.subr.mxu0 0.0
    %1377 = vmatpush1.msra.mxu0 0.0
    %1378 = vmatprep.subr.mxu0 0.0
    %1379 = vmatpush1.msra.mxu0 0.0
    %1380 = vmatprep.subr.mxu0 0.0
    %1381 = vmatpush1.msra.mxu0 0.0
    %1382 = vmatprep.subr.mxu0 0.0
    %1383 = vmatpush1.msra.mxu0 0.0
    %1384 = vmatprep.subr.mxu0 0.0
    %1385 = vmatpush1.msra.mxu0 0.0
    %1386 = vmatprep.subr.mxu0 0.0
    %1387 = vmatpush1.msra.mxu0 0.0
    %1388 = vmatprep.subr.mxu0 0.0
    %1389 = vmatpush1.msra.mxu0 0.0
    %1390 = vmatprep.subr.mxu0 0.0
    %1391 = vmatpush1.msra.mxu0 0.0
    %1392 = vmatprep.subr.mxu0 0.0
    %1393 = vmatpush1.msra.mxu0 0.0
    %1394 = vmatprep.subr.mxu0 0.0
    %1395 = vmatpush1.msra.mxu0 0.0
    %1396 = vmatprep.mubr.f32.mxu0 0.0
    %1397 = vmatmul.mubr.f32.gmra.mrb[0].mxu0 %v1330
    %v1398 = vpop.f32.mrb[0].mxu0
    %v1399 = vadd.f32 0.0, %v1398
    %v1400 = vpop.f32.mrb[0].mxu0
    %1401 = vdwg.mxu0
    %v1402 = vadd.f32 %v1328, %v1399
    %v1403 = vxor.u32 %v1402, 2147483648
    %v1404 = vmul.f32 %v1403, 1.442695
    %v1405 = vpow.pop %v1404
    %v1406 = vadd.f32 %v1405, 1.0
    %v1407 = vrcp.pop %v1406
    %v1408 = vmul.f32 1.0, %v1407
    %v1409 = vtanh.pop %v1402
    %1411 = vrot.lane.b32.xlu0 %v1327, 32
    %v1412 = vpop.permute.xlu0 %1411
    %v1414 = vmul.f32 %v1408, %v1412
    %1416 = vrot.lane.b32.xlu0 %v1409, 64
    %v1417 = vpop.permute.xlu0 %1416
    %v1419 = vmul.f32 %v1408, %v1417
    %1421 = vrot.lane.b32.xlu0 %v1419, 32
    %v1422 = vpop.permute.xlu0 %1421
    %v1424 = vadd.f32 %v1414, %v1422
    %v1425 = vtanh.pop %v1424
    %1427 = vrot.lane.b32.xlu0 %v1425, 64
    %v1428 = vpop.permute.xlu0 %1427
    %v1430 = vmul.f32 %v1408, %v1428
    %1432 = vrot.lane.b32.xlu0 %v1430, 32
    %v1433 = vpop.permute.xlu0 %1432
    %1435 = vst.msk [vmem:[#allocation2] sm:$0x3] %vm383, %v1433
    %v1436 = vld [vmem:[%s385] sm:$0x3]
    %v1437 = vsel %vm276, %v1433, 0
    %1439 = vmatprep.subr.mxu0 0.0
    %1440 = vmatpush1.msra.mxu0 %v1320
    %1441 = vmatprep.subr.mxu0 0.0
    %1442 = vmatpush1.msra.mxu0 %v1321
    %1443 = vmatprep.subr.mxu0 0.0
    %1444 = vmatpush1.msra.mxu0 %v1322
    %1445 = vmatprep.subr.mxu0 0.0
    %1446 = vmatpush1.msra.mxu0 %v1323
    %1447 = vmatprep.subr.mxu0 0.0
    %1448 = vmatpush1.msra.mxu0 0.0
    %1449 = vmatprep.subr.mxu0 0.0
    %1450 = vmatpush1.msra.mxu0 0.0
    %1451 = vmatprep.subr.mxu0 0.0
    %1452 = vmatpush1.msra.mxu0 0.0
    %1453 = vmatprep.subr.mxu0 0.0
    %1454 = vmatpush1.msra.mxu0 0.0
    %1455 = vmatprep.subr.mxu0 0.0
    %1456 = vmatpush1.msra.mxu0 0.0
    %1457 = vmatprep.subr.mxu0 0.0
    %1458 = vmatpush1.msra.mxu0 0.0
    %1459 = vmatprep.subr.mxu0 0.0
    %1460 = vmatpush1.msra.mxu0 0.0
    %1461 = vmatprep.subr.mxu0 0.0
    %1462 = vmatpush1.msra.mxu0 0.0
    %1463 = vmatprep.subr.mxu0 0.0
    %1464 = vmatpush1.msra.mxu0 0.0
    %1465 = vmatprep.subr.mxu0 0.0
    %1466 = vmatpush1.msra.mxu0 0.0
    %1467 = vmatprep.subr.mxu0 0.0
    %1468 = vmatpush1.msra.mxu0 0.0
    %1469 = vmatprep.subr.mxu0 0.0
    %1470 = vmatpush1.msra.mxu0 0.0
    %1471 = vmatprep.subr.mxu0 0.0
    %1472 = vmatpush1.msra.mxu0 0.0
    %1473 = vmatprep.subr.mxu0 0.0
    %1474 = vmatpush1.msra.mxu0 0.0
    %1475 = vmatprep.subr.mxu0 0.0
    %1476 = vmatpush1.msra.mxu0 0.0
    %1477 = vmatprep.subr.mxu0 0.0
    %1478 = vmatpush1.msra.mxu0 0.0
    %1479 = vmatprep.subr.mxu0 0.0
    %1480 = vmatpush1.msra.mxu0 0.0
    %1481 = vmatprep.subr.mxu0 0.0
    %1482 = vmatpush1.msra.mxu0 0.0
    %1483 = vmatprep.subr.mxu0 0.0
    %1484 = vmatpush1.msra.mxu0 0.0
    %1485 = vmatprep.subr.mxu0 0.0
    %1486 = vmatpush1.msra.mxu0 0.0
    %1487 = vmatprep.subr.mxu0 0.0
    %1488 = vmatpush1.msra.mxu0 0.0
    %1489 = vmatprep.subr.mxu0 0.0
    %1490 = vmatpush1.msra.mxu0 0.0
    %1491 = vmatprep.subr.mxu0 0.0
    %1492 = vmatpush1.msra.mxu0 0.0
    %1493 = vmatprep.subr.mxu0 0.0
    %1494 = vmatpush1.msra.mxu0 0.0
    %1495 = vmatprep.subr.mxu0 0.0
    %1496 = vmatpush1.msra.mxu0 0.0
    %1497 = vmatprep.subr.mxu0 0.0
    %1498 = vmatpush1.msra.mxu0 0.0
    %1499 = vmatprep.subr.mxu0 0.0
    %1500 = vmatpush1.msra.mxu0 0.0
    %1501 = vmatprep.subr.mxu0 0.0
    %1502 = vmatpush1.msra.mxu0 0.0
    %1503 = vmatprep.mubr.f32.mxu0 0.0
    %1504 = vmatmul.mubr.f32.gmra.mrb[0].mxu0 %v1437
    %v1505 = vpop.f32.mrb[0].mxu0
    %v1506 = vadd.f32 0.0, %v1505
    %v1507 = vpop.f32.mrb[0].mxu0
    %1508 = vdwg.mxu0
    %v1509 = vadd.f32 %v1436, %v1506
    %v1510 = vxor.u32 %v1509, 2147483648
    %v1511 = vmul.f32 %v1510, 1.442695
    %v1512 = vpow.pop %v1511
    %v1513 = vadd.f32 %v1512, 1.0
    %v1514 = vrcp.pop %v1513
    %v1515 = vmul.f32 1.0, %v1514
    %v1516 = vtanh.pop %v1509
    %v1517 = vmul.f32 %v1515, %v1424
    %1519 = vrot.lane.b32.xlu0 %v1516, 64
    %v1520 = vpop.permute.xlu0 %1519
    %v1522 = vmul.f32 %v1515, %v1520
    %1524 = vrot.lane.b32.xlu0 %v1522, 32
    %v1525 = vpop.permute.xlu0 %1524
    %v1527 = vadd.f32 %v1517, %v1525
    %v1528 = vtanh.pop %v1527
    %1530 = vrot.lane.b32.xlu0 %v1528, 64
    %v1531 = vpop.permute.xlu0 %1530
    %v1533 = vmul.f32 %v1515, %v1531
    %1535 = vrot.lane.b32.xlu0 %v1533, 32
    %v1536 = vpop.permute.xlu0 %1535
    %1538 = vst.msk [vmem:[%s488] sm:$0x3] %vm383, %v1536
    %v1539 = vld [vmem:[%s490] sm:$0x3]
    %v1540 = vsel %vm276, %v1536, 0
    %1542 = vmatprep.subr.mxu0 0.0
    %1543 = vmatpush1.msra.mxu0 %v1320
    %1544 = vmatprep.subr.mxu0 0.0
    %1545 = vmatpush1.msra.mxu0 %v1321
    %1546 = vmatprep.subr.mxu0 0.0
    %1547 = vmatpush1.msra.mxu0 %v1322
    %1548 = vmatprep.subr.mxu0 0.0
    %1549 = vmatpush1.msra.mxu0 %v1323
    %1550 = vmatprep.subr.mxu0 0.0
    %1551 = vmatpush1.msra.mxu0 0.0
    %1552 = vmatprep.subr.mxu0 0.0
    %1553 = vmatpush1.msra.mxu0 0.0
    %1554 = vmatprep.subr.mxu0 0.0
    %1555 = vmatpush1.msra.mxu0 0.0
    %1556 = vmatprep.subr.mxu0 0.0
    %1557 = vmatpush1.msra.mxu0 0.0
    %1558 = vmatprep.subr.mxu0 0.0
    %1559 = vmatpush1.msra.mxu0 0.0
    %1560 = vmatprep.subr.mxu0 0.0
    %1561 = vmatpush1.msra.mxu0 0.0
    %1562 = vmatprep.subr.mxu0 0.0
    %1563 = vmatpush1.msra.mxu0 0.0
    %1564 = vmatprep.subr.mxu0 0.0
    %1565 = vmatpush1.msra.mxu0 0.0
    %1566 = vmatprep.subr.mxu0 0.0
    %1567 = vmatpush1.msra.mxu0 0.0
    %1568 = vmatprep.subr.mxu0 0.0
    %1569 = vmatpush1.msra.mxu0 0.0
    %1570 = vmatprep.subr.mxu0 0.0
    %1571 = vmatpush1.msra.mxu0 0.0
    %1572 = vmatprep.subr.mxu0 0.0
    %1573 = vmatpush1.msra.mxu0 0.0
    %1574 = vmatprep.subr.mxu0 0.0
    %1575 = vmatpush1.msra.mxu0 0.0
    %1576 = vmatprep.subr.mxu0 0.0
    %1577 = vmatpush1.msra.mxu0 0.0
    %1578 = vmatprep.subr.mxu0 0.0
    %1579 = vmatpush1.msra.mxu0 0.0
    %1580 = vmatprep.subr.mxu0 0.0
    %1581 = vmatpush1.msra.mxu0 0.0
    %1582 = vmatprep.subr.mxu0 0.0
    %1583 = vmatpush1.msra.mxu0 0.0
    %1584 = vmatprep.subr.mxu0 0.0
    %1585 = vmatpush1.msra.mxu0 0.0
    %1586 = vmatprep.subr.mxu0 0.0
    %1587 = vmatpush1.msra.mxu0 0.0
    %1588 = vmatprep.subr.mxu0 0.0
    %1589 = vmatpush1.msra.mxu0 0.0
    %1590 = vmatprep.subr.mxu0 0.0
    %1591 = vmatpush1.msra.mxu0 0.0
    %1592 = vmatprep.subr.mxu0 0.0
    %1593 = vmatpush1.msra.mxu0 0.0
    %1594 = vmatprep.subr.mxu0 0.0
    %1595 = vmatpush1.msra.mxu0 0.0
    %1596 = vmatprep.subr.mxu0 0.0
    %1597 = vmatpush1.msra.mxu0 0.0
    %1598 = vmatprep.subr.mxu0 0.0
    %1599 = vmatpush1.msra.mxu0 0.0
    %1600 = vmatprep.subr.mxu0 0.0
    %1601 = vmatpush1.msra.mxu0 0.0
    %1602 = vmatprep.subr.mxu0 0.0
    %1603 = vmatpush1.msra.mxu0 0.0
    %1604 = vmatprep.subr.mxu0 0.0
    %1605 = vmatpush1.msra.mxu0 0.0
    %1606 = vmatprep.mubr.f32.mxu0 0.0
    %1607 = vmatmul.mubr.f32.gmra.mrb[0].mxu0 %v1540
    %v1608 = vpop.f32.mrb[0].mxu0
    %v1609 = vadd.f32 0.0, %v1608
    %v1610 = vpop.f32.mrb[0].mxu0
    %1611 = vdwg.mxu0
    %v1612 = vadd.f32 %v1539, %v1609
    %v1613 = vxor.u32 %v1612, 2147483648
    %v1614 = vmul.f32 %v1613, 1.442695
    %v1615 = vpow.pop %v1614
    %v1616 = vadd.f32 %v1615, 1.0
    %v1617 = vrcp.pop %v1616
    %v1618 = vmul.f32 1.0, %v1617
    %v1619 = vtanh.pop %v1612
    %v1620 = vmul.f32 %v1618, %v1527
    %1622 = vrot.lane.b32.xlu0 %v1619, 64
    %v1623 = vpop.permute.xlu0 %1622
    %v1625 = vmul.f32 %v1618, %v1623
    %1627 = vrot.lane.b32.xlu0 %v1625, 32
    %v1628 = vpop.permute.xlu0 %1627
    %v1630 = vadd.f32 %v1620, %v1628
    %v1631 = vtanh.pop %v1630
    %1633 = vrot.lane.b32.xlu0 %v1631, 64
    %v1634 = vpop.permute.xlu0 %1633
    %v1636 = vmul.f32 %v1618, %v1634
    %1638 = vrot.lane.b32.xlu0 %v1636, 32
    %v1639 = vpop.permute.xlu0 %1638
    %1641 = vst.msk [vmem:[%s593] sm:$0x3] %vm383, %v1639
    %v1642 = vld [vmem:[%s595] sm:$0x3]
    %v1643 = vsel %vm276, %v1639, 0
    %1645 = vmatprep.subr.mxu0 0.0
    %1646 = vmatpush1.msra.mxu0 %v1320
    %1647 = vmatprep.subr.mxu0 0.0
    %1648 = vmatpush1.msra.mxu0 %v1321
    %1649 = vmatprep.subr.mxu0 0.0
    %1650 = vmatpush1.msra.mxu0 %v1322
    %1651 = vmatprep.subr.mxu0 0.0
    %1652 = vmatpush1.msra.mxu0 %v1323
    %1653 = vmatprep.subr.mxu0 0.0
    %1654 = vmatpush1.msra.mxu0 0.0
    %1655 = vmatprep.subr.mxu0 0.0
    %1656 = vmatpush1.msra.mxu0 0.0
    %1657 = vmatprep.subr.mxu0 0.0
    %1658 = vmatpush1.msra.mxu0 0.0
    %1659 = vmatprep.subr.mxu0 0.0
    %1660 = vmatpush1.msra.mxu0 0.0
    %1661 = vmatprep.subr.mxu0 0.0
    %1662 = vmatpush1.msra.mxu0 0.0
    %1663 = vmatprep.subr.mxu0 0.0
    %1664 = vmatpush1.msra.mxu0 0.0
    %1665 = vmatprep.subr.mxu0 0.0
    %1666 = vmatpush1.msra.mxu0 0.0
    %1667 = vmatprep.subr.mxu0 0.0
    %1668 = vmatpush1.msra.mxu0 0.0
    %1669 = vmatprep.subr.mxu0 0.0
    %1670 = vmatpush1.msra.mxu0 0.0
    %1671 = vmatprep.subr.mxu0 0.0
    %1672 = vmatpush1.msra.mxu0 0.0
    %1673 = vmatprep.subr.mxu0 0.0
    %1674 = vmatpush1.msra.mxu0 0.0
    %1675 = vmatprep.subr.mxu0 0.0
    %1676 = vmatpush1.msra.mxu0 0.0
    %1677 = vmatprep.subr.mxu0 0.0
    %1678 = vmatpush1.msra.mxu0 0.0
    %1679 = vmatprep.subr.mxu0 0.0
    %1680 = vmatpush1.msra.mxu0 0.0
    %1681 = vmatprep.subr.mxu0 0.0
    %1682 = vmatpush1.msra.mxu0 0.0
    %1683 = vmatprep.subr.mxu0 0.0
    %1684 = vmatpush1.msra.mxu0 0.0
    %1685 = vmatprep.subr.mxu0 0.0
    %1686 = vmatpush1.msra.mxu0 0.0
    %1687 = vmatprep.subr.mxu0 0.0
    %1688 = vmatpush1.msra.mxu0 0.0
    %1689 = vmatprep.subr.mxu0 0.0
    %1690 = vmatpush1.msra.mxu0 0.0
    %1691 = vmatprep.subr.mxu0 0.0
    %1692 = vmatpush1.msra.mxu0 0.0
    %1693 = vmatprep.subr.mxu0 0.0
    %1694 = vmatpush1.msra.mxu0 0.0
    %1695 = vmatprep.subr.mxu0 0.0
    %1696 = vmatpush1.msra.mxu0 0.0
    %1697 = vmatprep.subr.mxu0 0.0
    %1698 = vmatpush1.msra.mxu0 0.0
    %1699 = vmatprep.subr.mxu0 0.0
    %1700 = vmatpush1.msra.mxu0 0.0
    %1701 = vmatprep.subr.mxu0 0.0
    %1702 = vmatpush1.msra.mxu0 0.0
    %1703 = vmatprep.subr.mxu0 0.0
    %1704 = vmatpush1.msra.mxu0 0.0
    %1705 = vmatprep.subr.mxu0 0.0
    %1706 = vmatpush1.msra.mxu0 0.0
    %1707 = vmatprep.subr.mxu0 0.0
    %1708 = vmatpush1.msra.mxu0 0.0
    %1709 = vmatprep.mubr.f32.mxu0 0.0
    %1710 = vmatmul.mubr.f32.gmra.mrb[0].mxu0 %v1643
    %v1711 = vpop.f32.mrb[0].mxu0
    %v1712 = vadd.f32 0.0, %v1711
    %v1713 = vpop.f32.mrb[0].mxu0
    %1714 = vdwg.mxu0
    %v1715 = vadd.f32 %v1642, %v1712
    %v1716 = vxor.u32 %v1715, 2147483648
    %v1717 = vmul.f32 %v1716, 1.442695
    %v1718 = vpow.pop %v1717
    %v1719 = vadd.f32 %v1718, 1.0
    %v1720 = vrcp.pop %v1719
    %v1721 = vmul.f32 1.0, %v1720
    %v1722 = vtanh.pop %v1715
    %v1723 = vmul.f32 %v1721, %v1630
    %1725 = vrot.lane.b32.xlu0 %v1722, 64
    %v1726 = vpop.permute.xlu0 %1725
    %v1728 = vmul.f32 %v1721, %v1726
    %1730 = vrot.lane.b32.xlu0 %v1728, 32
    %v1731 = vpop.permute.xlu0 %1730
    %v1733 = vadd.f32 %v1723, %v1731
    %v1734 = vtanh.pop %v1733
    %1736 = vrot.lane.b32.xlu0 %v1734, 64
    %v1737 = vpop.permute.xlu0 %1736
    %v1739 = vmul.f32 %v1721, %v1737
    %1741 = vrot.lane.b32.xlu0 %v1739, 32
    %v1742 = vpop.permute.xlu0 %1741
    %1744 = vst.msk [vmem:[%s698] sm:$0x3] %vm383, %v1742
    %v1745 = vld [vmem:[%s700] sm:$0x3]
    %v1746 = vsel %vm276, %v1742, 0
    %1748 = vmatprep.subr.mxu0 0.0
    %1749 = vmatpush1.msra.mxu0 %v1320
    %1750 = vmatprep.subr.mxu0 0.0
    %1751 = vmatpush1.msra.mxu0 %v1321
    %1752 = vmatprep.subr.mxu0 0.0
    %1753 = vmatpush1.msra.mxu0 %v1322
    %1754 = vmatprep.subr.mxu0 0.0
    %1755 = vmatpush1.msra.mxu0 %v1323
    %1756 = vmatprep.subr.mxu0 0.0
    %1757 = vmatpush1.msra.mxu0 0.0
    %1758 = vmatprep.subr.mxu0 0.0
    %1759 = vmatpush1.msra.mxu0 0.0
    %1760 = vmatprep.subr.mxu0 0.0
    %1761 = vmatpush1.msra.mxu0 0.0
    %1762 = vmatprep.subr.mxu0 0.0
    %1763 = vmatpush1.msra.mxu0 0.0
    %1764 = vmatprep.subr.mxu0 0.0
    %1765 = vmatpush1.msra.mxu0 0.0
    %1766 = vmatprep.subr.mxu0 0.0
    %1767 = vmatpush1.msra.mxu0 0.0
    %1768 = vmatprep.subr.mxu0 0.0
    %1769 = vmatpush1.msra.mxu0 0.0
    %1770 = vmatprep.subr.mxu0 0.0
    %1771 = vmatpush1.msra.mxu0 0.0
    %1772 = vmatprep.subr.mxu0 0.0
    %1773 = vmatpush1.msra.mxu0 0.0
    %1774 = vmatprep.subr.mxu0 0.0
    %1775 = vmatpush1.msra.mxu0 0.0
    %1776 = vmatprep.subr.mxu0 0.0
    %1777 = vmatpush1.msra.mxu0 0.0
    %1778 = vmatprep.subr.mxu0 0.0
    %1779 = vmatpush1.msra.mxu0 0.0
    %1780 = vmatprep.subr.mxu0 0.0
    %1781 = vmatpush1.msra.mxu0 0.0
    %1782 = vmatprep.subr.mxu0 0.0
    %1783 = vmatpush1.msra.mxu0 0.0
    %1784 = vmatprep.subr.mxu0 0.0
    %1785 = vmatpush1.msra.mxu0 0.0
    %1786 = vmatprep.subr.mxu0 0.0
    %1787 = vmatpush1.msra.mxu0 0.0
    %1788 = vmatprep.subr.mxu0 0.0
    %1789 = vmatpush1.msra.mxu0 0.0
    %1790 = vmatprep.subr.mxu0 0.0
    %1791 = vmatpush1.msra.mxu0 0.0
    %1792 = vmatprep.subr.mxu0 0.0
    %1793 = vmatpush1.msra.mxu0 0.0
    %1794 = vmatprep.subr.mxu0 0.0
    %1795 = vmatpush1.msra.mxu0 0.0
    %1796 = vmatprep.subr.mxu0 0.0
    %1797 = vmatpush1.msra.mxu0 0.0
    %1798 = vmatprep.subr.mxu0 0.0
    %1799 = vmatpush1.msra.mxu0 0.0
    %1800 = vmatprep.subr.mxu0 0.0
    %1801 = vmatpush1.msra.mxu0 0.0
    %1802 = vmatprep.subr.mxu0 0.0
    %1803 = vmatpush1.msra.mxu0 0.0
    %1804 = vmatprep.subr.mxu0 0.0
    %1805 = vmatpush1.msra.mxu0 0.0
    %1806 = vmatprep.subr.mxu0 0.0
    %1807 = vmatpush1.msra.mxu0 0.0
    %1808 = vmatprep.subr.mxu0 0.0
    %1809 = vmatpush1.msra.mxu0 0.0
    %1810 = vmatprep.subr.mxu0 0.0
    %1811 = vmatpush1.msra.mxu0 0.0
    %1812 = vmatprep.mubr.f32.mxu0 0.0
    %1813 = vmatmul.mubr.f32.gmra.mrb[0].mxu0 %v1746
    %v1814 = vpop.f32.mrb[0].mxu0
    %v1815 = vadd.f32 0.0, %v1814
    %v1816 = vpop.f32.mrb[0].mxu0
    %1817 = vdwg.mxu0
    %v1818 = vadd.f32 %v1745, %v1815
    %v1819 = vxor.u32 %v1818, 2147483648
    %v1820 = vmul.f32 %v1819, 1.442695
    %v1821 = vpow.pop %v1820
    %v1822 = vadd.f32 %v1821, 1.0
    %v1823 = vrcp.pop %v1822
    %v1824 = vmul.f32 1.0, %v1823
    %v1825 = vtanh.pop %v1818
    %v1826 = vmul.f32 %v1824, %v1733
    %1828 = vrot.lane.b32.xlu0 %v1825, 64
    %v1829 = vpop.permute.xlu0 %1828
    %v1831 = vmul.f32 %v1824, %v1829
    %1833 = vrot.lane.b32.xlu0 %v1831, 32
    %v1834 = vpop.permute.xlu0 %1833
    %v1836 = vadd.f32 %v1826, %v1834
    %v1837 = vtanh.pop %v1836
    %1839 = vrot.lane.b32.xlu0 %v1837, 64
    %v1840 = vpop.permute.xlu0 %1839
    %v1842 = vmul.f32 %v1824, %v1840
    %1844 = vrot.lane.b32.xlu0 %v1842, 32
    %v1845 = vpop.permute.xlu0 %1844
    %1847 = vst.msk [vmem:[%s803] sm:$0x3] %vm383, %v1845
    %v1848 = vld [vmem:[%s805] sm:$0x3]
    %v1849 = vsel %vm276, %v1845, 0
    %1851 = vmatprep.subr.mxu0 0.0
    %1852 = vmatpush1.msra.mxu0 %v1320
    %1853 = vmatprep.subr.mxu0 0.0
    %1854 = vmatpush1.msra.mxu0 %v1321
    %1855 = vmatprep.subr.mxu0 0.0
    %1856 = vmatpush1.msra.mxu0 %v1322
    %1857 = vmatprep.subr.mxu0 0.0
    %1858 = vmatpush1.msra.mxu0 %v1323
    %1859 = vmatprep.subr.mxu0 0.0
    %1860 = vmatpush1.msra.mxu0 0.0
    %1861 = vmatprep.subr.mxu0 0.0
    %1862 = vmatpush1.msra.mxu0 0.0
    %1863 = vmatprep.subr.mxu0 0.0
    %1864 = vmatpush1.msra.mxu0 0.0
    %1865 = vmatprep.subr.mxu0 0.0
    %1866 = vmatpush1.msra.mxu0 0.0
    %1867 = vmatprep.subr.mxu0 0.0
    %1868 = vmatpush1.msra.mxu0 0.0
    %1869 = vmatprep.subr.mxu0 0.0
    %1870 = vmatpush1.msra.mxu0 0.0
    %1871 = vmatprep.subr.mxu0 0.0
    %1872 = vmatpush1.msra.mxu0 0.0
    %1873 = vmatprep.subr.mxu0 0.0
    %1874 = vmatpush1.msra.mxu0 0.0
    %1875 = vmatprep.subr.mxu0 0.0
    %1876 = vmatpush1.msra.mxu0 0.0
    %1877 = vmatprep.subr.mxu0 0.0
    %1878 = vmatpush1.msra.mxu0 0.0
    %1879 = vmatprep.subr.mxu0 0.0
    %1880 = vmatpush1.msra.mxu0 0.0
    %1881 = vmatprep.subr.mxu0 0.0
    %1882 = vmatpush1.msra.mxu0 0.0
    %1883 = vmatprep.subr.mxu0 0.0
    %1884 = vmatpush1.msra.mxu0 0.0
    %1885 = vmatprep.subr.mxu0 0.0
    %1886 = vmatpush1.msra.mxu0 0.0
    %1887 = vmatprep.subr.mxu0 0.0
    %1888 = vmatpush1.msra.mxu0 0.0
    %1889 = vmatprep.subr.mxu0 0.0
    %1890 = vmatpush1.msra.mxu0 0.0
    %1891 = vmatprep.subr.mxu0 0.0
    %1892 = vmatpush1.msra.mxu0 0.0
    %1893 = vmatprep.subr.mxu0 0.0
    %1894 = vmatpush1.msra.mxu0 0.0
    %1895 = vmatprep.subr.mxu0 0.0
    %1896 = vmatpush1.msra.mxu0 0.0
    %1897 = vmatprep.subr.mxu0 0.0
    %1898 = vmatpush1.msra.mxu0 0.0
    %1899 = vmatprep.subr.mxu0 0.0
    %1900 = vmatpush1.msra.mxu0 0.0
    %1901 = vmatprep.subr.mxu0 0.0
    %1902 = vmatpush1.msra.mxu0 0.0
    %1903 = vmatprep.subr.mxu0 0.0
    %1904 = vmatpush1.msra.mxu0 0.0
    %1905 = vmatprep.subr.mxu0 0.0
    %1906 = vmatpush1.msra.mxu0 0.0
    %1907 = vmatprep.subr.mxu0 0.0
    %1908 = vmatpush1.msra.mxu0 0.0
    %1909 = vmatprep.subr.mxu0 0.0
    %1910 = vmatpush1.msra.mxu0 0.0
    %1911 = vmatprep.subr.mxu0 0.0
    %1912 = vmatpush1.msra.mxu0 0.0
    %1913 = vmatprep.subr.mxu0 0.0
    %1914 = vmatpush1.msra.mxu0 0.0
    %1915 = vmatprep.mubr.f32.mxu0 0.0
    %1916 = vmatmul.mubr.f32.gmra.mrb[0].mxu0 %v1849
    %v1917 = vpop.f32.mrb[0].mxu0
    %v1918 = vadd.f32 0.0, %v1917
    %v1919 = vpop.f32.mrb[0].mxu0
    %1920 = vdwg.mxu0
    %v1921 = vadd.f32 %v1848, %v1918
    %v1922 = vxor.u32 %v1921, 2147483648
    %v1923 = vmul.f32 %v1922, 1.442695
    %v1924 = vpow.pop %v1923
    %v1925 = vadd.f32 %v1924, 1.0
    %v1926 = vrcp.pop %v1925
    %v1927 = vmul.f32 1.0, %v1926
    %v1928 = vtanh.pop %v1921
    %v1929 = vmul.f32 %v1927, %v1836
    %1931 = vrot.lane.b32.xlu0 %v1928, 64
    %v1932 = vpop.permute.xlu0 %1931
    %v1934 = vmul.f32 %v1927, %v1932
    %1936 = vrot.lane.b32.xlu0 %v1934, 32
    %v1937 = vpop.permute.xlu0 %1936
    %v1939 = vadd.f32 %v1929, %v1937
    %v1940 = vtanh.pop %v1939
    %1942 = vrot.lane.b32.xlu0 %v1940, 64
    %v1943 = vpop.permute.xlu0 %1942
    %v1945 = vmul.f32 %v1927, %v1943
    %1947 = vrot.lane.b32.xlu0 %v1945, 32
    %v1948 = vpop.permute.xlu0 %1947
    %1950 = vst.msk [vmem:[%s908] sm:$0x3] %vm383, %v1948
    %v1951 = vld [vmem:[%s910] sm:$0x3]
    %v1952 = vsel %vm276, %v1948, 0
    %1954 = vmatprep.subr.mxu0 0.0
    %1955 = vmatpush1.msra.mxu0 %v1320
    %1956 = vmatprep.subr.mxu0 0.0
    %1957 = vmatpush1.msra.mxu0 %v1321
    %1958 = vmatprep.subr.mxu0 0.0
    %1959 = vmatpush1.msra.mxu0 %v1322
    %1960 = vmatprep.subr.mxu0 0.0
    %1961 = vmatpush1.msra.mxu0 %v1323
    %1962 = vmatprep.subr.mxu0 0.0
    %1963 = vmatpush1.msra.mxu0 0.0
    %1964 = vmatprep.subr.mxu0 0.0
    %1965 = vmatpush1.msra.mxu0 0.0
    %1966 = vmatprep.subr.mxu0 0.0
    %1967 = vmatpush1.msra.mxu0 0.0
    %1968 = vmatprep.subr.mxu0 0.0
    %1969 = vmatpush1.msra.mxu0 0.0
    %1970 = vmatprep.subr.mxu0 0.0
    %1971 = vmatpush1.msra.mxu0 0.0
    %1972 = vmatprep.subr.mxu0 0.0
    %1973 = vmatpush1.msra.mxu0 0.0
    %1974 = vmatprep.subr.mxu0 0.0
    %1975 = vmatpush1.msra.mxu0 0.0
    %1976 = vmatprep.subr.mxu0 0.0
    %1977 = vmatpush1.msra.mxu0 0.0
    %1978 = vmatprep.subr.mxu0 0.0
    %1979 = vmatpush1.msra.mxu0 0.0
    %1980 = vmatprep.subr.mxu0 0.0
    %1981 = vmatpush1.msra.mxu0 0.0
    %1982 = vmatprep.subr.mxu0 0.0
    %1983 = vmatpush1.msra.mxu0 0.0
    %1984 = vmatprep.subr.mxu0 0.0
    %1985 = vmatpush1.msra.mxu0 0.0
    %1986 = vmatprep.subr.mxu0 0.0
    %1987 = vmatpush1.msra.mxu0 0.0
    %1988 = vmatprep.subr.mxu0 0.0
    %1989 = vmatpush1.msra.mxu0 0.0
    %1990 = vmatprep.subr.mxu0 0.0
    %1991 = vmatpush1.msra.mxu0 0.0
    %1992 = vmatprep.subr.mxu0 0.0
    %1993 = vmatpush1.msra.mxu0 0.0
    %1994 = vmatprep.subr.mxu0 0.0
    %1995 = vmatpush1.msra.mxu0 0.0
    %1996 = vmatprep.subr.mxu0 0.0
    %1997 = vmatpush1.msra.mxu0 0.0
    %1998 = vmatprep.subr.mxu0 0.0
    %1999 = vmatpush1.msra.mxu0 0.0
    %2000 = vmatprep.subr.mxu0 0.0
    %2001 = vmatpush1.msra.mxu0 0.0
    %2002 = vmatprep.subr.mxu0 0.0
    %2003 = vmatpush1.msra.mxu0 0.0
    %2004 = vmatprep.subr.mxu0 0.0
    %2005 = vmatpush1.msra.mxu0 0.0
    %2006 = vmatprep.subr.mxu0 0.0
    %2007 = vmatpush1.msra.mxu0 0.0
    %2008 = vmatprep.subr.mxu0 0.0
    %2009 = vmatpush1.msra.mxu0 0.0
    %2010 = vmatprep.subr.mxu0 0.0
    %2011 = vmatpush1.msra.mxu0 0.0
    %2012 = vmatprep.subr.mxu0 0.0
    %2013 = vmatpush1.msra.mxu0 0.0
    %2014 = vmatprep.subr.mxu0 0.0
    %2015 = vmatpush1.msra.mxu0 0.0
    %2016 = vmatprep.subr.mxu0 0.0
    %2017 = vmatpush1.msra.mxu0 0.0
    %2018 = vmatprep.mubr.f32.mxu0 0.0
    %2019 = vmatmul.mubr.f32.gmra.mrb[0].mxu0 %v1952
    %v2020 = vpop.f32.mrb[0].mxu0
    %v2021 = vadd.f32 0.0, %v2020
    %v2022 = vpop.f32.mrb[0].mxu0
    %2023 = vdwg.mxu0
    %v2024 = vadd.f32 %v1951, %v2021
    %v2025 = vxor.u32 %v2024, 2147483648
    %v2026 = vmul.f32 %v2025, 1.442695
    %v2027 = vpow.pop %v2026
    %v2028 = vadd.f32 %v2027, 1.0
    %v2029 = vrcp.pop %v2028
    %v2030 = vmul.f32 1.0, %v2029
    %v2031 = vtanh.pop %v2024
    %v2032 = vmul.f32 %v2030, %v1939
    %2034 = vrot.lane.b32.xlu0 %v2031, 64
    %v2035 = vpop.permute.xlu0 %2034
    %v2037 = vmul.f32 %v2030, %v2035
    %2039 = vrot.lane.b32.xlu0 %v2037, 32
    %v2040 = vpop.permute.xlu0 %2039
    %v2042 = vadd.f32 %v2032, %v2040
    %v2043 = vtanh.pop %v2042
    %2045 = vrot.lane.b32.xlu0 %v2043, 64
    %v2046 = vpop.permute.xlu0 %2045
    %v2048 = vmul.f32 %v2030, %v2046
    %2050 = vrot.lane.b32.xlu0 %v2048, 32
    %v2051 = vpop.permute.xlu0 %2050
    %2053 = vst.msk [vmem:[%s1013] sm:$0x3] %vm383, %v2051
    %v2054 = vld [vmem:[%s1015] sm:$0x3]
    %v2055 = vsel %vm276, %v2051, 0
    %2057 = vmatprep.subr.mxu0 0.0
    %2058 = vmatpush1.msra.mxu0 %v1320
    %2059 = vmatprep.subr.mxu0 0.0
    %2060 = vmatpush1.msra.mxu0 %v1321
    %2061 = vmatprep.subr.mxu0 0.0
    %2062 = vmatpush1.msra.mxu0 %v1322
    %2063 = vmatprep.subr.mxu0 0.0
    %2064 = vmatpush1.msra.mxu0 %v1323
    %2065 = vmatprep.subr.mxu0 0.0
    %2066 = vmatpush1.msra.mxu0 0.0
    %2067 = vmatprep.subr.mxu0 0.0
    %2068 = vmatpush1.msra.mxu0 0.0
    %2069 = vmatprep.subr.mxu0 0.0
    %2070 = vmatpush1.msra.mxu0 0.0
    %2071 = vmatprep.subr.mxu0 0.0
    %2072 = vmatpush1.msra.mxu0 0.0
    %2073 = vmatprep.subr.mxu0 0.0
    %2074 = vmatpush1.msra.mxu0 0.0
    %2075 = vmatprep.subr.mxu0 0.0
    %2076 = vmatpush1.msra.mxu0 0.0
    %2077 = vmatprep.subr.mxu0 0.0
    %2078 = vmatpush1.msra.mxu0 0.0
    %2079 = vmatprep.subr.mxu0 0.0
    %2080 = vmatpush1.msra.mxu0 0.0
    %2081 = vmatprep.subr.mxu0 0.0
    %2082 = vmatpush1.msra.mxu0 0.0
    %2083 = vmatprep.subr.mxu0 0.0
    %2084 = vmatpush1.msra.mxu0 0.0
    %2085 = vmatprep.subr.mxu0 0.0
    %2086 = vmatpush1.msra.mxu0 0.0
    %2087 = vmatprep.subr.mxu0 0.0
    %2088 = vmatpush1.msra.mxu0 0.0
    %2089 = vmatprep.subr.mxu0 0.0
    %2090 = vmatpush1.msra.mxu0 0.0
    %2091 = vmatprep.subr.mxu0 0.0
    %2092 = vmatpush1.msra.mxu0 0.0
    %2093 = vmatprep.subr.mxu0 0.0
    %2094 = vmatpush1.msra.mxu0 0.0
    %2095 = vmatprep.subr.mxu0 0.0
    %2096 = vmatpush1.msra.mxu0 0.0
    %2097 = vmatprep.subr.mxu0 0.0
    %2098 = vmatpush1.msra.mxu0 0.0
    %2099 = vmatprep.subr.mxu0 0.0
    %2100 = vmatpush1.msra.mxu0 0.0
    %2101 = vmatprep.subr.mxu0 0.0
    %2102 = vmatpush1.msra.mxu0 0.0
    %2103 = vmatprep.subr.mxu0 0.0
    %2104 = vmatpush1.msra.mxu0 0.0
    %2105 = vmatprep.subr.mxu0 0.0
    %2106 = vmatpush1.msra.mxu0 0.0
    %2107 = vmatprep.subr.mxu0 0.0
    %2108 = vmatpush1.msra.mxu0 0.0
    %2109 = vmatprep.subr.mxu0 0.0
    %2110 = vmatpush1.msra.mxu0 0.0
    %2111 = vmatprep.subr.mxu0 0.0
    %2112 = vmatpush1.msra.mxu0 0.0
    %2113 = vmatprep.subr.mxu0 0.0
    %2114 = vmatpush1.msra.mxu0 0.0
    %2115 = vmatprep.subr.mxu0 0.0
    %2116 = vmatpush1.msra.mxu0 0.0
    %2117 = vmatprep.subr.mxu0 0.0
    %2118 = vmatpush1.msra.mxu0 0.0
    %2119 = vmatprep.subr.mxu0 0.0
    %2120 = vmatpush1.msra.mxu0 0.0
    %2121 = vmatprep.mubr.f32.mxu0 0.0
    %2122 = vmatmul.mubr.f32.gmra.mrb[0].mxu0 %v2055
    %v2123 = vpop.f32.mrb[0].mxu0
    %v2124 = vadd.f32 0.0, %v2123
    %v2125 = vpop.f32.mrb[0].mxu0
    %2126 = vdwg.mxu0
    %v2127 = vadd.f32 %v2054, %v2124
    %v2128 = vxor.u32 %v2127, 2147483648
    %v2129 = vmul.f32 %v2128, 1.442695
    %v2130 = vpow.pop %v2129
    %v2131 = vadd.f32 %v2130, 1.0
    %v2132 = vrcp.pop %v2131
    %v2133 = vmul.f32 1.0, %v2132
    %v2134 = vtanh.pop %v2127
    %v2135 = vmul.f32 %v2133, %v2042
    %2137 = vrot.lane.b32.xlu0 %v2134, 64
    %v2138 = vpop.permute.xlu0 %2137
    %v2140 = vmul.f32 %v2133, %v2138
    %2142 = vrot.lane.b32.xlu0 %v2140, 32
    %v2143 = vpop.permute.xlu0 %2142
    %v2145 = vadd.f32 %v2135, %v2143
    %v2146 = vtanh.pop %v2145
    %2148 = vrot.lane.b32.xlu0 %v2146, 64
    %v2149 = vpop.permute.xlu0 %2148
    %v2151 = vmul.f32 %v2133, %v2149
    %2153 = vrot.lane.b32.xlu0 %v2151, 32
    %v2154 = vpop.permute.xlu0 %2153
    %2156 = vst.msk [vmem:[%s1118] sm:$0x3] %vm383, %v2154
    %s2157 = scalar_lea.vmem [#allocation10], 2
    %2158 = vst.msk [vmem:[%s2157] sm:$0x3] %vm383, %v2154
    %2160 = vrot.lane.b32.xlu0 %v2145, 96
    %v2161 = vpop.permute.xlu0 %2160
    %s2163 = scalar_lea.vmem [#allocation11], 2
    %2164 = vst.msk [vmem:[%s2163] sm:$0x3] %vm383, %v2161
    %v2165 = vld [vmem:[#allocation2] sm:$0x3]
    %v2166 = vld [vmem:[#allocation2 + $0x2] sm:$0x3]
    %v2167 = vld [vmem:[#allocation2 + $0x4] sm:$0x3]
    %v2168 = vld [vmem:[#allocation2 + $0x6] sm:$0x3]
    %v2169 = vld [vmem:[#allocation2 + $0x8] sm:$0x3]
    %v2170 = vld [vmem:[#allocation2 + $0xa] sm:$0x3]
    %v2171 = vld [vmem:[#allocation2 + $0xc] sm:$0x3]
    %v2172 = vld [vmem:[#allocation2 + $0xe] sm:$0x3]
    %s2173 = scalar_lea.vmem %s4, 32
    %v2174 = vld [vmem:[%s2173] sm:$0xff]
    %v2175 = vld [vmem:[%s2173 + $0x8] sm:$0xff]
    %v2176 = vld [vmem:[%s2173 + $0x10] sm:$0xff]
    %v2177 = vld [vmem:[%s2173 + $0x18] sm:$0xff]
    %s2178 = scalar_lea.vmem [#allocation9], 2
    %v2179 = vld [vmem:[%s2178] sm:$0x1]
    %v2181 = vlaneseq
    %v2182 = vshrl.u32 %v2181, 7
    %v2183 = vsub.s32 0, %v2182
    %v2184 = vrot.slane %v2179, %v2183
    %v2194 = vcombine.low %v2165, %v2166
    %v2195 = vcombine.low %v2167, %v2168
    %v2197 = vunpack.c.l.s4 1983009808
    %v2198 = vunpack.c.0.s8 %v2197
    %v2199 = vlaneseq
    %v2200 = vshrl.u32 %v2199, 7
    %v2201 = vsub.s32 %v2198, %v2200
    %v2202 = vrot.slane %v2194, %v2201
    %v2204 = vunpack.c.l.s4 1983009808
    %v2205 = vunpack.c.0.s8 %v2204
    %v2206 = vlaneseq
    %v2207 = vshrl.u32 %v2206, 7
    %v2208 = vsub.s32 %v2205, %v2207
    %v2209 = vrot.slane %v2195, %v2208
    %v2210 = vcombine.low %v2202, %v2209
    %v2211 = vcombine.low %v2169, %v2170
    %v2212 = vcombine.low %v2171, %v2172
    %v2214 = vunpack.c.l.s4 1983009808
    %v2215 = vunpack.c.0.s8 %v2214
    %v2216 = vlaneseq
    %v2217 = vshrl.u32 %v2216, 7
    %v2218 = vsub.s32 %v2215, %v2217
    %v2219 = vrot.slane %v2211, %v2218
    %v2221 = vunpack.c.l.s4 1983009808
    %v2222 = vunpack.c.0.s8 %v2221
    %v2223 = vlaneseq
    %v2224 = vshrl.u32 %v2223, 7
    %v2225 = vsub.s32 %v2222, %v2224
    %v2226 = vrot.slane %v2212, %v2225
    %v2227 = vcombine.low %v2219, %v2226
    %v2228 = vsel %vm276, %v2210, 0
    %v2230 = vsel %vm276, %v2227, 0
    %2232 = vmatprep.subr.mxu0 0.0
    %2233 = vmatpush1.msra.mxu0 %v2174
    %2234 = vmatprep.subr.mxu0 0.0
    %2235 = vmatpush1.msra.mxu0 %v2175
    %2236 = vmatprep.subr.mxu0 0.0
    %2237 = vmatpush1.msra.mxu0 %v2176
    %2238 = vmatprep.subr.mxu0 0.0
    %2239 = vmatpush1.msra.mxu0 %v2177
    %2240 = vmatprep.subr.mxu0 0.0
    %2241 = vmatpush1.msra.mxu0 0.0
    %2242 = vmatprep.subr.mxu0 0.0
    %2243 = vmatpush1.msra.mxu0 0.0
    %2244 = vmatprep.subr.mxu0 0.0
    %2245 = vmatpush1.msra.mxu0 0.0
    %2246 = vmatprep.subr.mxu0 0.0
    %2247 = vmatpush1.msra.mxu0 0.0
    %2248 = vmatprep.subr.mxu0 0.0
    %2249 = vmatpush1.msra.mxu0 0.0
    %2250 = vmatprep.subr.mxu0 0.0
    %2251 = vmatpush1.msra.mxu0 0.0
    %2252 = vmatprep.subr.mxu0 0.0
    %2253 = vmatpush1.msra.mxu0 0.0
    %2254 = vmatprep.subr.mxu0 0.0
    %2255 = vmatpush1.msra.mxu0 0.0
    %2256 = vmatprep.subr.mxu0 0.0
    %2257 = vmatpush1.msra.mxu0 0.0
    %2258 = vmatprep.subr.mxu0 0.0
    %2259 = vmatpush1.msra.mxu0 0.0
    %2260 = vmatprep.subr.mxu0 0.0
    %2261 = vmatpush1.msra.mxu0 0.0
    %2262 = vmatprep.subr.mxu0 0.0
    %2263 = vmatpush1.msra.mxu0 0.0
    %2264 = vmatprep.subr.mxu0 0.0
    %2265 = vmatpush1.msra.mxu0 0.0
    %2266 = vmatprep.subr.mxu0 0.0
    %2267 = vmatpush1.msra.mxu0 0.0
    %2268 = vmatprep.subr.mxu0 0.0
    %2269 = vmatpush1.msra.mxu0 0.0
    %2270 = vmatprep.subr.mxu0 0.0
    %2271 = vmatpush1.msra.mxu0 0.0
    %2272 = vmatprep.subr.mxu0 0.0
    %2273 = vmatpush1.msra.mxu0 0.0
    %2274 = vmatprep.subr.mxu0 0.0
    %2275 = vmatpush1.msra.mxu0 0.0
    %2276 = vmatprep.subr.mxu0 0.0
    %2277 = vmatpush1.msra.mxu0 0.0
    %2278 = vmatprep.subr.mxu0 0.0
    %2279 = vmatpush1.msra.mxu0 0.0
    %2280 = vmatprep.subr.mxu0 0.0
    %2281 = vmatpush1.msra.mxu0 0.0
    %2282 = vmatprep.subr.mxu0 0.0
    %2283 = vmatpush1.msra.mxu0 0.0
    %2284 = vmatprep.subr.mxu0 0.0
    %2285 = vmatpush1.msra.mxu0 0.0
    %2286 = vmatprep.subr.mxu0 0.0
    %2287 = vmatpush1.msra.mxu0 0.0
    %2288 = vmatprep.subr.mxu0 0.0
    %2289 = vmatpush1.msra.mxu0 0.0
    %2290 = vmatprep.subr.mxu0 0.0
    %2291 = vmatpush1.msra.mxu0 0.0
    %2292 = vmatprep.subr.mxu0 0.0
    %2293 = vmatpush1.msra.mxu0 0.0
    %2294 = vmatprep.subr.mxu0 0.0
    %2295 = vmatpush1.msra.mxu0 0.0
    %2296 = vmatprep.mubr.f32.mxu0 0.0
    %2297 = vmatmul.mubr.f32.gmra.mrb[0].mxu0 %v2228
    %v2298 = vpop.f32.mrb[0].mxu0
    %v2299 = vadd.f32 %v2184, %v2298
    %v2300 = vpop.f32.mrb[0].mxu0
    %2301 = vmatprep.mubr.f32.mxu0 0.0
    %2302 = vmatmul.mubr.f32.gmra.mrb[0].mxu0 %v2230
    %v2303 = vpop.f32.mrb[0].mxu0
    %v2304 = vadd.f32 %v2184, %v2303
    %v2305 = vpop.f32.mrb[0].mxu0
    %2306 = vdwg.mxu0
    %v2309 = vcombine.high %v2299, %v2299
    %v2311 = vunpack.c.l.s4 1983009808
    %v2312 = vunpack.c.0.s8 %v2311
    %v2313 = vlaneseq
    %v2314 = vshrl.u32 %v2313, 7
    %v2315 = vsub.s32 %v2312, %v2314
    %v2316 = vrot.slane %v2299, %v2315
    %v2318 = vunpack.c.l.s4 1983009808
    %v2319 = vunpack.c.0.s8 %v2318
    %v2320 = vlaneseq
    %v2321 = vshrl.u32 %v2320, 7
    %v2322 = vsub.s32 %v2319, %v2321
    %v2323 = vrot.slane %v2309, %v2322
    %v2324 = vcombine.high %v2316, %v2316
    %v2325 = vcombine.high %v2323, %v2323
    %v2326 = vcombine.high %v2304, %v2304
    %v2328 = vunpack.c.l.s4 1983009808
    %v2329 = vunpack.c.0.s8 %v2328
    %v2330 = vlaneseq
    %v2331 = vshrl.u32 %v2330, 7
    %v2332 = vsub.s32 %v2329, %v2331
    %v2333 = vrot.slane %v2304, %v2332
    %v2335 = vunpack.c.l.s4 1983009808
    %v2336 = vunpack.c.0.s8 %v2335
    %v2337 = vlaneseq
    %v2338 = vshrl.u32 %v2337, 7
    %v2339 = vsub.s32 %v2336, %v2338
    %v2340 = vrot.slane %v2326, %v2339
    %v2341 = vcombine.high %v2333, %v2333
    %v2342 = vcombine.high %v2340, %v2340
    %2351 = vst [vmem:[#allocation3] sm:$0x3] %v2316
    %2352 = vst [vmem:[#allocation3 + $0x2] sm:$0x3] %v2324
    %2353 = vst [vmem:[#allocation3 + $0x4] sm:$0x3] %v2323
    %2354 = vst [vmem:[#allocation3 + $0x6] sm:$0x3] %v2325
    %2355 = vst [vmem:[#allocation3 + $0x8] sm:$0x3] %v2333
    %2356 = vst [vmem:[#allocation3 + $0xa] sm:$0x3] %v2341
    %2357 = vst [vmem:[#allocation3 + $0xc] sm:$0x3] %v2340
    %2358 = vst [vmem:[#allocation3 + $0xe] sm:$0x3] %v2342
    %s2359 = scalar_lea.vmem %s5, 64
    %v2360 = vld [vmem:[%s2359] sm:$0xff]
    %v2361 = vld [vmem:[%s2359 + $0x8] sm:$0xff]
    %v2362 = vld [vmem:[%s2359 + $0x10] sm:$0xff]
    %v2363 = vld [vmem:[%s2359 + $0x18] sm:$0xff]
    %s2364 = scalar_lea.vmem [#allocation4], 4
    %v2365 = vld [vmem:[%s2364] sm:$0x3]
    %s2366 = scalar_lea.vmem [#allocation7], 4
    %v2367 = vld [vmem:[%s2366] sm:$0x3]
    %v2368 = vld [vmem:[#allocation3] sm:$0x3]
    %v2370 = vsel %vm276, %v2365, 0
    %2372 = vmatprep.subr.mxu0 0.0
    %2373 = vmatpush1.msra.mxu0 %v2360
    %2374 = vmatprep.subr.mxu0 0.0
    %2375 = vmatpush1.msra.mxu0 %v2361
    %2376 = vmatprep.subr.mxu0 0.0
    %2377 = vmatpush1.msra.mxu0 %v2362
    %2378 = vmatprep.subr.mxu0 0.0
    %2379 = vmatpush1.msra.mxu0 %v2363
    %2380 = vmatprep.subr.mxu0 0.0
    %2381 = vmatpush1.msra.mxu0 0.0
    %2382 = vmatprep.subr.mxu0 0.0
    %2383 = vmatpush1.msra.mxu0 0.0
    %2384 = vmatprep.subr.mxu0 0.0
    %2385 = vmatpush1.msra.mxu0 0.0
    %2386 = vmatprep.subr.mxu0 0.0
    %2387 = vmatpush1.msra.mxu0 0.0
    %2388 = vmatprep.subr.mxu0 0.0
    %2389 = vmatpush1.msra.mxu0 0.0
    %2390 = vmatprep.subr.mxu0 0.0
    %2391 = vmatpush1.msra.mxu0 0.0
    %2392 = vmatprep.subr.mxu0 0.0
    %2393 = vmatpush1.msra.mxu0 0.0
    %2394 = vmatprep.subr.mxu0 0.0
    %2395 = vmatpush1.msra.mxu0 0.0
    %2396 = vmatprep.subr.mxu0 0.0
    %2397 = vmatpush1.msra.mxu0 0.0
    %2398 = vmatprep.subr.mxu0 0.0
    %2399 = vmatpush1.msra.mxu0 0.0
    %2400 = vmatprep.subr.mxu0 0.0
    %2401 = vmatpush1.msra.mxu0 0.0
    %2402 = vmatprep.subr.mxu0 0.0
    %2403 = vmatpush1.msra.mxu0 0.0
    %2404 = vmatprep.subr.mxu0 0.0
    %2405 = vmatpush1.msra.mxu0 0.0
    %2406 = vmatprep.subr.mxu0 0.0
    %2407 = vmatpush1.msra.mxu0 0.0
    %2408 = vmatprep.subr.mxu0 0.0
    %2409 = vmatpush1.msra.mxu0 0.0
    %2410 = vmatprep.subr.mxu0 0.0
    %2411 = vmatpush1.msra.mxu0 0.0
    %2412 = vmatprep.subr.mxu0 0.0
    %2413 = vmatpush1.msra.mxu0 0.0
    %2414 = vmatprep.subr.mxu0 0.0
    %2415 = vmatpush1.msra.mxu0 0.0
    %2416 = vmatprep.subr.mxu0 0.0
    %2417 = vmatpush1.msra.mxu0 0.0
    %2418 = vmatprep.subr.mxu0 0.0
    %2419 = vmatpush1.msra.mxu0 0.0
    %2420 = vmatprep.subr.mxu0 0.0
    %2421 = vmatpush1.msra.mxu0 0.0
    %2422 = vmatprep.subr.mxu0 0.0
    %2423 = vmatpush1.msra.mxu0 0.0
    %2424 = vmatprep.subr.mxu0 0.0
    %2425 = vmatpush1.msra.mxu0 0.0
    %2426 = vmatprep.subr.mxu0 0.0
    %2427 = vmatpush1.msra.mxu0 0.0
    %2428 = vmatprep.subr.mxu0 0.0
    %2429 = vmatpush1.msra.mxu0 0.0
    %2430 = vmatprep.subr.mxu0 0.0
    %2431 = vmatpush1.msra.mxu0 0.0
    %2432 = vmatprep.subr.mxu0 0.0
    %2433 = vmatpush1.msra.mxu0 0.0
    %2434 = vmatprep.subr.mxu0 0.0
    %2435 = vmatpush1.msra.mxu0 0.0
    %2436 = vmatprep.mubr.f32.mxu0 0.0
    %2437 = vmatmul.mubr.f32.gmra.mrb[0].mxu0 %v2370
    %v2438 = vpop.f32.mrb[0].mxu0
    %v2439 = vadd.f32 0.0, %v2438
    %v2440 = vpop.f32.mrb[0].mxu0
    %2441 = vdwg.mxu0
    %v2442 = vadd.f32 %v2368, %v2439
    %v2443 = vxor.u32 %v2442, 2147483648
    %v2444 = vmul.f32 %v2443, 1.442695
    %v2445 = vpow.pop %v2444
    %v2446 = vadd.f32 %v2445, 1.0
    %v2447 = vrcp.pop %v2446
    %v2448 = vmul.f32 1.0, %v2447
    %v2449 = vtanh.pop %v2442
    %2451 = vrot.lane.b32.xlu0 %v2367, 32
    %v2452 = vpop.permute.xlu0 %2451
    %v2454 = vmul.f32 %v2448, %v2452
    %2456 = vrot.lane.b32.xlu0 %v2449, 64
    %v2457 = vpop.permute.xlu0 %2456
    %v2459 = vmul.f32 %v2448, %v2457
    %2461 = vrot.lane.b32.xlu0 %v2459, 32
    %v2462 = vpop.permute.xlu0 %2461
    %v2464 = vadd.f32 %v2454, %v2462
    %v2465 = vtanh.pop %v2464
    %2467 = vrot.lane.b32.xlu0 %v2465, 64
    %v2468 = vpop.permute.xlu0 %2467
    %v2470 = vmul.f32 %v2448, %v2468
    %2472 = vrot.lane.b32.xlu0 %v2470, 32
    %v2473 = vpop.permute.xlu0 %2472
    %2475 = vst.msk [vmem:[#allocation2] sm:$0x3] %vm383, %v2473
    %v2476 = vld [vmem:[%s385] sm:$0x3]
    %v2477 = vsel %vm276, %v2473, 0
    %2479 = vmatprep.subr.mxu0 0.0
    %2480 = vmatpush1.msra.mxu0 %v2360
    %2481 = vmatprep.subr.mxu0 0.0
    %2482 = vmatpush1.msra.mxu0 %v2361
    %2483 = vmatprep.subr.mxu0 0.0
    %2484 = vmatpush1.msra.mxu0 %v2362
    %2485 = vmatprep.subr.mxu0 0.0
    %2486 = vmatpush1.msra.mxu0 %v2363
    %2487 = vmatprep.subr.mxu0 0.0
    %2488 = vmatpush1.msra.mxu0 0.0
    %2489 = vmatprep.subr.mxu0 0.0
    %2490 = vmatpush1.msra.mxu0 0.0
    %2491 = vmatprep.subr.mxu0 0.0
    %2492 = vmatpush1.msra.mxu0 0.0
    %2493 = vmatprep.subr.mxu0 0.0
    %2494 = vmatpush1.msra.mxu0 0.0
    %2495 = vmatprep.subr.mxu0 0.0
    %2496 = vmatpush1.msra.mxu0 0.0
    %2497 = vmatprep.subr.mxu0 0.0
    %2498 = vmatpush1.msra.mxu0 0.0
    %2499 = vmatprep.subr.mxu0 0.0
    %2500 = vmatpush1.msra.mxu0 0.0
    %2501 = vmatprep.subr.mxu0 0.0
    %2502 = vmatpush1.msra.mxu0 0.0
    %2503 = vmatprep.subr.mxu0 0.0
    %2504 = vmatpush1.msra.mxu0 0.0
    %2505 = vmatprep.subr.mxu0 0.0
    %2506 = vmatpush1.msra.mxu0 0.0
    %2507 = vmatprep.subr.mxu0 0.0
    %2508 = vmatpush1.msra.mxu0 0.0
    %2509 = vmatprep.subr.mxu0 0.0
    %2510 = vmatpush1.msra.mxu0 0.0
    %2511 = vmatprep.subr.mxu0 0.0
    %2512 = vmatpush1.msra.mxu0 0.0
    %2513 = vmatprep.subr.mxu0 0.0
    %2514 = vmatpush1.msra.mxu0 0.0
    %2515 = vmatprep.subr.mxu0 0.0
    %2516 = vmatpush1.msra.mxu0 0.0
    %2517 = vmatprep.subr.mxu0 0.0
    %2518 = vmatpush1.msra.mxu0 0.0
    %2519 = vmatprep.subr.mxu0 0.0
    %2520 = vmatpush1.msra.mxu0 0.0
    %2521 = vmatprep.subr.mxu0 0.0
    %2522 = vmatpush1.msra.mxu0 0.0
    %2523 = vmatprep.subr.mxu0 0.0
    %2524 = vmatpush1.msra.mxu0 0.0
    %2525 = vmatprep.subr.mxu0 0.0
    %2526 = vmatpush1.msra.mxu0 0.0
    %2527 = vmatprep.subr.mxu0 0.0
    %2528 = vmatpush1.msra.mxu0 0.0
    %2529 = vmatprep.subr.mxu0 0.0
    %2530 = vmatpush1.msra.mxu0 0.0
    %2531 = vmatprep.subr.mxu0 0.0
    %2532 = vmatpush1.msra.mxu0 0.0
    %2533 = vmatprep.subr.mxu0 0.0
    %2534 = vmatpush1.msra.mxu0 0.0
    %2535 = vmatprep.subr.mxu0 0.0
    %2536 = vmatpush1.msra.mxu0 0.0
    %2537 = vmatprep.subr.mxu0 0.0
    %2538 = vmatpush1.msra.mxu0 0.0
    %2539 = vmatprep.subr.mxu0 0.0
    %2540 = vmatpush1.msra.mxu0 0.0
    %2541 = vmatprep.subr.mxu0 0.0
    %2542 = vmatpush1.msra.mxu0 0.0
    %2543 = vmatprep.mubr.f32.mxu0 0.0
    %2544 = vmatmul.mubr.f32.gmra.mrb[0].mxu0 %v2477
    %v2545 = vpop.f32.mrb[0].mxu0
    %v2546 = vadd.f32 0.0, %v2545
    %v2547 = vpop.f32.mrb[0].mxu0
    %2548 = vdwg.mxu0
    %v2549 = vadd.f32 %v2476, %v2546
    %v2550 = vxor.u32 %v2549, 2147483648
    %v2551 = vmul.f32 %v2550, 1.442695
    %v2552 = vpow.pop %v2551
    %v2553 = vadd.f32 %v2552, 1.0
    %v2554 = vrcp.pop %v2553
    %v2555 = vmul.f32 1.0, %v2554
    %v2556 = vtanh.pop %v2549
    %v2557 = vmul.f32 %v2555, %v2464
    %2559 = vrot.lane.b32.xlu0 %v2556, 64
    %v2560 = vpop.permute.xlu0 %2559
    %v2562 = vmul.f32 %v2555, %v2560
    %2564 = vrot.lane.b32.xlu0 %v2562, 32
    %v2565 = vpop.permute.xlu0 %2564
    %v2567 = vadd.f32 %v2557, %v2565
    %v2568 = vtanh.pop %v2567
    %2570 = vrot.lane.b32.xlu0 %v2568, 64
    %v2571 = vpop.permute.xlu0 %2570
    %v2573 = vmul.f32 %v2555, %v2571
    %2575 = vrot.lane.b32.xlu0 %v2573, 32
    %v2576 = vpop.permute.xlu0 %2575
    %2578 = vst.msk [vmem:[%s488] sm:$0x3] %vm383, %v2576
    %v2579 = vld [vmem:[%s490] sm:$0x3]
    %v2580 = vsel %vm276, %v2576, 0
    %2582 = vmatprep.subr.mxu0 0.0
    %2583 = vmatpush1.msra.mxu0 %v2360
    %2584 = vmatprep.subr.mxu0 0.0
    %2585 = vmatpush1.msra.mxu0 %v2361
    %2586 = vmatprep.subr.mxu0 0.0
    %2587 = vmatpush1.msra.mxu0 %v2362
    %2588 = vmatprep.subr.mxu0 0.0
    %2589 = vmatpush1.msra.mxu0 %v2363
    %2590 = vmatprep.subr.mxu0 0.0
    %2591 = vmatpush1.msra.mxu0 0.0
    %2592 = vmatprep.subr.mxu0 0.0
    %2593 = vmatpush1.msra.mxu0 0.0
    %2594 = vmatprep.subr.mxu0 0.0
    %2595 = vmatpush1.msra.mxu0 0.0
    %2596 = vmatprep.subr.mxu0 0.0
    %2597 = vmatpush1.msra.mxu0 0.0
    %2598 = vmatprep.subr.mxu0 0.0
    %2599 = vmatpush1.msra.mxu0 0.0
    %2600 = vmatprep.subr.mxu0 0.0
    %2601 = vmatpush1.msra.mxu0 0.0
    %2602 = vmatprep.subr.mxu0 0.0
    %2603 = vmatpush1.msra.mxu0 0.0
    %2604 = vmatprep.subr.mxu0 0.0
    %2605 = vmatpush1.msra.mxu0 0.0
    %2606 = vmatprep.subr.mxu0 0.0
    %2607 = vmatpush1.msra.mxu0 0.0
    %2608 = vmatprep.subr.mxu0 0.0
    %2609 = vmatpush1.msra.mxu0 0.0
    %2610 = vmatprep.subr.mxu0 0.0
    %2611 = vmatpush1.msra.mxu0 0.0
    %2612 = vmatprep.subr.mxu0 0.0
    %2613 = vmatpush1.msra.mxu0 0.0
    %2614 = vmatprep.subr.mxu0 0.0
    %2615 = vmatpush1.msra.mxu0 0.0
    %2616 = vmatprep.subr.mxu0 0.0
    %2617 = vmatpush1.msra.mxu0 0.0
    %2618 = vmatprep.subr.mxu0 0.0
    %2619 = vmatpush1.msra.mxu0 0.0
    %2620 = vmatprep.subr.mxu0 0.0
    %2621 = vmatpush1.msra.mxu0 0.0
    %2622 = vmatprep.subr.mxu0 0.0
    %2623 = vmatpush1.msra.mxu0 0.0
    %2624 = vmatprep.subr.mxu0 0.0
    %2625 = vmatpush1.msra.mxu0 0.0
    %2626 = vmatprep.subr.mxu0 0.0
    %2627 = vmatpush1.msra.mxu0 0.0
    %2628 = vmatprep.subr.mxu0 0.0
    %2629 = vmatpush1.msra.mxu0 0.0
    %2630 = vmatprep.subr.mxu0 0.0
    %2631 = vmatpush1.msra.mxu0 0.0
    %2632 = vmatprep.subr.mxu0 0.0
    %2633 = vmatpush1.msra.mxu0 0.0
    %2634 = vmatprep.subr.mxu0 0.0
    %2635 = vmatpush1.msra.mxu0 0.0
    %2636 = vmatprep.subr.mxu0 0.0
    %2637 = vmatpush1.msra.mxu0 0.0
    %2638 = vmatprep.subr.mxu0 0.0
    %2639 = vmatpush1.msra.mxu0 0.0
    %2640 = vmatprep.subr.mxu0 0.0
    %2641 = vmatpush1.msra.mxu0 0.0
    %2642 = vmatprep.subr.mxu0 0.0
    %2643 = vmatpush1.msra.mxu0 0.0
    %2644 = vmatprep.subr.mxu0 0.0
    %2645 = vmatpush1.msra.mxu0 0.0
    %2646 = vmatprep.mubr.f32.mxu0 0.0
    %2647 = vmatmul.mubr.f32.gmra.mrb[0].mxu0 %v2580
    %v2648 = vpop.f32.mrb[0].mxu0
    %v2649 = vadd.f32 0.0, %v2648
    %v2650 = vpop.f32.mrb[0].mxu0
    %2651 = vdwg.mxu0
    %v2652 = vadd.f32 %v2579, %v2649
    %v2653 = vxor.u32 %v2652, 2147483648
    %v2654 = vmul.f32 %v2653, 1.442695
    %v2655 = vpow.pop %v2654
    %v2656 = vadd.f32 %v2655, 1.0
    %v2657 = vrcp.pop %v2656
    %v2658 = vmul.f32 1.0, %v2657
    %v2659 = vtanh.pop %v2652
    %v2660 = vmul.f32 %v2658, %v2567
    %2662 = vrot.lane.b32.xlu0 %v2659, 64
    %v2663 = vpop.permute.xlu0 %2662
    %v2665 = vmul.f32 %v2658, %v2663
    %2667 = vrot.lane.b32.xlu0 %v2665, 32
    %v2668 = vpop.permute.xlu0 %2667
    %v2670 = vadd.f32 %v2660, %v2668
    %v2671 = vtanh.pop %v2670
    %2673 = vrot.lane.b32.xlu0 %v2671, 64
    %v2674 = vpop.permute.xlu0 %2673
    %v2676 = vmul.f32 %v2658, %v2674
    %2678 = vrot.lane.b32.xlu0 %v2676, 32
    %v2679 = vpop.permute.xlu0 %2678
    %2681 = vst.msk [vmem:[%s593] sm:$0x3] %vm383, %v2679
    %v2682 = vld [vmem:[%s595] sm:$0x3]
    %v2683 = vsel %vm276, %v2679, 0
    %2685 = vmatprep.subr.mxu0 0.0
    %2686 = vmatpush1.msra.mxu0 %v2360
    %2687 = vmatprep.subr.mxu0 0.0
    %2688 = vmatpush1.msra.mxu0 %v2361
    %2689 = vmatprep.subr.mxu0 0.0
    %2690 = vmatpush1.msra.mxu0 %v2362
    %2691 = vmatprep.subr.mxu0 0.0
    %2692 = vmatpush1.msra.mxu0 %v2363
    %2693 = vmatprep.subr.mxu0 0.0
    %2694 = vmatpush1.msra.mxu0 0.0
    %2695 = vmatprep.subr.mxu0 0.0
    %2696 = vmatpush1.msra.mxu0 0.0
    %2697 = vmatprep.subr.mxu0 0.0
    %2698 = vmatpush1.msra.mxu0 0.0
    %2699 = vmatprep.subr.mxu0 0.0
    %2700 = vmatpush1.msra.mxu0 0.0
    %2701 = vmatprep.subr.mxu0 0.0
    %2702 = vmatpush1.msra.mxu0 0.0
    %2703 = vmatprep.subr.mxu0 0.0
    %2704 = vmatpush1.msra.mxu0 0.0
    %2705 = vmatprep.subr.mxu0 0.0
    %2706 = vmatpush1.msra.mxu0 0.0
    %2707 = vmatprep.subr.mxu0 0.0
    %2708 = vmatpush1.msra.mxu0 0.0
    %2709 = vmatprep.subr.mxu0 0.0
    %2710 = vmatpush1.msra.mxu0 0.0
    %2711 = vmatprep.subr.mxu0 0.0
    %2712 = vmatpush1.msra.mxu0 0.0
    %2713 = vmatprep.subr.mxu0 0.0
    %2714 = vmatpush1.msra.mxu0 0.0
    %2715 = vmatprep.subr.mxu0 0.0
    %2716 = vmatpush1.msra.mxu0 0.0
    %2717 = vmatprep.subr.mxu0 0.0
    %2718 = vmatpush1.msra.mxu0 0.0
    %2719 = vmatprep.subr.mxu0 0.0
    %2720 = vmatpush1.msra.mxu0 0.0
    %2721 = vmatprep.subr.mxu0 0.0
    %2722 = vmatpush1.msra.mxu0 0.0
    %2723 = vmatprep.subr.mxu0 0.0
    %2724 = vmatpush1.msra.mxu0 0.0
    %2725 = vmatprep.subr.mxu0 0.0
    %2726 = vmatpush1.msra.mxu0 0.0
    %2727 = vmatprep.subr.mxu0 0.0
    %2728 = vmatpush1.msra.mxu0 0.0
    %2729 = vmatprep.subr.mxu0 0.0
    %2730 = vmatpush1.msra.mxu0 0.0
    %2731 = vmatprep.subr.mxu0 0.0
    %2732 = vmatpush1.msra.mxu0 0.0
    %2733 = vmatprep.subr.mxu0 0.0
    %2734 = vmatpush1.msra.mxu0 0.0
    %2735 = vmatprep.subr.mxu0 0.0
    %2736 = vmatpush1.msra.mxu0 0.0
    %2737 = vmatprep.subr.mxu0 0.0
    %2738 = vmatpush1.msra.mxu0 0.0
    %2739 = vmatprep.subr.mxu0 0.0
    %2740 = vmatpush1.msra.mxu0 0.0
    %2741 = vmatprep.subr.mxu0 0.0
    %2742 = vmatpush1.msra.mxu0 0.0
    %2743 = vmatprep.subr.mxu0 0.0
    %2744 = vmatpush1.msra.mxu0 0.0
    %2745 = vmatprep.subr.mxu0 0.0
    %2746 = vmatpush1.msra.mxu0 0.0
    %2747 = vmatprep.subr.mxu0 0.0
    %2748 = vmatpush1.msra.mxu0 0.0
    %2749 = vmatprep.mubr.f32.mxu0 0.0
    %2750 = vmatmul.mubr.f32.gmra.mrb[0].mxu0 %v2683
    %v2751 = vpop.f32.mrb[0].mxu0
    %v2752 = vadd.f32 0.0, %v2751
    %v2753 = vpop.f32.mrb[0].mxu0
    %2754 = vdwg.mxu0
    %v2755 = vadd.f32 %v2682, %v2752
    %v2756 = vxor.u32 %v2755, 2147483648
    %v2757 = vmul.f32 %v2756, 1.442695
    %v2758 = vpow.pop %v2757
    %v2759 = vadd.f32 %v2758, 1.0
    %v2760 = vrcp.pop %v2759
    %v2761 = vmul.f32 1.0, %v2760
    %v2762 = vtanh.pop %v2755
    %v2763 = vmul.f32 %v2761, %v2670
    %2765 = vrot.lane.b32.xlu0 %v2762, 64
    %v2766 = vpop.permute.xlu0 %2765
    %v2768 = vmul.f32 %v2761, %v2766
    %2770 = vrot.lane.b32.xlu0 %v2768, 32
    %v2771 = vpop.permute.xlu0 %2770
    %v2773 = vadd.f32 %v2763, %v2771
    %v2774 = vtanh.pop %v2773
    %2776 = vrot.lane.b32.xlu0 %v2774, 64
    %v2777 = vpop.permute.xlu0 %2776
    %v2779 = vmul.f32 %v2761, %v2777
    %2781 = vrot.lane.b32.xlu0 %v2779, 32
    %v2782 = vpop.permute.xlu0 %2781
    %2784 = vst.msk [vmem:[%s698] sm:$0x3] %vm383, %v2782
    %v2785 = vld [vmem:[%s700] sm:$0x3]
    %v2786 = vsel %vm276, %v2782, 0
    %2788 = vmatprep.subr.mxu0 0.0
    %2789 = vmatpush1.msra.mxu0 %v2360
    %2790 = vmatprep.subr.mxu0 0.0
    %2791 = vmatpush1.msra.mxu0 %v2361
    %2792 = vmatprep.subr.mxu0 0.0
    %2793 = vmatpush1.msra.mxu0 %v2362
    %2794 = vmatprep.subr.mxu0 0.0
    %2795 = vmatpush1.msra.mxu0 %v2363
    %2796 = vmatprep.subr.mxu0 0.0
    %2797 = vmatpush1.msra.mxu0 0.0
    %2798 = vmatprep.subr.mxu0 0.0
    %2799 = vmatpush1.msra.mxu0 0.0
    %2800 = vmatprep.subr.mxu0 0.0
    %2801 = vmatpush1.msra.mxu0 0.0
    %2802 = vmatprep.subr.mxu0 0.0
    %2803 = vmatpush1.msra.mxu0 0.0
    %2804 = vmatprep.subr.mxu0 0.0
    %2805 = vmatpush1.msra.mxu0 0.0
    %2806 = vmatprep.subr.mxu0 0.0
    %2807 = vmatpush1.msra.mxu0 0.0
    %2808 = vmatprep.subr.mxu0 0.0
    %2809 = vmatpush1.msra.mxu0 0.0
    %2810 = vmatprep.subr.mxu0 0.0
    %2811 = vmatpush1.msra.mxu0 0.0
    %2812 = vmatprep.subr.mxu0 0.0
    %2813 = vmatpush1.msra.mxu0 0.0
    %2814 = vmatprep.subr.mxu0 0.0
    %2815 = vmatpush1.msra.mxu0 0.0
    %2816 = vmatprep.subr.mxu0 0.0
    %2817 = vmatpush1.msra.mxu0 0.0
    %2818 = vmatprep.subr.mxu0 0.0
    %2819 = vmatpush1.msra.mxu0 0.0
    %2820 = vmatprep.subr.mxu0 0.0
    %2821 = vmatpush1.msra.mxu0 0.0
    %2822 = vmatprep.subr.mxu0 0.0
    %2823 = vmatpush1.msra.mxu0 0.0
    %2824 = vmatprep.subr.mxu0 0.0
    %2825 = vmatpush1.msra.mxu0 0.0
    %2826 = vmatprep.subr.mxu0 0.0
    %2827 = vmatpush1.msra.mxu0 0.0
    %2828 = vmatprep.subr.mxu0 0.0
    %2829 = vmatpush1.msra.mxu0 0.0
    %2830 = vmatprep.subr.mxu0 0.0
    %2831 = vmatpush1.msra.mxu0 0.0
    %2832 = vmatprep.subr.mxu0 0.0
    %2833 = vmatpush1.msra.mxu0 0.0
    %2834 = vmatprep.subr.mxu0 0.0
    %2835 = vmatpush1.msra.mxu0 0.0
    %2836 = vmatprep.subr.mxu0 0.0
    %2837 = vmatpush1.msra.mxu0 0.0
    %2838 = vmatprep.subr.mxu0 0.0
    %2839 = vmatpush1.msra.mxu0 0.0
    %2840 = vmatprep.subr.mxu0 0.0
    %2841 = vmatpush1.msra.mxu0 0.0
    %2842 = vmatprep.subr.mxu0 0.0
    %2843 = vmatpush1.msra.mxu0 0.0
    %2844 = vmatprep.subr.mxu0 0.0
    %2845 = vmatpush1.msra.mxu0 0.0
    %2846 = vmatprep.subr.mxu0 0.0
    %2847 = vmatpush1.msra.mxu0 0.0
    %2848 = vmatprep.subr.mxu0 0.0
    %2849 = vmatpush1.msra.mxu0 0.0
    %2850 = vmatprep.subr.mxu0 0.0
    %2851 = vmatpush1.msra.mxu0 0.0
    %2852 = vmatprep.mubr.f32.mxu0 0.0
    %2853 = vmatmul.mubr.f32.gmra.mrb[0].mxu0 %v2786
    %v2854 = vpop.f32.mrb[0].mxu0
    %v2855 = vadd.f32 0.0, %v2854
    %v2856 = vpop.f32.mrb[0].mxu0
    %2857 = vdwg.mxu0
    %v2858 = vadd.f32 %v2785, %v2855
    %v2859 = vxor.u32 %v2858, 2147483648
    %v2860 = vmul.f32 %v2859, 1.442695
    %v2861 = vpow.pop %v2860
    %v2862 = vadd.f32 %v2861, 1.0
    %v2863 = vrcp.pop %v2862
    %v2864 = vmul.f32 1.0, %v2863
    %v2865 = vtanh.pop %v2858
    %v2866 = vmul.f32 %v2864, %v2773
    %2868 = vrot.lane.b32.xlu0 %v2865, 64
    %v2869 = vpop.permute.xlu0 %2868
    %v2871 = vmul.f32 %v2864, %v2869
    %2873 = vrot.lane.b32.xlu0 %v2871, 32
    %v2874 = vpop.permute.xlu0 %2873
    %v2876 = vadd.f32 %v2866, %v2874
    %v2877 = vtanh.pop %v2876
    %2879 = vrot.lane.b32.xlu0 %v2877, 64
    %v2880 = vpop.permute.xlu0 %2879
    %v2882 = vmul.f32 %v2864, %v2880
    %2884 = vrot.lane.b32.xlu0 %v2882, 32
    %v2885 = vpop.permute.xlu0 %2884
    %2887 = vst.msk [vmem:[%s803] sm:$0x3] %vm383, %v2885
    %v2888 = vld [vmem:[%s805] sm:$0x3]
    %v2889 = vsel %vm276, %v2885, 0
    %2891 = vmatprep.subr.mxu0 0.0
    %2892 = vmatpush1.msra.mxu0 %v2360
    %2893 = vmatprep.subr.mxu0 0.0
    %2894 = vmatpush1.msra.mxu0 %v2361
    %2895 = vmatprep.subr.mxu0 0.0
    %2896 = vmatpush1.msra.mxu0 %v2362
    %2897 = vmatprep.subr.mxu0 0.0
    %2898 = vmatpush1.msra.mxu0 %v2363
    %2899 = vmatprep.subr.mxu0 0.0
    %2900 = vmatpush1.msra.mxu0 0.0
    %2901 = vmatprep.subr.mxu0 0.0
    %2902 = vmatpush1.msra.mxu0 0.0
    %2903 = vmatprep.subr.mxu0 0.0
    %2904 = vmatpush1.msra.mxu0 0.0
    %2905 = vmatprep.subr.mxu0 0.0
    %2906 = vmatpush1.msra.mxu0 0.0
    %2907 = vmatprep.subr.mxu0 0.0
    %2908 = vmatpush1.msra.mxu0 0.0
    %2909 = vmatprep.subr.mxu0 0.0
    %2910 = vmatpush1.msra.mxu0 0.0
    %2911 = vmatprep.subr.mxu0 0.0
    %2912 = vmatpush1.msra.mxu0 0.0
    %2913 = vmatprep.subr.mxu0 0.0
    %2914 = vmatpush1.msra.mxu0 0.0
    %2915 = vmatprep.subr.mxu0 0.0
    %2916 = vmatpush1.msra.mxu0 0.0
    %2917 = vmatprep.subr.mxu0 0.0
    %2918 = vmatpush1.msra.mxu0 0.0
    %2919 = vmatprep.subr.mxu0 0.0
    %2920 = vmatpush1.msra.mxu0 0.0
    %2921 = vmatprep.subr.mxu0 0.0
    %2922 = vmatpush1.msra.mxu0 0.0
    %2923 = vmatprep.subr.mxu0 0.0
    %2924 = vmatpush1.msra.mxu0 0.0
    %2925 = vmatprep.subr.mxu0 0.0
    %2926 = vmatpush1.msra.mxu0 0.0
    %2927 = vmatprep.subr.mxu0 0.0
    %2928 = vmatpush1.msra.mxu0 0.0
    %2929 = vmatprep.subr.mxu0 0.0
    %2930 = vmatpush1.msra.mxu0 0.0
    %2931 = vmatprep.subr.mxu0 0.0
    %2932 = vmatpush1.msra.mxu0 0.0
    %2933 = vmatprep.subr.mxu0 0.0
    %2934 = vmatpush1.msra.mxu0 0.0
    %2935 = vmatprep.subr.mxu0 0.0
    %2936 = vmatpush1.msra.mxu0 0.0
    %2937 = vmatprep.subr.mxu0 0.0
    %2938 = vmatpush1.msra.mxu0 0.0
    %2939 = vmatprep.subr.mxu0 0.0
    %2940 = vmatpush1.msra.mxu0 0.0
    %2941 = vmatprep.subr.mxu0 0.0
    %2942 = vmatpush1.msra.mxu0 0.0
    %2943 = vmatprep.subr.mxu0 0.0
    %2944 = vmatpush1.msra.mxu0 0.0
    %2945 = vmatprep.subr.mxu0 0.0
    %2946 = vmatpush1.msra.mxu0 0.0
    %2947 = vmatprep.subr.mxu0 0.0
    %2948 = vmatpush1.msra.mxu0 0.0
    %2949 = vmatprep.subr.mxu0 0.0
    %2950 = vmatpush1.msra.mxu0 0.0
    %2951 = vmatprep.subr.mxu0 0.0
    %2952 = vmatpush1.msra.mxu0 0.0
    %2953 = vmatprep.subr.mxu0 0.0
    %2954 = vmatpush1.msra.mxu0 0.0
    %2955 = vmatprep.mubr.f32.mxu0 0.0
    %2956 = vmatmul.mubr.f32.gmra.mrb[0].mxu0 %v2889
    %v2957 = vpop.f32.mrb[0].mxu0
    %v2958 = vadd.f32 0.0, %v2957
    %v2959 = vpop.f32.mrb[0].mxu0
    %2960 = vdwg.mxu0
    %v2961 = vadd.f32 %v2888, %v2958
    %v2962 = vxor.u32 %v2961, 2147483648
    %v2963 = vmul.f32 %v2962, 1.442695
    %v2964 = vpow.pop %v2963
    %v2965 = vadd.f32 %v2964, 1.0
    %v2966 = vrcp.pop %v2965
    %v2967 = vmul.f32 1.0, %v2966
    %v2968 = vtanh.pop %v2961
    %v2969 = vmul.f32 %v2967, %v2876
    %2971 = vrot.lane.b32.xlu0 %v2968, 64
    %v2972 = vpop.permute.xlu0 %2971
    %v2974 = vmul.f32 %v2967, %v2972
    %2976 = vrot.lane.b32.xlu0 %v2974, 32
    %v2977 = vpop.permute.xlu0 %2976
    %v2979 = vadd.f32 %v2969, %v2977
    %v2980 = vtanh.pop %v2979
    %2982 = vrot.lane.b32.xlu0 %v2980, 64
    %v2983 = vpop.permute.xlu0 %2982
    %v2985 = vmul.f32 %v2967, %v2983
    %2987 = vrot.lane.b32.xlu0 %v2985, 32
    %v2988 = vpop.permute.xlu0 %2987
    %2990 = vst.msk [vmem:[%s908] sm:$0x3] %vm383, %v2988
    %v2991 = vld [vmem:[%s910] sm:$0x3]
    %v2992 = vsel %vm276, %v2988, 0
    %2994 = vmatprep.subr.mxu0 0.0
    %2995 = vmatpush1.msra.mxu0 %v2360
    %2996 = vmatprep.subr.mxu0 0.0
    %2997 = vmatpush1.msra.mxu0 %v2361
    %2998 = vmatprep.subr.mxu0 0.0
    %2999 = vmatpush1.msra.mxu0 %v2362
    %3000 = vmatprep.subr.mxu0 0.0
    %3001 = vmatpush1.msra.mxu0 %v2363
    %3002 = vmatprep.subr.mxu0 0.0
    %3003 = vmatpush1.msra.mxu0 0.0
    %3004 = vmatprep.subr.mxu0 0.0
    %3005 = vmatpush1.msra.mxu0 0.0
    %3006 = vmatprep.subr.mxu0 0.0
    %3007 = vmatpush1.msra.mxu0 0.0
    %3008 = vmatprep.subr.mxu0 0.0
    %3009 = vmatpush1.msra.mxu0 0.0
    %3010 = vmatprep.subr.mxu0 0.0
    %3011 = vmatpush1.msra.mxu0 0.0
    %3012 = vmatprep.subr.mxu0 0.0
    %3013 = vmatpush1.msra.mxu0 0.0
    %3014 = vmatprep.subr.mxu0 0.0
    %3015 = vmatpush1.msra.mxu0 0.0
    %3016 = vmatprep.subr.mxu0 0.0
    %3017 = vmatpush1.msra.mxu0 0.0
    %3018 = vmatprep.subr.mxu0 0.0
    %3019 = vmatpush1.msra.mxu0 0.0
    %3020 = vmatprep.subr.mxu0 0.0
    %3021 = vmatpush1.msra.mxu0 0.0
    %3022 = vmatprep.subr.mxu0 0.0
    %3023 = vmatpush1.msra.mxu0 0.0
    %3024 = vmatprep.subr.mxu0 0.0
    %3025 = vmatpush1.msra.mxu0 0.0
    %3026 = vmatprep.subr.mxu0 0.0
    %3027 = vmatpush1.msra.mxu0 0.0
    %3028 = vmatprep.subr.mxu0 0.0
    %3029 = vmatpush1.msra.mxu0 0.0
    %3030 = vmatprep.subr.mxu0 0.0
    %3031 = vmatpush1.msra.mxu0 0.0
    %3032 = vmatprep.subr.mxu0 0.0
    %3033 = vmatpush1.msra.mxu0 0.0
    %3034 = vmatprep.subr.mxu0 0.0
    %3035 = vmatpush1.msra.mxu0 0.0
    %3036 = vmatprep.subr.mxu0 0.0
    %3037 = vmatpush1.msra.mxu0 0.0
    %3038 = vmatprep.subr.mxu0 0.0
    %3039 = vmatpush1.msra.mxu0 0.0
    %3040 = vmatprep.subr.mxu0 0.0
    %3041 = vmatpush1.msra.mxu0 0.0
    %3042 = vmatprep.subr.mxu0 0.0
    %3043 = vmatpush1.msra.mxu0 0.0
    %3044 = vmatprep.subr.mxu0 0.0
    %3045 = vmatpush1.msra.mxu0 0.0
    %3046 = vmatprep.subr.mxu0 0.0
    %3047 = vmatpush1.msra.mxu0 0.0
    %3048 = vmatprep.subr.mxu0 0.0
    %3049 = vmatpush1.msra.mxu0 0.0
    %3050 = vmatprep.subr.mxu0 0.0
    %3051 = vmatpush1.msra.mxu0 0.0
    %3052 = vmatprep.subr.mxu0 0.0
    %3053 = vmatpush1.msra.mxu0 0.0
    %3054 = vmatprep.subr.mxu0 0.0
    %3055 = vmatpush1.msra.mxu0 0.0
    %3056 = vmatprep.subr.mxu0 0.0
    %3057 = vmatpush1.msra.mxu0 0.0
    %3058 = vmatprep.mubr.f32.mxu0 0.0
    %3059 = vmatmul.mubr.f32.gmra.mrb[0].mxu0 %v2992
    %v3060 = vpop.f32.mrb[0].mxu0
    %v3061 = vadd.f32 0.0, %v3060
    %v3062 = vpop.f32.mrb[0].mxu0
    %3063 = vdwg.mxu0
    %v3064 = vadd.f32 %v2991, %v3061
    %v3065 = vxor.u32 %v3064, 2147483648
    %v3066 = vmul.f32 %v3065, 1.442695
    %v3067 = vpow.pop %v3066
    %v3068 = vadd.f32 %v3067, 1.0
    %v3069 = vrcp.pop %v3068
    %v3070 = vmul.f32 1.0, %v3069
    %v3071 = vtanh.pop %v3064
    %v3072 = vmul.f32 %v3070, %v2979
    %3074 = vrot.lane.b32.xlu0 %v3071, 64
    %v3075 = vpop.permute.xlu0 %3074
    %v3077 = vmul.f32 %v3070, %v3075
    %3079 = vrot.lane.b32.xlu0 %v3077, 32
    %v3080 = vpop.permute.xlu0 %3079
    %v3082 = vadd.f32 %v3072, %v3080
    %v3083 = vtanh.pop %v3082
    %3085 = vrot.lane.b32.xlu0 %v3083, 64
    %v3086 = vpop.permute.xlu0 %3085
    %v3088 = vmul.f32 %v3070, %v3086
    %3090 = vrot.lane.b32.xlu0 %v3088, 32
    %v3091 = vpop.permute.xlu0 %3090
    %3093 = vst.msk [vmem:[%s1013] sm:$0x3] %vm383, %v3091
    %v3094 = vld [vmem:[%s1015] sm:$0x3]
    %v3095 = vsel %vm276, %v3091, 0
    %3097 = vmatprep.subr.mxu0 0.0
    %3098 = vmatpush1.msra.mxu0 %v2360
    %3099 = vmatprep.subr.mxu0 0.0
    %3100 = vmatpush1.msra.mxu0 %v2361
    %3101 = vmatprep.subr.mxu0 0.0
    %3102 = vmatpush1.msra.mxu0 %v2362
    %3103 = vmatprep.subr.mxu0 0.0
    %3104 = vmatpush1.msra.mxu0 %v2363
    %3105 = vmatprep.subr.mxu0 0.0
    %3106 = vmatpush1.msra.mxu0 0.0
    %3107 = vmatprep.subr.mxu0 0.0
    %3108 = vmatpush1.msra.mxu0 0.0
    %3109 = vmatprep.subr.mxu0 0.0
    %3110 = vmatpush1.msra.mxu0 0.0
    %3111 = vmatprep.subr.mxu0 0.0
    %3112 = vmatpush1.msra.mxu0 0.0
    %3113 = vmatprep.subr.mxu0 0.0
    %3114 = vmatpush1.msra.mxu0 0.0
    %3115 = vmatprep.subr.mxu0 0.0
    %3116 = vmatpush1.msra.mxu0 0.0
    %3117 = vmatprep.subr.mxu0 0.0
    %3118 = vmatpush1.msra.mxu0 0.0
    %3119 = vmatprep.subr.mxu0 0.0
    %3120 = vmatpush1.msra.mxu0 0.0
    %3121 = vmatprep.subr.mxu0 0.0
    %3122 = vmatpush1.msra.mxu0 0.0
    %3123 = vmatprep.subr.mxu0 0.0
    %3124 = vmatpush1.msra.mxu0 0.0
    %3125 = vmatprep.subr.mxu0 0.0
    %3126 = vmatpush1.msra.mxu0 0.0
    %3127 = vmatprep.subr.mxu0 0.0
    %3128 = vmatpush1.msra.mxu0 0.0
    %3129 = vmatprep.subr.mxu0 0.0
    %3130 = vmatpush1.msra.mxu0 0.0
    %3131 = vmatprep.subr.mxu0 0.0
    %3132 = vmatpush1.msra.mxu0 0.0
    %3133 = vmatprep.subr.mxu0 0.0
    %3134 = vmatpush1.msra.mxu0 0.0
    %3135 = vmatprep.subr.mxu0 0.0
    %3136 = vmatpush1.msra.mxu0 0.0
    %3137 = vmatprep.subr.mxu0 0.0
    %3138 = vmatpush1.msra.mxu0 0.0
    %3139 = vmatprep.subr.mxu0 0.0
    %3140 = vmatpush1.msra.mxu0 0.0
    %3141 = vmatprep.subr.mxu0 0.0
    %3142 = vmatpush1.msra.mxu0 0.0
    %3143 = vmatprep.subr.mxu0 0.0
    %3144 = vmatpush1.msra.mxu0 0.0
    %3145 = vmatprep.subr.mxu0 0.0
    %3146 = vmatpush1.msra.mxu0 0.0
    %3147 = vmatprep.subr.mxu0 0.0
    %3148 = vmatpush1.msra.mxu0 0.0
    %3149 = vmatprep.subr.mxu0 0.0
    %3150 = vmatpush1.msra.mxu0 0.0
    %3151 = vmatprep.subr.mxu0 0.0
    %3152 = vmatpush1.msra.mxu0 0.0
    %3153 = vmatprep.subr.mxu0 0.0
    %3154 = vmatpush1.msra.mxu0 0.0
    %3155 = vmatprep.subr.mxu0 0.0
    %3156 = vmatpush1.msra.mxu0 0.0
    %3157 = vmatprep.subr.mxu0 0.0
    %3158 = vmatpush1.msra.mxu0 0.0
    %3159 = vmatprep.subr.mxu0 0.0
    %3160 = vmatpush1.msra.mxu0 0.0
    %3161 = vmatprep.mubr.f32.mxu0 0.0
    %3162 = vmatmul.mubr.f32.gmra.mrb[0].mxu0 %v3095
    %v3163 = vpop.f32.mrb[0].mxu0
    %v3164 = vadd.f32 0.0, %v3163
    %v3165 = vpop.f32.mrb[0].mxu0
    %3166 = vdwg.mxu0
    %v3167 = vadd.f32 %v3094, %v3164
    %v3168 = vxor.u32 %v3167, 2147483648
    %v3169 = vmul.f32 %v3168, 1.442695
    %v3170 = vpow.pop %v3169
    %v3171 = vadd.f32 %v3170, 1.0
    %v3172 = vrcp.pop %v3171
    %v3173 = vmul.f32 1.0, %v3172
    %v3174 = vtanh.pop %v3167
    %v3175 = vmul.f32 %v3173, %v3082
    %3177 = vrot.lane.b32.xlu0 %v3174, 64
    %v3178 = vpop.permute.xlu0 %3177
    %v3180 = vmul.f32 %v3173, %v3178
    %3182 = vrot.lane.b32.xlu0 %v3180, 32
    %v3183 = vpop.permute.xlu0 %3182
    %v3185 = vadd.f32 %v3175, %v3183
    %v3186 = vtanh.pop %v3185
    %3188 = vrot.lane.b32.xlu0 %v3186, 64
    %v3189 = vpop.permute.xlu0 %3188
    %v3191 = vmul.f32 %v3173, %v3189
    %3193 = vrot.lane.b32.xlu0 %v3191, 32
    %v3194 = vpop.permute.xlu0 %3193
    %3196 = vst.msk [vmem:[%s1118] sm:$0x3] %vm383, %v3194
    %s3197 = scalar_lea.vmem [#allocation10], 4
    %3198 = vst.msk [vmem:[%s3197] sm:$0x3] %vm383, %v3194
    %3200 = vrot.lane.b32.xlu0 %v3185, 96
    %v3201 = vpop.permute.xlu0 %3200
    %s3203 = scalar_lea.vmem [#allocation11], 4
    %3204 = vst.msk [vmem:[%s3203] sm:$0x3] %vm383, %v3201
    %v3205 = vld [vmem:[#allocation2] sm:$0x3]
    %v3206 = vld [vmem:[#allocation2 + $0x2] sm:$0x3]
    %v3207 = vld [vmem:[#allocation2 + $0x4] sm:$0x3]
    %v3208 = vld [vmem:[#allocation2 + $0x6] sm:$0x3]
    %v3209 = vld [vmem:[#allocation2 + $0x8] sm:$0x3]
    %v3210 = vld [vmem:[#allocation2 + $0xa] sm:$0x3]
    %v3211 = vld [vmem:[#allocation2 + $0xc] sm:$0x3]
    %v3212 = vld [vmem:[#allocation2 + $0xe] sm:$0x3]
    %s3213 = scalar_lea.vmem %s4, 64
    %v3214 = vld [vmem:[%s3213] sm:$0xff]
    %v3215 = vld [vmem:[%s3213 + $0x8] sm:$0xff]
    %v3216 = vld [vmem:[%s3213 + $0x10] sm:$0xff]
    %v3217 = vld [vmem:[%s3213 + $0x18] sm:$0xff]
    %s3218 = scalar_lea.vmem [#allocation9], 3
    %v3219 = vld [vmem:[%s3218] sm:$0x1]
    %v3221 = vlaneseq
    %v3222 = vshrl.u32 %v3221, 7
    %v3223 = vsub.s32 0, %v3222
    %v3224 = vrot.slane %v3219, %v3223
    %v3234 = vcombine.low %v3205, %v3206
    %v3235 = vcombine.low %v3207, %v3208
    %v3237 = vunpack.c.l.s4 1983009808
    %v3238 = vunpack.c.0.s8 %v3237
    %v3239 = vlaneseq
    %v3240 = vshrl.u32 %v3239, 7
    %v3241 = vsub.s32 %v3238, %v3240
    %v3242 = vrot.slane %v3234, %v3241
    %v3244 = vunpack.c.l.s4 1983009808
    %v3245 = vunpack.c.0.s8 %v3244
    %v3246 = vlaneseq
    %v3247 = vshrl.u32 %v3246, 7
    %v3248 = vsub.s32 %v3245, %v3247
    %v3249 = vrot.slane %v3235, %v3248
    %v3250 = vcombine.low %v3242, %v3249
    %v3251 = vcombine.low %v3209, %v3210
    %v3252 = vcombine.low %v3211, %v3212
    %v3254 = vunpack.c.l.s4 1983009808
    %v3255 = vunpack.c.0.s8 %v3254
    %v3256 = vlaneseq
    %v3257 = vshrl.u32 %v3256, 7
    %v3258 = vsub.s32 %v3255, %v3257
    %v3259 = vrot.slane %v3251, %v3258
    %v3261 = vunpack.c.l.s4 1983009808
    %v3262 = vunpack.c.0.s8 %v3261
    %v3263 = vlaneseq
    %v3264 = vshrl.u32 %v3263, 7
    %v3265 = vsub.s32 %v3262, %v3264
    %v3266 = vrot.slane %v3252, %v3265
    %v3267 = vcombine.low %v3259, %v3266
    %v3268 = vsel %vm276, %v3250, 0
    %v3270 = vsel %vm276, %v3267, 0
    %3272 = vmatprep.subr.mxu0 0.0
    %3273 = vmatpush1.msra.mxu0 %v3214
    %3274 = vmatprep.subr.mxu0 0.0
    %3275 = vmatpush1.msra.mxu0 %v3215
    %3276 = vmatprep.subr.mxu0 0.0
    %3277 = vmatpush1.msra.mxu0 %v3216
    %3278 = vmatprep.subr.mxu0 0.0
    %3279 = vmatpush1.msra.mxu0 %v3217
    %3280 = vmatprep.subr.mxu0 0.0
    %3281 = vmatpush1.msra.mxu0 0.0
    %3282 = vmatprep.subr.mxu0 0.0
    %3283 = vmatpush1.msra.mxu0 0.0
    %3284 = vmatprep.subr.mxu0 0.0
    %3285 = vmatpush1.msra.mxu0 0.0
    %3286 = vmatprep.subr.mxu0 0.0
    %3287 = vmatpush1.msra.mxu0 0.0
    %3288 = vmatprep.subr.mxu0 0.0
    %3289 = vmatpush1.msra.mxu0 0.0
    %3290 = vmatprep.subr.mxu0 0.0
    %3291 = vmatpush1.msra.mxu0 0.0
    %3292 = vmatprep.subr.mxu0 0.0
    %3293 = vmatpush1.msra.mxu0 0.0
    %3294 = vmatprep.subr.mxu0 0.0
    %3295 = vmatpush1.msra.mxu0 0.0
    %3296 = vmatprep.subr.mxu0 0.0
    %3297 = vmatpush1.msra.mxu0 0.0
    %3298 = vmatprep.subr.mxu0 0.0
    %3299 = vmatpush1.msra.mxu0 0.0
    %3300 = vmatprep.subr.mxu0 0.0
    %3301 = vmatpush1.msra.mxu0 0.0
    %3302 = vmatprep.subr.mxu0 0.0
    %3303 = vmatpush1.msra.mxu0 0.0
    %3304 = vmatprep.subr.mxu0 0.0
    %3305 = vmatpush1.msra.mxu0 0.0
    %3306 = vmatprep.subr.mxu0 0.0
    %3307 = vmatpush1.msra.mxu0 0.0
    %3308 = vmatprep.subr.mxu0 0.0
    %3309 = vmatpush1.msra.mxu0 0.0
    %3310 = vmatprep.subr.mxu0 0.0
    %3311 = vmatpush1.msra.mxu0 0.0
    %3312 = vmatprep.subr.mxu0 0.0
    %3313 = vmatpush1.msra.mxu0 0.0
    %3314 = vmatprep.subr.mxu0 0.0
    %3315 = vmatpush1.msra.mxu0 0.0
    %3316 = vmatprep.subr.mxu0 0.0
    %3317 = vmatpush1.msra.mxu0 0.0
    %3318 = vmatprep.subr.mxu0 0.0
    %3319 = vmatpush1.msra.mxu0 0.0
    %3320 = vmatprep.subr.mxu0 0.0
    %3321 = vmatpush1.msra.mxu0 0.0
    %3322 = vmatprep.subr.mxu0 0.0
    %3323 = vmatpush1.msra.mxu0 0.0
    %3324 = vmatprep.subr.mxu0 0.0
    %3325 = vmatpush1.msra.mxu0 0.0
    %3326 = vmatprep.subr.mxu0 0.0
    %3327 = vmatpush1.msra.mxu0 0.0
    %3328 = vmatprep.subr.mxu0 0.0
    %3329 = vmatpush1.msra.mxu0 0.0
    %3330 = vmatprep.subr.mxu0 0.0
    %3331 = vmatpush1.msra.mxu0 0.0
    %3332 = vmatprep.subr.mxu0 0.0
    %3333 = vmatpush1.msra.mxu0 0.0
    %3334 = vmatprep.subr.mxu0 0.0
    %3335 = vmatpush1.msra.mxu0 0.0
    %3336 = vmatprep.mubr.f32.mxu0 0.0
    %3337 = vmatmul.mubr.f32.gmra.mrb[0].mxu0 %v3268
    %v3338 = vpop.f32.mrb[0].mxu0
    %v3339 = vadd.f32 %v3224, %v3338
    %v3340 = vpop.f32.mrb[0].mxu0
    %3341 = vmatprep.mubr.f32.mxu0 0.0
    %3342 = vmatmul.mubr.f32.gmra.mrb[0].mxu0 %v3270
    %v3343 = vpop.f32.mrb[0].mxu0
    %v3344 = vadd.f32 %v3224, %v3343
    %v3345 = vpop.f32.mrb[0].mxu0
    %3346 = vdwg.mxu0
    %v3349 = vcombine.high %v3339, %v3339
    %v3351 = vunpack.c.l.s4 1983009808
    %v3352 = vunpack.c.0.s8 %v3351
    %v3353 = vlaneseq
    %v3354 = vshrl.u32 %v3353, 7
    %v3355 = vsub.s32 %v3352, %v3354
    %v3356 = vrot.slane %v3339, %v3355
    %v3358 = vunpack.c.l.s4 1983009808
    %v3359 = vunpack.c.0.s8 %v3358
    %v3360 = vlaneseq
    %v3361 = vshrl.u32 %v3360, 7
    %v3362 = vsub.s32 %v3359, %v3361
    %v3363 = vrot.slane %v3349, %v3362
    %v3364 = vcombine.high %v3356, %v3356
    %v3365 = vcombine.high %v3363, %v3363
    %v3366 = vcombine.high %v3344, %v3344
    %v3368 = vunpack.c.l.s4 1983009808
    %v3369 = vunpack.c.0.s8 %v3368
    %v3370 = vlaneseq
    %v3371 = vshrl.u32 %v3370, 7
    %v3372 = vsub.s32 %v3369, %v3371
    %v3373 = vrot.slane %v3344, %v3372
    %v3375 = vunpack.c.l.s4 1983009808
    %v3376 = vunpack.c.0.s8 %v3375
    %v3377 = vlaneseq
    %v3378 = vshrl.u32 %v3377, 7
    %v3379 = vsub.s32 %v3376, %v3378
    %v3380 = vrot.slane %v3366, %v3379
    %v3381 = vcombine.high %v3373, %v3373
    %v3382 = vcombine.high %v3380, %v3380
    %3391 = vst [vmem:[#allocation3] sm:$0x3] %v3356
    %3392 = vst [vmem:[#allocation3 + $0x2] sm:$0x3] %v3364
    %3393 = vst [vmem:[#allocation3 + $0x4] sm:$0x3] %v3363
    %3394 = vst [vmem:[#allocation3 + $0x6] sm:$0x3] %v3365
    %3395 = vst [vmem:[#allocation3 + $0x8] sm:$0x3] %v3373
    %3396 = vst [vmem:[#allocation3 + $0xa] sm:$0x3] %v3381
    %3397 = vst [vmem:[#allocation3 + $0xc] sm:$0x3] %v3380
    %3398 = vst [vmem:[#allocation3 + $0xe] sm:$0x3] %v3382
    %s3399 = scalar_lea.vmem %s5, 96
    %v3400 = vld [vmem:[%s3399] sm:$0xff]
    %v3401 = vld [vmem:[%s3399 + $0x8] sm:$0xff]
    %v3402 = vld [vmem:[%s3399 + $0x10] sm:$0xff]
    %v3403 = vld [vmem:[%s3399 + $0x18] sm:$0xff]
    %s3404 = scalar_lea.vmem [#allocation4], 6
    %v3405 = vld [vmem:[%s3404] sm:$0x3]
    %s3406 = scalar_lea.vmem [#allocation7], 6
    %v3407 = vld [vmem:[%s3406] sm:$0x3]
    %v3408 = vld [vmem:[#allocation3] sm:$0x3]
    %v3410 = vsel %vm276, %v3405, 0
    %3412 = vmatprep.subr.mxu0 0.0
    %3413 = vmatpush1.msra.mxu0 %v3400
    %3414 = vmatprep.subr.mxu0 0.0
    %3415 = vmatpush1.msra.mxu0 %v3401
    %3416 = vmatprep.subr.mxu0 0.0
    %3417 = vmatpush1.msra.mxu0 %v3402
    %3418 = vmatprep.subr.mxu0 0.0
    %3419 = vmatpush1.msra.mxu0 %v3403
    %3420 = vmatprep.subr.mxu0 0.0
    %3421 = vmatpush1.msra.mxu0 0.0
    %3422 = vmatprep.subr.mxu0 0.0
    %3423 = vmatpush1.msra.mxu0 0.0
    %3424 = vmatprep.subr.mxu0 0.0
    %3425 = vmatpush1.msra.mxu0 0.0
    %3426 = vmatprep.subr.mxu0 0.0
    %3427 = vmatpush1.msra.mxu0 0.0
    %3428 = vmatprep.subr.mxu0 0.0
    %3429 = vmatpush1.msra.mxu0 0.0
    %3430 = vmatprep.subr.mxu0 0.0
    %3431 = vmatpush1.msra.mxu0 0.0
    %3432 = vmatprep.subr.mxu0 0.0
    %3433 = vmatpush1.msra.mxu0 0.0
    %3434 = vmatprep.subr.mxu0 0.0
    %3435 = vmatpush1.msra.mxu0 0.0
    %3436 = vmatprep.subr.mxu0 0.0
    %3437 = vmatpush1.msra.mxu0 0.0
    %3438 = vmatprep.subr.mxu0 0.0
    %3439 = vmatpush1.msra.mxu0 0.0
    %3440 = vmatprep.subr.mxu0 0.0
    %3441 = vmatpush1.msra.mxu0 0.0
    %3442 = vmatprep.subr.mxu0 0.0
    %3443 = vmatpush1.msra.mxu0 0.0
    %3444 = vmatprep.subr.mxu0 0.0
    %3445 = vmatpush1.msra.mxu0 0.0
    %3446 = vmatprep.subr.mxu0 0.0
    %3447 = vmatpush1.msra.mxu0 0.0
    %3448 = vmatprep.subr.mxu0 0.0
    %3449 = vmatpush1.msra.mxu0 0.0
    %3450 = vmatprep.subr.mxu0 0.0
    %3451 = vmatpush1.msra.mxu0 0.0
    %3452 = vmatprep.subr.mxu0 0.0
    %3453 = vmatpush1.msra.mxu0 0.0
    %3454 = vmatprep.subr.mxu0 0.0
    %3455 = vmatpush1.msra.mxu0 0.0
    %3456 = vmatprep.subr.mxu0 0.0
    %3457 = vmatpush1.msra.mxu0 0.0
    %3458 = vmatprep.subr.mxu0 0.0
    %3459 = vmatpush1.msra.mxu0 0.0
    %3460 = vmatprep.subr.mxu0 0.0
    %3461 = vmatpush1.msra.mxu0 0.0
    %3462 = vmatprep.subr.mxu0 0.0
    %3463 = vmatpush1.msra.mxu0 0.0
    %3464 = vmatprep.subr.mxu0 0.0
    %3465 = vmatpush1.msra.mxu0 0.0
    %3466 = vmatprep.subr.mxu0 0.0
    %3467 = vmatpush1.msra.mxu0 0.0
    %3468 = vmatprep.subr.mxu0 0.0
    %3469 = vmatpush1.msra.mxu0 0.0
    %3470 = vmatprep.subr.mxu0 0.0
    %3471 = vmatpush1.msra.mxu0 0.0
    %3472 = vmatprep.subr.mxu0 0.0
    %3473 = vmatpush1.msra.mxu0 0.0
    %3474 = vmatprep.subr.mxu0 0.0
    %3475 = vmatpush1.msra.mxu0 0.0
    %3476 = vmatprep.mubr.f32.mxu0 0.0
    %3477 = vmatmul.mubr.f32.gmra.mrb[0].mxu0 %v3410
    %v3478 = vpop.f32.mrb[0].mxu0
    %v3479 = vadd.f32 0.0, %v3478
    %v3480 = vpop.f32.mrb[0].mxu0
    %3481 = vdwg.mxu0
    %v3482 = vadd.f32 %v3408, %v3479
    %v3483 = vxor.u32 %v3482, 2147483648
    %v3484 = vmul.f32 %v3483, 1.442695
    %v3485 = vpow.pop %v3484
    %v3486 = vadd.f32 %v3485, 1.0
    %v3487 = vrcp.pop %v3486
    %v3488 = vmul.f32 1.0, %v3487
    %v3489 = vtanh.pop %v3482
    %3491 = vrot.lane.b32.xlu0 %v3407, 32
    %v3492 = vpop.permute.xlu0 %3491
    %v3494 = vmul.f32 %v3488, %v3492
    %3496 = vrot.lane.b32.xlu0 %v3489, 64
    %v3497 = vpop.permute.xlu0 %3496
    %v3499 = vmul.f32 %v3488, %v3497
    %3501 = vrot.lane.b32.xlu0 %v3499, 32
    %v3502 = vpop.permute.xlu0 %3501
    %v3504 = vadd.f32 %v3494, %v3502
    %v3505 = vtanh.pop %v3504
    %3507 = vrot.lane.b32.xlu0 %v3505, 64
    %v3508 = vpop.permute.xlu0 %3507
    %v3510 = vmul.f32 %v3488, %v3508
    %3512 = vrot.lane.b32.xlu0 %v3510, 32
    %v3513 = vpop.permute.xlu0 %3512
    %3515 = vst.msk [vmem:[#allocation2] sm:$0x3] %vm383, %v3513
    %v3516 = vld [vmem:[%s385] sm:$0x3]
    %v3517 = vsel %vm276, %v3513, 0
    %3519 = vmatprep.subr.mxu0 0.0
    %3520 = vmatpush1.msra.mxu0 %v3400
    %3521 = vmatprep.subr.mxu0 0.0
    %3522 = vmatpush1.msra.mxu0 %v3401
    %3523 = vmatprep.subr.mxu0 0.0
    %3524 = vmatpush1.msra.mxu0 %v3402
    %3525 = vmatprep.subr.mxu0 0.0
    %3526 = vmatpush1.msra.mxu0 %v3403
    %3527 = vmatprep.subr.mxu0 0.0
    %3528 = vmatpush1.msra.mxu0 0.0
    %3529 = vmatprep.subr.mxu0 0.0
    %3530 = vmatpush1.msra.mxu0 0.0
    %3531 = vmatprep.subr.mxu0 0.0
    %3532 = vmatpush1.msra.mxu0 0.0
    %3533 = vmatprep.subr.mxu0 0.0
    %3534 = vmatpush1.msra.mxu0 0.0
    %3535 = vmatprep.subr.mxu0 0.0
    %3536 = vmatpush1.msra.mxu0 0.0
    %3537 = vmatprep.subr.mxu0 0.0
    %3538 = vmatpush1.msra.mxu0 0.0
    %3539 = vmatprep.subr.mxu0 0.0
    %3540 = vmatpush1.msra.mxu0 0.0
    %3541 = vmatprep.subr.mxu0 0.0
    %3542 = vmatpush1.msra.mxu0 0.0
    %3543 = vmatprep.subr.mxu0 0.0
    %3544 = vmatpush1.msra.mxu0 0.0
    %3545 = vmatprep.subr.mxu0 0.0
    %3546 = vmatpush1.msra.mxu0 0.0
    %3547 = vmatprep.subr.mxu0 0.0
    %3548 = vmatpush1.msra.mxu0 0.0
    %3549 = vmatprep.subr.mxu0 0.0
    %3550 = vmatpush1.msra.mxu0 0.0
    %3551 = vmatprep.subr.mxu0 0.0
    %3552 = vmatpush1.msra.mxu0 0.0
    %3553 = vmatprep.subr.mxu0 0.0
    %3554 = vmatpush1.msra.mxu0 0.0
    %3555 = vmatprep.subr.mxu0 0.0
    %3556 = vmatpush1.msra.mxu0 0.0
    %3557 = vmatprep.subr.mxu0 0.0
    %3558 = vmatpush1.msra.mxu0 0.0
    %3559 = vmatprep.subr.mxu0 0.0
    %3560 = vmatpush1.msra.mxu0 0.0
    %3561 = vmatprep.subr.mxu0 0.0
    %3562 = vmatpush1.msra.mxu0 0.0
    %3563 = vmatprep.subr.mxu0 0.0
    %3564 = vmatpush1.msra.mxu0 0.0
    %3565 = vmatprep.subr.mxu0 0.0
    %3566 = vmatpush1.msra.mxu0 0.0
    %3567 = vmatprep.subr.mxu0 0.0
    %3568 = vmatpush1.msra.mxu0 0.0
    %3569 = vmatprep.subr.mxu0 0.0
    %3570 = vmatpush1.msra.mxu0 0.0
    %3571 = vmatprep.subr.mxu0 0.0
    %3572 = vmatpush1.msra.mxu0 0.0
    %3573 = vmatprep.subr.mxu0 0.0
    %3574 = vmatpush1.msra.mxu0 0.0
    %3575 = vmatprep.subr.mxu0 0.0
    %3576 = vmatpush1.msra.mxu0 0.0
    %3577 = vmatprep.subr.mxu0 0.0
    %3578 = vmatpush1.msra.mxu0 0.0
    %3579 = vmatprep.subr.mxu0 0.0
    %3580 = vmatpush1.msra.mxu0 0.0
    %3581 = vmatprep.subr.mxu0 0.0
    %3582 = vmatpush1.msra.mxu0 0.0
    %3583 = vmatprep.mubr.f32.mxu0 0.0
    %3584 = vmatmul.mubr.f32.gmra.mrb[0].mxu0 %v3517
    %v3585 = vpop.f32.mrb[0].mxu0
    %v3586 = vadd.f32 0.0, %v3585
    %v3587 = vpop.f32.mrb[0].mxu0
    %3588 = vdwg.mxu0
    %v3589 = vadd.f32 %v3516, %v3586
    %v3590 = vxor.u32 %v3589, 2147483648
    %v3591 = vmul.f32 %v3590, 1.442695
    %v3592 = vpow.pop %v3591
    %v3593 = vadd.f32 %v3592, 1.0
    %v3594 = vrcp.pop %v3593
    %v3595 = vmul.f32 1.0, %v3594
    %v3596 = vtanh.pop %v3589
    %v3597 = vmul.f32 %v3595, %v3504
    %3599 = vrot.lane.b32.xlu0 %v3596, 64
    %v3600 = vpop.permute.xlu0 %3599
    %v3602 = vmul.f32 %v3595, %v3600
    %3604 = vrot.lane.b32.xlu0 %v3602, 32
    %v3605 = vpop.permute.xlu0 %3604
    %v3607 = vadd.f32 %v3597, %v3605
    %v3608 = vtanh.pop %v3607
    %3610 = vrot.lane.b32.xlu0 %v3608, 64
    %v3611 = vpop.permute.xlu0 %3610
    %v3613 = vmul.f32 %v3595, %v3611
    %3615 = vrot.lane.b32.xlu0 %v3613, 32
    %v3616 = vpop.permute.xlu0 %3615
    %3618 = vst.msk [vmem:[%s488] sm:$0x3] %vm383, %v3616
    %v3619 = vld [vmem:[%s490] sm:$0x3]
    %v3620 = vsel %vm276, %v3616, 0
    %3622 = vmatprep.subr.mxu0 0.0
    %3623 = vmatpush1.msra.mxu0 %v3400
    %3624 = vmatprep.subr.mxu0 0.0
    %3625 = vmatpush1.msra.mxu0 %v3401
    %3626 = vmatprep.subr.mxu0 0.0
    %3627 = vmatpush1.msra.mxu0 %v3402
    %3628 = vmatprep.subr.mxu0 0.0
    %3629 = vmatpush1.msra.mxu0 %v3403
    %3630 = vmatprep.subr.mxu0 0.0
    %3631 = vmatpush1.msra.mxu0 0.0
    %3632 = vmatprep.subr.mxu0 0.0
    %3633 = vmatpush1.msra.mxu0 0.0
    %3634 = vmatprep.subr.mxu0 0.0
    %3635 = vmatpush1.msra.mxu0 0.0
    %3636 = vmatprep.subr.mxu0 0.0
    %3637 = vmatpush1.msra.mxu0 0.0
    %3638 = vmatprep.subr.mxu0 0.0
    %3639 = vmatpush1.msra.mxu0 0.0
    %3640 = vmatprep.subr.mxu0 0.0
    %3641 = vmatpush1.msra.mxu0 0.0
    %3642 = vmatprep.subr.mxu0 0.0
    %3643 = vmatpush1.msra.mxu0 0.0
    %3644 = vmatprep.subr.mxu0 0.0
    %3645 = vmatpush1.msra.mxu0 0.0
    %3646 = vmatprep.subr.mxu0 0.0
    %3647 = vmatpush1.msra.mxu0 0.0
    %3648 = vmatprep.subr.mxu0 0.0
    %3649 = vmatpush1.msra.mxu0 0.0
    %3650 = vmatprep.subr.mxu0 0.0
    %3651 = vmatpush1.msra.mxu0 0.0
    %3652 = vmatprep.subr.mxu0 0.0
    %3653 = vmatpush1.msra.mxu0 0.0
    %3654 = vmatprep.subr.mxu0 0.0
    %3655 = vmatpush1.msra.mxu0 0.0
    %3656 = vmatprep.subr.mxu0 0.0
    %3657 = vmatpush1.msra.mxu0 0.0
    %3658 = vmatprep.subr.mxu0 0.0
    %3659 = vmatpush1.msra.mxu0 0.0
    %3660 = vmatprep.subr.mxu0 0.0
    %3661 = vmatpush1.msra.mxu0 0.0
    %3662 = vmatprep.subr.mxu0 0.0
    %3663 = vmatpush1.msra.mxu0 0.0
    %3664 = vmatprep.subr.mxu0 0.0
    %3665 = vmatpush1.msra.mxu0 0.0
    %3666 = vmatprep.subr.mxu0 0.0
    %3667 = vmatpush1.msra.mxu0 0.0
    %3668 = vmatprep.subr.mxu0 0.0
    %3669 = vmatpush1.msra.mxu0 0.0
    %3670 = vmatprep.subr.mxu0 0.0
    %3671 = vmatpush1.msra.mxu0 0.0
    %3672 = vmatprep.subr.mxu0 0.0
    %3673 = vmatpush1.msra.mxu0 0.0
    %3674 = vmatprep.subr.mxu0 0.0
    %3675 = vmatpush1.msra.mxu0 0.0
    %3676 = vmatprep.subr.mxu0 0.0
    %3677 = vmatpush1.msra.mxu0 0.0
    %3678 = vmatprep.subr.mxu0 0.0
    %3679 = vmatpush1.msra.mxu0 0.0
    %3680 = vmatprep.subr.mxu0 0.0
    %3681 = vmatpush1.msra.mxu0 0.0
    %3682 = vmatprep.subr.mxu0 0.0
    %3683 = vmatpush1.msra.mxu0 0.0
    %3684 = vmatprep.subr.mxu0 0.0
    %3685 = vmatpush1.msra.mxu0 0.0
    %3686 = vmatprep.mubr.f32.mxu0 0.0
    %3687 = vmatmul.mubr.f32.gmra.mrb[0].mxu0 %v3620
    %v3688 = vpop.f32.mrb[0].mxu0
    %v3689 = vadd.f32 0.0, %v3688
    %v3690 = vpop.f32.mrb[0].mxu0
    %3691 = vdwg.mxu0
    %v3692 = vadd.f32 %v3619, %v3689
    %v3693 = vxor.u32 %v3692, 2147483648
    %v3694 = vmul.f32 %v3693, 1.442695
    %v3695 = vpow.pop %v3694
    %v3696 = vadd.f32 %v3695, 1.0
    %v3697 = vrcp.pop %v3696
    %v3698 = vmul.f32 1.0, %v3697
    %v3699 = vtanh.pop %v3692
    %v3700 = vmul.f32 %v3698, %v3607
    %3702 = vrot.lane.b32.xlu0 %v3699, 64
    %v3703 = vpop.permute.xlu0 %3702
    %v3705 = vmul.f32 %v3698, %v3703
    %3707 = vrot.lane.b32.xlu0 %v3705, 32
    %v3708 = vpop.permute.xlu0 %3707
    %v3710 = vadd.f32 %v3700, %v3708
    %v3711 = vtanh.pop %v3710
    %3713 = vrot.lane.b32.xlu0 %v3711, 64
    %v3714 = vpop.permute.xlu0 %3713
    %v3716 = vmul.f32 %v3698, %v3714
    %3718 = vrot.lane.b32.xlu0 %v3716, 32
    %v3719 = vpop.permute.xlu0 %3718
    %3721 = vst.msk [vmem:[%s593] sm:$0x3] %vm383, %v3719
    %v3722 = vld [vmem:[%s595] sm:$0x3]
    %v3723 = vsel %vm276, %v3719, 0
    %3725 = vmatprep.subr.mxu0 0.0
    %3726 = vmatpush1.msra.mxu0 %v3400
    %3727 = vmatprep.subr.mxu0 0.0
    %3728 = vmatpush1.msra.mxu0 %v3401
    %3729 = vmatprep.subr.mxu0 0.0
    %3730 = vmatpush1.msra.mxu0 %v3402
    %3731 = vmatprep.subr.mxu0 0.0
    %3732 = vmatpush1.msra.mxu0 %v3403
    %3733 = vmatprep.subr.mxu0 0.0
    %3734 = vmatpush1.msra.mxu0 0.0
    %3735 = vmatprep.subr.mxu0 0.0
    %3736 = vmatpush1.msra.mxu0 0.0
    %3737 = vmatprep.subr.mxu0 0.0
    %3738 = vmatpush1.msra.mxu0 0.0
    %3739 = vmatprep.subr.mxu0 0.0
    %3740 = vmatpush1.msra.mxu0 0.0
    %3741 = vmatprep.subr.mxu0 0.0
    %3742 = vmatpush1.msra.mxu0 0.0
    %3743 = vmatprep.subr.mxu0 0.0
    %3744 = vmatpush1.msra.mxu0 0.0
    %3745 = vmatprep.subr.mxu0 0.0
    %3746 = vmatpush1.msra.mxu0 0.0
    %3747 = vmatprep.subr.mxu0 0.0
    %3748 = vmatpush1.msra.mxu0 0.0
    %3749 = vmatprep.subr.mxu0 0.0
    %3750 = vmatpush1.msra.mxu0 0.0
    %3751 = vmatprep.subr.mxu0 0.0
    %3752 = vmatpush1.msra.mxu0 0.0
    %3753 = vmatprep.subr.mxu0 0.0
    %3754 = vmatpush1.msra.mxu0 0.0
    %3755 = vmatprep.subr.mxu0 0.0
    %3756 = vmatpush1.msra.mxu0 0.0
    %3757 = vmatprep.subr.mxu0 0.0
    %3758 = vmatpush1.msra.mxu0 0.0
    %3759 = vmatprep.subr.mxu0 0.0
    %3760 = vmatpush1.msra.mxu0 0.0
    %3761 = vmatprep.subr.mxu0 0.0
    %3762 = vmatpush1.msra.mxu0 0.0
    %3763 = vmatprep.subr.mxu0 0.0
    %3764 = vmatpush1.msra.mxu0 0.0
    %3765 = vmatprep.subr.mxu0 0.0
    %3766 = vmatpush1.msra.mxu0 0.0
    %3767 = vmatprep.subr.mxu0 0.0
    %3768 = vmatpush1.msra.mxu0 0.0
    %3769 = vmatprep.subr.mxu0 0.0
    %3770 = vmatpush1.msra.mxu0 0.0
    %3771 = vmatprep.subr.mxu0 0.0
    %3772 = vmatpush1.msra.mxu0 0.0
    %3773 = vmatprep.subr.mxu0 0.0
    %3774 = vmatpush1.msra.mxu0 0.0
    %3775 = vmatprep.subr.mxu0 0.0
    %3776 = vmatpush1.msra.mxu0 0.0
    %3777 = vmatprep.subr.mxu0 0.0
    %3778 = vmatpush1.msra.mxu0 0.0
    %3779 = vmatprep.subr.mxu0 0.0
    %3780 = vmatpush1.msra.mxu0 0.0
    %3781 = vmatprep.subr.mxu0 0.0
    %3782 = vmatpush1.msra.mxu0 0.0
    %3783 = vmatprep.subr.mxu0 0.0
    %3784 = vmatpush1.msra.mxu0 0.0
    %3785 = vmatprep.subr.mxu0 0.0
    %3786 = vmatpush1.msra.mxu0 0.0
    %3787 = vmatprep.subr.mxu0 0.0
    %3788 = vmatpush1.msra.mxu0 0.0
    %3789 = vmatprep.mubr.f32.mxu0 0.0
    %3790 = vmatmul.mubr.f32.gmra.mrb[0].mxu0 %v3723
    %v3791 = vpop.f32.mrb[0].mxu0
    %v3792 = vadd.f32 0.0, %v3791
    %v3793 = vpop.f32.mrb[0].mxu0
    %3794 = vdwg.mxu0
    %v3795 = vadd.f32 %v3722, %v3792
    %v3796 = vxor.u32 %v3795, 2147483648
    %v3797 = vmul.f32 %v3796, 1.442695
    %v3798 = vpow.pop %v3797
    %v3799 = vadd.f32 %v3798, 1.0
    %v3800 = vrcp.pop %v3799
    %v3801 = vmul.f32 1.0, %v3800
    %v3802 = vtanh.pop %v3795
    %v3803 = vmul.f32 %v3801, %v3710
    %3805 = vrot.lane.b32.xlu0 %v3802, 64
    %v3806 = vpop.permute.xlu0 %3805
    %v3808 = vmul.f32 %v3801, %v3806
    %3810 = vrot.lane.b32.xlu0 %v3808, 32
    %v3811 = vpop.permute.xlu0 %3810
    %v3813 = vadd.f32 %v3803, %v3811
    %v3814 = vtanh.pop %v3813
    %3816 = vrot.lane.b32.xlu0 %v3814, 64
    %v3817 = vpop.permute.xlu0 %3816
    %v3819 = vmul.f32 %v3801, %v3817
    %3821 = vrot.lane.b32.xlu0 %v3819, 32
    %v3822 = vpop.permute.xlu0 %3821
    %3824 = vst.msk [vmem:[%s698] sm:$0x3] %vm383, %v3822
    %v3825 = vld [vmem:[%s700] sm:$0x3]
    %v3826 = vsel %vm276, %v3822, 0
    %3828 = vmatprep.subr.mxu0 0.0
    %3829 = vmatpush1.msra.mxu0 %v3400
    %3830 = vmatprep.subr.mxu0 0.0
    %3831 = vmatpush1.msra.mxu0 %v3401
    %3832 = vmatprep.subr.mxu0 0.0
    %3833 = vmatpush1.msra.mxu0 %v3402
    %3834 = vmatprep.subr.mxu0 0.0
    %3835 = vmatpush1.msra.mxu0 %v3403
    %3836 = vmatprep.subr.mxu0 0.0
    %3837 = vmatpush1.msra.mxu0 0.0
    %3838 = vmatprep.subr.mxu0 0.0
    %3839 = vmatpush1.msra.mxu0 0.0
    %3840 = vmatprep.subr.mxu0 0.0
    %3841 = vmatpush1.msra.mxu0 0.0
    %3842 = vmatprep.subr.mxu0 0.0
    %3843 = vmatpush1.msra.mxu0 0.0
    %3844 = vmatprep.subr.mxu0 0.0
    %3845 = vmatpush1.msra.mxu0 0.0
    %3846 = vmatprep.subr.mxu0 0.0
    %3847 = vmatpush1.msra.mxu0 0.0
    %3848 = vmatprep.subr.mxu0 0.0
    %3849 = vmatpush1.msra.mxu0 0.0
    %3850 = vmatprep.subr.mxu0 0.0
    %3851 = vmatpush1.msra.mxu0 0.0
    %3852 = vmatprep.subr.mxu0 0.0
    %3853 = vmatpush1.msra.mxu0 0.0
    %3854 = vmatprep.subr.mxu0 0.0
    %3855 = vmatpush1.msra.mxu0 0.0
    %3856 = vmatprep.subr.mxu0 0.0
    %3857 = vmatpush1.msra.mxu0 0.0
    %3858 = vmatprep.subr.mxu0 0.0
    %3859 = vmatpush1.msra.mxu0 0.0
    %3860 = vmatprep.subr.mxu0 0.0
    %3861 = vmatpush1.msra.mxu0 0.0
    %3862 = vmatprep.subr.mxu0 0.0
    %3863 = vmatpush1.msra.mxu0 0.0
    %3864 = vmatprep.subr.mxu0 0.0
    %3865 = vmatpush1.msra.mxu0 0.0
    %3866 = vmatprep.subr.mxu0 0.0
    %3867 = vmatpush1.msra.mxu0 0.0
    %3868 = vmatprep.subr.mxu0 0.0
    %3869 = vmatpush1.msra.mxu0 0.0
    %3870 = vmatprep.subr.mxu0 0.0
    %3871 = vmatpush1.msra.mxu0 0.0
    %3872 = vmatprep.subr.mxu0 0.0
    %3873 = vmatpush1.msra.mxu0 0.0
    %3874 = vmatprep.subr.mxu0 0.0
    %3875 = vmatpush1.msra.mxu0 0.0
    %3876 = vmatprep.subr.mxu0 0.0
    %3877 = vmatpush1.msra.mxu0 0.0
    %3878 = vmatprep.subr.mxu0 0.0
    %3879 = vmatpush1.msra.mxu0 0.0
    %3880 = vmatprep.subr.mxu0 0.0
    %3881 = vmatpush1.msra.mxu0 0.0
    %3882 = vmatprep.subr.mxu0 0.0
    %3883 = vmatpush1.msra.mxu0 0.0
    %3884 = vmatprep.subr.mxu0 0.0
    %3885 = vmatpush1.msra.mxu0 0.0
    %3886 = vmatprep.subr.mxu0 0.0
    %3887 = vmatpush1.msra.mxu0 0.0
    %3888 = vmatprep.subr.mxu0 0.0
    %3889 = vmatpush1.msra.mxu0 0.0
    %3890 = vmatprep.subr.mxu0 0.0
    %3891 = vmatpush1.msra.mxu0 0.0
    %3892 = vmatprep.mubr.f32.mxu0 0.0
    %3893 = vmatmul.mubr.f32.gmra.mrb[0].mxu0 %v3826
    %v3894 = vpop.f32.mrb[0].mxu0
    %v3895 = vadd.f32 0.0, %v3894
    %v3896 = vpop.f32.mrb[0].mxu0
    %3897 = vdwg.mxu0
    %v3898 = vadd.f32 %v3825, %v3895
    %v3899 = vxor.u32 %v3898, 2147483648
    %v3900 = vmul.f32 %v3899, 1.442695
    %v3901 = vpow.pop %v3900
    %v3902 = vadd.f32 %v3901, 1.0
    %v3903 = vrcp.pop %v3902
    %v3904 = vmul.f32 1.0, %v3903
    %v3905 = vtanh.pop %v3898
    %v3906 = vmul.f32 %v3904, %v3813
    %3908 = vrot.lane.b32.xlu0 %v3905, 64
    %v3909 = vpop.permute.xlu0 %3908
    %v3911 = vmul.f32 %v3904, %v3909
    %3913 = vrot.lane.b32.xlu0 %v3911, 32
    %v3914 = vpop.permute.xlu0 %3913
    %v3916 = vadd.f32 %v3906, %v3914
    %v3917 = vtanh.pop %v3916
    %3919 = vrot.lane.b32.xlu0 %v3917, 64
    %v3920 = vpop.permute.xlu0 %3919
    %v3922 = vmul.f32 %v3904, %v3920
    %3924 = vrot.lane.b32.xlu0 %v3922, 32
    %v3925 = vpop.permute.xlu0 %3924
    %3927 = vst.msk [vmem:[%s803] sm:$0x3] %vm383, %v3925
    %v3928 = vld [vmem:[%s805] sm:$0x3]
    %v3929 = vsel %vm276, %v3925, 0
    %3931 = vmatprep.subr.mxu0 0.0
    %3932 = vmatpush1.msra.mxu0 %v3400
    %3933 = vmatprep.subr.mxu0 0.0
    %3934 = vmatpush1.msra.mxu0 %v3401
    %3935 = vmatprep.subr.mxu0 0.0
    %3936 = vmatpush1.msra.mxu0 %v3402
    %3937 = vmatprep.subr.mxu0 0.0
    %3938 = vmatpush1.msra.mxu0 %v3403
    %3939 = vmatprep.subr.mxu0 0.0
    %3940 = vmatpush1.msra.mxu0 0.0
    %3941 = vmatprep.subr.mxu0 0.0
    %3942 = vmatpush1.msra.mxu0 0.0
    %3943 = vmatprep.subr.mxu0 0.0
    %3944 = vmatpush1.msra.mxu0 0.0
    %3945 = vmatprep.subr.mxu0 0.0
    %3946 = vmatpush1.msra.mxu0 0.0
    %3947 = vmatprep.subr.mxu0 0.0
    %3948 = vmatpush1.msra.mxu0 0.0
    %3949 = vmatprep.subr.mxu0 0.0
    %3950 = vmatpush1.msra.mxu0 0.0
    %3951 = vmatprep.subr.mxu0 0.0
    %3952 = vmatpush1.msra.mxu0 0.0
    %3953 = vmatprep.subr.mxu0 0.0
    %3954 = vmatpush1.msra.mxu0 0.0
    %3955 = vmatprep.subr.mxu0 0.0
    %3956 = vmatpush1.msra.mxu0 0.0
    %3957 = vmatprep.subr.mxu0 0.0
    %3958 = vmatpush1.msra.mxu0 0.0
    %3959 = vmatprep.subr.mxu0 0.0
    %3960 = vmatpush1.msra.mxu0 0.0
    %3961 = vmatprep.subr.mxu0 0.0
    %3962 = vmatpush1.msra.mxu0 0.0
    %3963 = vmatprep.subr.mxu0 0.0
    %3964 = vmatpush1.msra.mxu0 0.0
    %3965 = vmatprep.subr.mxu0 0.0
    %3966 = vmatpush1.msra.mxu0 0.0
    %3967 = vmatprep.subr.mxu0 0.0
    %3968 = vmatpush1.msra.mxu0 0.0
    %3969 = vmatprep.subr.mxu0 0.0
    %3970 = vmatpush1.msra.mxu0 0.0
    %3971 = vmatprep.subr.mxu0 0.0
    %3972 = vmatpush1.msra.mxu0 0.0
    %3973 = vmatprep.subr.mxu0 0.0
    %3974 = vmatpush1.msra.mxu0 0.0
    %3975 = vmatprep.subr.mxu0 0.0
    %3976 = vmatpush1.msra.mxu0 0.0
    %3977 = vmatprep.subr.mxu0 0.0
    %3978 = vmatpush1.msra.mxu0 0.0
    %3979 = vmatprep.subr.mxu0 0.0
    %3980 = vmatpush1.msra.mxu0 0.0
    %3981 = vmatprep.subr.mxu0 0.0
    %3982 = vmatpush1.msra.mxu0 0.0
    %3983 = vmatprep.subr.mxu0 0.0
    %3984 = vmatpush1.msra.mxu0 0.0
    %3985 = vmatprep.subr.mxu0 0.0
    %3986 = vmatpush1.msra.mxu0 0.0
    %3987 = vmatprep.subr.mxu0 0.0
    %3988 = vmatpush1.msra.mxu0 0.0
    %3989 = vmatprep.subr.mxu0 0.0
    %3990 = vmatpush1.msra.mxu0 0.0
    %3991 = vmatprep.subr.mxu0 0.0
    %3992 = vmatpush1.msra.mxu0 0.0
    %3993 = vmatprep.subr.mxu0 0.0
    %3994 = vmatpush1.msra.mxu0 0.0
    %3995 = vmatprep.mubr.f32.mxu0 0.0
    %3996 = vmatmul.mubr.f32.gmra.mrb[0].mxu0 %v3929
    %v3997 = vpop.f32.mrb[0].mxu0
    %v3998 = vadd.f32 0.0, %v3997
    %v3999 = vpop.f32.mrb[0].mxu0
    %4000 = vdwg.mxu0
    %v4001 = vadd.f32 %v3928, %v3998
    %v4002 = vxor.u32 %v4001, 2147483648
    %v4003 = vmul.f32 %v4002, 1.442695
    %v4004 = vpow.pop %v4003
    %v4005 = vadd.f32 %v4004, 1.0
    %v4006 = vrcp.pop %v4005
    %v4007 = vmul.f32 1.0, %v4006
    %v4008 = vtanh.pop %v4001
    %v4009 = vmul.f32 %v4007, %v3916
    %4011 = vrot.lane.b32.xlu0 %v4008, 64
    %v4012 = vpop.permute.xlu0 %4011
    %v4014 = vmul.f32 %v4007, %v4012
    %4016 = vrot.lane.b32.xlu0 %v4014, 32
    %v4017 = vpop.permute.xlu0 %4016
    %v4019 = vadd.f32 %v4009, %v4017
    %v4020 = vtanh.pop %v4019
    %4022 = vrot.lane.b32.xlu0 %v4020, 64
    %v4023 = vpop.permute.xlu0 %4022
    %v4025 = vmul.f32 %v4007, %v4023
    %4027 = vrot.lane.b32.xlu0 %v4025, 32
    %v4028 = vpop.permute.xlu0 %4027
    %4030 = vst.msk [vmem:[%s908] sm:$0x3] %vm383, %v4028
    %v4031 = vld [vmem:[%s910] sm:$0x3]
    %v4032 = vsel %vm276, %v4028, 0
    %4034 = vmatprep.subr.mxu0 0.0
    %4035 = vmatpush1.msra.mxu0 %v3400
    %4036 = vmatprep.subr.mxu0 0.0
    %4037 = vmatpush1.msra.mxu0 %v3401
    %4038 = vmatprep.subr.mxu0 0.0
    %4039 = vmatpush1.msra.mxu0 %v3402
    %4040 = vmatprep.subr.mxu0 0.0
    %4041 = vmatpush1.msra.mxu0 %v3403
    %4042 = vmatprep.subr.mxu0 0.0
    %4043 = vmatpush1.msra.mxu0 0.0
    %4044 = vmatprep.subr.mxu0 0.0
    %4045 = vmatpush1.msra.mxu0 0.0
    %4046 = vmatprep.subr.mxu0 0.0
    %4047 = vmatpush1.msra.mxu0 0.0
    %4048 = vmatprep.subr.mxu0 0.0
    %4049 = vmatpush1.msra.mxu0 0.0
    %4050 = vmatprep.subr.mxu0 0.0
    %4051 = vmatpush1.msra.mxu0 0.0
    %4052 = vmatprep.subr.mxu0 0.0
    %4053 = vmatpush1.msra.mxu0 0.0
    %4054 = vmatprep.subr.mxu0 0.0
    %4055 = vmatpush1.msra.mxu0 0.0
    %4056 = vmatprep.subr.mxu0 0.0
    %4057 = vmatpush1.msra.mxu0 0.0
    %4058 = vmatprep.subr.mxu0 0.0
    %4059 = vmatpush1.msra.mxu0 0.0
    %4060 = vmatprep.subr.mxu0 0.0
    %4061 = vmatpush1.msra.mxu0 0.0
    %4062 = vmatprep.subr.mxu0 0.0
    %4063 = vmatpush1.msra.mxu0 0.0
    %4064 = vmatprep.subr.mxu0 0.0
    %4065 = vmatpush1.msra.mxu0 0.0
    %4066 = vmatprep.subr.mxu0 0.0
    %4067 = vmatpush1.msra.mxu0 0.0
    %4068 = vmatprep.subr.mxu0 0.0
    %4069 = vmatpush1.msra.mxu0 0.0
    %4070 = vmatprep.subr.mxu0 0.0
    %4071 = vmatpush1.msra.mxu0 0.0
    %4072 = vmatprep.subr.mxu0 0.0
    %4073 = vmatpush1.msra.mxu0 0.0
    %4074 = vmatprep.subr.mxu0 0.0
    %4075 = vmatpush1.msra.mxu0 0.0
    %4076 = vmatprep.subr.mxu0 0.0
    %4077 = vmatpush1.msra.mxu0 0.0
    %4078 = vmatprep.subr.mxu0 0.0
    %4079 = vmatpush1.msra.mxu0 0.0
    %4080 = vmatprep.subr.mxu0 0.0
    %4081 = vmatpush1.msra.mxu0 0.0
    %4082 = vmatprep.subr.mxu0 0.0
    %4083 = vmatpush1.msra.mxu0 0.0
    %4084 = vmatprep.subr.mxu0 0.0
    %4085 = vmatpush1.msra.mxu0 0.0
    %4086 = vmatprep.subr.mxu0 0.0
    %4087 = vmatpush1.msra.mxu0 0.0
    %4088 = vmatprep.subr.mxu0 0.0
    %4089 = vmatpush1.msra.mxu0 0.0
    %4090 = vmatprep.subr.mxu0 0.0
    %4091 = vmatpush1.msra.mxu0 0.0
    %4092 = vmatprep.subr.mxu0 0.0
    %4093 = vmatpush1.msra.mxu0 0.0
    %4094 = vmatprep.subr.mxu0 0.0
    %4095 = vmatpush1.msra.mxu0 0.0
    %4096 = vmatprep.subr.mxu0 0.0
    %4097 = vmatpush1.msra.mxu0 0.0
    %4098 = vmatprep.mubr.f32.mxu0 0.0
    %4099 = vmatmul.mubr.f32.gmra.mrb[0].mxu0 %v4032
    %v4100 = vpop.f32.mrb[0].mxu0
    %v4101 = vadd.f32 0.0, %v4100
    %v4102 = vpop.f32.mrb[0].mxu0
    %4103 = vdwg.mxu0
    %v4104 = vadd.f32 %v4031, %v4101
    %v4105 = vxor.u32 %v4104, 2147483648
    %v4106 = vmul.f32 %v4105, 1.442695
    %v4107 = vpow.pop %v4106
    %v4108 = vadd.f32 %v4107, 1.0
    %v4109 = vrcp.pop %v4108
    %v4110 = vmul.f32 1.0, %v4109
    %v4111 = vtanh.pop %v4104
    %v4112 = vmul.f32 %v4110, %v4019
    %4114 = vrot.lane.b32.xlu0 %v4111, 64
    %v4115 = vpop.permute.xlu0 %4114
    %v4117 = vmul.f32 %v4110, %v4115
    %4119 = vrot.lane.b32.xlu0 %v4117, 32
    %v4120 = vpop.permute.xlu0 %4119
    %v4122 = vadd.f32 %v4112, %v4120
    %v4123 = vtanh.pop %v4122
    %4125 = vrot.lane.b32.xlu0 %v4123, 64
    %v4126 = vpop.permute.xlu0 %4125
    %v4128 = vmul.f32 %v4110, %v4126
    %4130 = vrot.lane.b32.xlu0 %v4128, 32
    %v4131 = vpop.permute.xlu0 %4130
    %4133 = vst.msk [vmem:[%s1013] sm:$0x3] %vm383, %v4131
    %v4134 = vld [vmem:[%s1015] sm:$0x3]
    %v4135 = vsel %vm276, %v4131, 0
    %4137 = vmatprep.subr.mxu0 0.0
    %4138 = vmatpush1.msra.mxu0 %v3400
    %4139 = vmatprep.subr.mxu0 0.0
    %4140 = vmatpush1.msra.mxu0 %v3401
    %4141 = vmatprep.subr.mxu0 0.0
    %4142 = vmatpush1.msra.mxu0 %v3402
    %4143 = vmatprep.subr.mxu0 0.0
    %4144 = vmatpush1.msra.mxu0 %v3403
    %4145 = vmatprep.subr.mxu0 0.0
    %4146 = vmatpush1.msra.mxu0 0.0
    %4147 = vmatprep.subr.mxu0 0.0
    %4148 = vmatpush1.msra.mxu0 0.0
    %4149 = vmatprep.subr.mxu0 0.0
    %4150 = vmatpush1.msra.mxu0 0.0
    %4151 = vmatprep.subr.mxu0 0.0
    %4152 = vmatpush1.msra.mxu0 0.0
    %4153 = vmatprep.subr.mxu0 0.0
    %4154 = vmatpush1.msra.mxu0 0.0
    %4155 = vmatprep.subr.mxu0 0.0
    %4156 = vmatpush1.msra.mxu0 0.0
    %4157 = vmatprep.subr.mxu0 0.0
    %4158 = vmatpush1.msra.mxu0 0.0
    %4159 = vmatprep.subr.mxu0 0.0
    %4160 = vmatpush1.msra.mxu0 0.0
    %4161 = vmatprep.subr.mxu0 0.0
    %4162 = vmatpush1.msra.mxu0 0.0
    %4163 = vmatprep.subr.mxu0 0.0
    %4164 = vmatpush1.msra.mxu0 0.0
    %4165 = vmatprep.subr.mxu0 0.0
    %4166 = vmatpush1.msra.mxu0 0.0
    %4167 = vmatprep.subr.mxu0 0.0
    %4168 = vmatpush1.msra.mxu0 0.0
    %4169 = vmatprep.subr.mxu0 0.0
    %4170 = vmatpush1.msra.mxu0 0.0
    %4171 = vmatprep.subr.mxu0 0.0
    %4172 = vmatpush1.msra.mxu0 0.0
    %4173 = vmatprep.subr.mxu0 0.0
    %4174 = vmatpush1.msra.mxu0 0.0
    %4175 = vmatprep.subr.mxu0 0.0
    %4176 = vmatpush1.msra.mxu0 0.0
    %4177 = vmatprep.subr.mxu0 0.0
    %4178 = vmatpush1.msra.mxu0 0.0
    %4179 = vmatprep.subr.mxu0 0.0
    %4180 = vmatpush1.msra.mxu0 0.0
    %4181 = vmatprep.subr.mxu0 0.0
    %4182 = vmatpush1.msra.mxu0 0.0
    %4183 = vmatprep.subr.mxu0 0.0
    %4184 = vmatpush1.msra.mxu0 0.0
    %4185 = vmatprep.subr.mxu0 0.0
    %4186 = vmatpush1.msra.mxu0 0.0
    %4187 = vmatprep.subr.mxu0 0.0
    %4188 = vmatpush1.msra.mxu0 0.0
    %4189 = vmatprep.subr.mxu0 0.0
    %4190 = vmatpush1.msra.mxu0 0.0
    %4191 = vmatprep.subr.mxu0 0.0
    %4192 = vmatpush1.msra.mxu0 0.0
    %4193 = vmatprep.subr.mxu0 0.0
    %4194 = vmatpush1.msra.mxu0 0.0
    %4195 = vmatprep.subr.mxu0 0.0
    %4196 = vmatpush1.msra.mxu0 0.0
    %4197 = vmatprep.subr.mxu0 0.0
    %4198 = vmatpush1.msra.mxu0 0.0
    %4199 = vmatprep.subr.mxu0 0.0
    %4200 = vmatpush1.msra.mxu0 0.0
    %4201 = vmatprep.mubr.f32.mxu0 0.0
    %4202 = vmatmul.mubr.f32.gmra.mrb[0].mxu0 %v4135
    %v4203 = vpop.f32.mrb[0].mxu0
    %v4204 = vadd.f32 0.0, %v4203
    %v4205 = vpop.f32.mrb[0].mxu0
    %4206 = vdwg.mxu0
    %v4207 = vadd.f32 %v4134, %v4204
    %v4208 = vxor.u32 %v4207, 2147483648
    %v4209 = vmul.f32 %v4208, 1.442695
    %v4210 = vpow.pop %v4209
    %v4211 = vadd.f32 %v4210, 1.0
    %v4212 = vrcp.pop %v4211
    %v4213 = vmul.f32 1.0, %v4212
    %v4214 = vtanh.pop %v4207
    %v4215 = vmul.f32 %v4213, %v4122
    %4217 = vrot.lane.b32.xlu0 %v4214, 64
    %v4218 = vpop.permute.xlu0 %4217
    %v4220 = vmul.f32 %v4213, %v4218
    %4222 = vrot.lane.b32.xlu0 %v4220, 32
    %v4223 = vpop.permute.xlu0 %4222
    %v4225 = vadd.f32 %v4215, %v4223
    %v4226 = vtanh.pop %v4225
    %4228 = vrot.lane.b32.xlu0 %v4226, 64
    %v4229 = vpop.permute.xlu0 %4228
    %v4231 = vmul.f32 %v4213, %v4229
    %4233 = vrot.lane.b32.xlu0 %v4231, 32
    %v4234 = vpop.permute.xlu0 %4233
    %4236 = vst.msk [vmem:[%s1118] sm:$0x3] %vm383, %v4234
    %s4237 = scalar_lea.vmem [#allocation10], 6
    %4238 = vst.msk [vmem:[%s4237] sm:$0x3] %vm383, %v4234
    %4240 = vrot.lane.b32.xlu0 %v4225, 96
    %v4241 = vpop.permute.xlu0 %4240
    %s4243 = scalar_lea.vmem [#allocation11], 6
    %4244 = vst.msk [vmem:[%s4243] sm:$0x3] %vm383, %v4241
    %v4245 = vld [vmem:[#allocation2] sm:$0x3]
    %v4246 = vld [vmem:[#allocation2 + $0x2] sm:$0x3]
    %v4247 = vld [vmem:[#allocation2 + $0x4] sm:$0x3]
    %v4248 = vld [vmem:[#allocation2 + $0x6] sm:$0x3]
    %v4249 = vld [vmem:[#allocation2 + $0x8] sm:$0x3]
    %v4250 = vld [vmem:[#allocation2 + $0xa] sm:$0x3]
    %v4251 = vld [vmem:[#allocation2 + $0xc] sm:$0x3]
    %v4252 = vld [vmem:[#allocation2 + $0xe] sm:$0x3]
    %v4253 = vld [vmem:[%s7] sm:$0xff]
    %v4254 = vld [vmem:[%s7 + $0x8] sm:$0xff]
    %v4255 = vld [vmem:[%s7 + $0x10] sm:$0xff]
    %v4256 = vld [vmem:[%s7 + $0x18] sm:$0xff]
    %v4257 = vld [vmem:[%s8] sm:$0x1]
    %v4259 = vlaneseq
    %v4260 = vshrl.u32 %v4259, 7
    %v4261 = vsub.s32 0, %v4260
    %v4262 = vrot.slane %v4257, %v4261
    %v4272 = vcombine.low %v4245, %v4246
    %v4273 = vcombine.low %v4247, %v4248
    %v4275 = vunpack.c.l.s4 1983009808
    %v4276 = vunpack.c.0.s8 %v4275
    %v4277 = vlaneseq
    %v4278 = vshrl.u32 %v4277, 7
    %v4279 = vsub.s32 %v4276, %v4278
    %v4280 = vrot.slane %v4272, %v4279
    %v4282 = vunpack.c.l.s4 1983009808
    %v4283 = vunpack.c.0.s8 %v4282
    %v4284 = vlaneseq
    %v4285 = vshrl.u32 %v4284, 7
    %v4286 = vsub.s32 %v4283, %v4285
    %v4287 = vrot.slane %v4273, %v4286
    %v4288 = vcombine.low %v4280, %v4287
    %v4289 = vcombine.low %v4249, %v4250
    %v4290 = vcombine.low %v4251, %v4252
    %v4292 = vunpack.c.l.s4 1983009808
    %v4293 = vunpack.c.0.s8 %v4292
    %v4294 = vlaneseq
    %v4295 = vshrl.u32 %v4294, 7
    %v4296 = vsub.s32 %v4293, %v4295
    %v4297 = vrot.slane %v4289, %v4296
    %v4299 = vunpack.c.l.s4 1983009808
    %v4300 = vunpack.c.0.s8 %v4299
    %v4301 = vlaneseq
    %v4302 = vshrl.u32 %v4301, 7
    %v4303 = vsub.s32 %v4300, %v4302
    %v4304 = vrot.slane %v4290, %v4303
    %v4305 = vcombine.low %v4297, %v4304
    %v4306 = vsel %vm276, %v4288, 0
    %v4308 = vsel %vm276, %v4305, 0
    %4310 = vmatprep.subr.mxu0 0.0
    %4311 = vmatpush1.msra.mxu0 %v4253
    %4312 = vmatprep.subr.mxu0 0.0
    %4313 = vmatpush1.msra.mxu0 %v4254
    %4314 = vmatprep.subr.mxu0 0.0
    %4315 = vmatpush1.msra.mxu0 %v4255
    %4316 = vmatprep.subr.mxu0 0.0
    %4317 = vmatpush1.msra.mxu0 %v4256
    %4318 = vmatprep.subr.mxu0 0.0
    %4319 = vmatpush1.msra.mxu0 0.0
    %4320 = vmatprep.subr.mxu0 0.0
    %4321 = vmatpush1.msra.mxu0 0.0
    %4322 = vmatprep.subr.mxu0 0.0
    %4323 = vmatpush1.msra.mxu0 0.0
    %4324 = vmatprep.subr.mxu0 0.0
    %4325 = vmatpush1.msra.mxu0 0.0
    %4326 = vmatprep.subr.mxu0 0.0
    %4327 = vmatpush1.msra.mxu0 0.0
    %4328 = vmatprep.subr.mxu0 0.0
    %4329 = vmatpush1.msra.mxu0 0.0
    %4330 = vmatprep.subr.mxu0 0.0
    %4331 = vmatpush1.msra.mxu0 0.0
    %4332 = vmatprep.subr.mxu0 0.0
    %4333 = vmatpush1.msra.mxu0 0.0
    %4334 = vmatprep.subr.mxu0 0.0
    %4335 = vmatpush1.msra.mxu0 0.0
    %4336 = vmatprep.subr.mxu0 0.0
    %4337 = vmatpush1.msra.mxu0 0.0
    %4338 = vmatprep.subr.mxu0 0.0
    %4339 = vmatpush1.msra.mxu0 0.0
    %4340 = vmatprep.subr.mxu0 0.0
    %4341 = vmatpush1.msra.mxu0 0.0
    %4342 = vmatprep.subr.mxu0 0.0
    %4343 = vmatpush1.msra.mxu0 0.0
    %4344 = vmatprep.subr.mxu0 0.0
    %4345 = vmatpush1.msra.mxu0 0.0
    %4346 = vmatprep.subr.mxu0 0.0
    %4347 = vmatpush1.msra.mxu0 0.0
    %4348 = vmatprep.subr.mxu0 0.0
    %4349 = vmatpush1.msra.mxu0 0.0
    %4350 = vmatprep.subr.mxu0 0.0
    %4351 = vmatpush1.msra.mxu0 0.0
    %4352 = vmatprep.subr.mxu0 0.0
    %4353 = vmatpush1.msra.mxu0 0.0
    %4354 = vmatprep.subr.mxu0 0.0
    %4355 = vmatpush1.msra.mxu0 0.0
    %4356 = vmatprep.subr.mxu0 0.0
    %4357 = vmatpush1.msra.mxu0 0.0
    %4358 = vmatprep.subr.mxu0 0.0
    %4359 = vmatpush1.msra.mxu0 0.0
    %4360 = vmatprep.subr.mxu0 0.0
    %4361 = vmatpush1.msra.mxu0 0.0
    %4362 = vmatprep.subr.mxu0 0.0
    %4363 = vmatpush1.msra.mxu0 0.0
    %4364 = vmatprep.subr.mxu0 0.0
    %4365 = vmatpush1.msra.mxu0 0.0
    %4366 = vmatprep.subr.mxu0 0.0
    %4367 = vmatpush1.msra.mxu0 0.0
    %4368 = vmatprep.subr.mxu0 0.0
    %4369 = vmatpush1.msra.mxu0 0.0
    %4370 = vmatprep.subr.mxu0 0.0
    %4371 = vmatpush1.msra.mxu0 0.0
    %4372 = vmatprep.subr.mxu0 0.0
    %4373 = vmatpush1.msra.mxu0 0.0
    %4374 = vmatprep.mubr.f32.mxu0 0.0
    %4375 = vmatmul.mubr.f32.gmra.mrb[0].mxu0 %v4306
    %v4376 = vpop.f32.mrb[0].mxu0
    %v4377 = vadd.f32 %v4262, %v4376
    %v4378 = vpop.f32.mrb[0].mxu0
    %4379 = vmatprep.mubr.f32.mxu0 0.0
    %4380 = vmatmul.mubr.f32.gmra.mrb[0].mxu0 %v4308
    %v4381 = vpop.f32.mrb[0].mxu0
    %v4382 = vadd.f32 %v4262, %v4381
    %v4383 = vpop.f32.mrb[0].mxu0
    %4384 = vdwg.mxu0
    %v4387 = vcombine.high %v4377, %v4377
    %v4389 = vunpack.c.l.s4 1983009808
    %v4390 = vunpack.c.0.s8 %v4389
    %v4391 = vlaneseq
    %v4392 = vshrl.u32 %v4391, 7
    %v4393 = vsub.s32 %v4390, %v4392
    %v4394 = vrot.slane %v4377, %v4393
    %v4396 = vunpack.c.l.s4 1983009808
    %v4397 = vunpack.c.0.s8 %v4396
    %v4398 = vlaneseq
    %v4399 = vshrl.u32 %v4398, 7
    %v4400 = vsub.s32 %v4397, %v4399
    %v4401 = vrot.slane %v4387, %v4400
    %v4402 = vcombine.high %v4394, %v4394
    %v4403 = vcombine.high %v4401, %v4401
    %v4404 = vcombine.high %v4382, %v4382
    %v4406 = vunpack.c.l.s4 1983009808
    %v4407 = vunpack.c.0.s8 %v4406
    %v4408 = vlaneseq
    %v4409 = vshrl.u32 %v4408, 7
    %v4410 = vsub.s32 %v4407, %v4409
    %v4411 = vrot.slane %v4382, %v4410
    %v4413 = vunpack.c.l.s4 1983009808
    %v4414 = vunpack.c.0.s8 %v4413
    %v4415 = vlaneseq
    %v4416 = vshrl.u32 %v4415, 7
    %v4417 = vsub.s32 %v4414, %v4416
    %v4418 = vrot.slane %v4404, %v4417
    %v4419 = vcombine.high %v4411, %v4411
    %v4420 = vcombine.high %v4418, %v4418
    %4429 = vst.msk [vmem:[%s9] sm:$0x3] %vm383, %v4394
    %4430 = vst.msk [vmem:[%s9 + $0x2] sm:$0x3] %vm383, %v4402
    %4431 = vst.msk [vmem:[%s9 + $0x4] sm:$0x3] %vm383, %v4401
    %4432 = vst.msk [vmem:[%s9 + $0x6] sm:$0x3] %vm383, %v4403
    %4433 = vst.msk [vmem:[%s9 + $0x8] sm:$0x3] %vm383, %v4411
    %4434 = vst.msk [vmem:[%s9 + $0xa] sm:$0x3] %vm383, %v4419
    %4435 = vst.msk [vmem:[%s9 + $0xc] sm:$0x3] %vm383, %v4418
    %4436 = vst.msk [vmem:[%s9 + $0xe] sm:$0x3] %vm383, %v4420
    // Predicated region
    $region50: #{decoder_forward.1} parent=1 // pred_check
      _
    $region51: #{decoder_forward.1} parent=1 // pred_check_branch
      %4438 = sbr.rel (0) target = $region53
    $region52: #{decoder_forward.1} parent=1 // pred_region
      _
    $region53: #{decoder_forward.1} parent=1 // pred_fallthru
      _
    // Predicated region
    $region54: #{decoder_forward.1} parent=1 // pred_check
      _
    $region55: #{decoder_forward.1} parent=1 // pred_check_branch
      %4440 = sbr.rel (0) target = $region57
    $region56: #{decoder_forward.1} parent=1 // pred_region
      %s4442 = ssub.s32 128, 128
      %4443 = vsyncadd [#allocation6], %s4442
      %s4444 = sshll.u32 [#allocation10], 4
      %s4445 = int_to_ptr.vmem [resolvable:$true] %s4444
      %4450 = dma.vmem_to_hbm [thread:$0]  %s4445, 128, %s10, [#allocation6], 32, 32, 2
    $region57: #{decoder_forward.1} parent=1 // pred_fallthru
      _
    // Predicated region
    $region58: #{decoder_forward.1} parent=1 // pred_check
      _
    $region59: #{decoder_forward.1} parent=1 // pred_check_branch
      %4452 = sbr.rel (0) target = $region61
    $region60: #{decoder_forward.1} parent=1 // pred_region
      %s4454 = ssub.s32 128, 128
      %4455 = vsyncadd [#allocation12], %s4454
      %s4456 = sshll.u32 [#allocation11], 4
      %s4457 = int_to_ptr.vmem [resolvable:$true] %s4456
      %4462 = dma.vmem_to_hbm [thread:$0]  %s4457, 128, %s11, [#allocation12], 32, 32, 2
    $region61: #{decoder_forward.1} parent=1 // pred_fallthru
      _
    // Predicated region
    $region62: #{decoder_forward.1} parent=1 // pred_check
      _
    $region63: #{decoder_forward.1} parent=1 // pred_check_branch
      %4464 = sbr.rel (0) target = $region65
    $region64: #{decoder_forward.1} parent=1 // pred_region
      _
    $region65: #{decoder_forward.1} parent=1 // pred_fallthru
      _
    // Predicated region
    $region66: #{decoder_forward.1} parent=1 // pred_check
      _
    $region67: #{decoder_forward.1} parent=1 // pred_check_branch
      %4466 = sbr.rel (0) target = $region69
    $region68: #{decoder_forward.1} parent=1 // pred_region
      %4467 = dma.done [#allocation6], 128
    $region69: #{decoder_forward.1} parent=1 // pred_fallthru
      _
    // Predicated region
    $region70: #{decoder_forward.1} parent=1 // pred_check
      _
    $region71: #{decoder_forward.1} parent=1 // pred_check_branch
      %4469 = sbr.rel (0) target = $region73
    $region72: #{decoder_forward.1} parent=1 // pred_region
      %4470 = dma.done [#allocation12], 128
    $region73: #{decoder_forward.1} parent=1 // pred_fallthru
      _
    %4471 = vsyncpa [#allocation5], 1
    %4472 = vsyncpa [#allocation8], 1
    %4473 = vsyncpa [#allocation6], 1
    %4474 = vsyncpa [#allocation12], 1

</llo_original>
